<compile_context>
chip_gen: v5e
topology: v5e:2x2
jax: 0.10.0
libtpu: 0.0.40
codegen_flags: <defaults>
</compile_context>

<pallas_src>
import functools
import math

import jax
import jax.numpy as jnp
from jax import lax
from jax.experimental import pallas as pl
from jax.experimental.pallas import tpu as pltpu


# ----------------------------- Pallas kernel ------------------------------

def _conv_mm_kernel(x_ref, w_ref, o_ref, *, apply_act, slope):
    # W (C_out, K) @ X (tm, K)^T -> (C_out, tm): f32 accumulation on the MXU.
    # tm % 128 == 0 -> lane-dense output, unmasked stores, full-vreg VPU work.
    y = lax.dot_general(
        w_ref[...], x_ref[...],
        dimension_numbers=(((1,), (1,)), ((), ())),
        preferred_element_type=jnp.float32)
    if apply_act:
        y = jnp.where(y > 0, y, slope * y)   # LeakyReLU(0.2) in f32
    o_ref[...] = y.astype(o_ref.dtype)


def _round_up(x, m):
    return ((x + m - 1) // m) * m


def _choose_tm(m128, k, c_out, budget_bytes=16 * 1024 * 1024):
    """Largest multiple of 128 whose double-buffered tiles fit the budget."""
    # per output-row bytes: bf16 X row (double-buffered) + f32 output column
    per_row = 2 * (k * 2) + 2 * (c_out * 4)
    tm = max(128, (budget_bytes // per_row) // 128 * 128)
    tm = min(tm, m128)
    # Keep >= 2 grid steps when possible so ("parallel",) can use both
    # TensorCores on v7x.
    if tm == m128 and m128 >= 256:
        tm = _round_up(m128 // 2, 128)
    return tm


def pallas_conv_matmul(x_mat, w_mat, *, apply_act, slope=0.2):
    """x_mat: (M, K) bf16 patches, w_mat: (C_out, K) bf16 -> (C_out, M) f32."""
    m, k = x_mat.shape
    c_out, k2 = w_mat.shape
    assert k == k2
    tm = _choose_tm(_round_up(m, 128), k, c_out)
    m_pad = _round_up(m, tm)
    if m_pad != m:
        x_mat = jnp.pad(x_mat, ((0, m_pad - m), (0, 0)))  # zero rows, sliced off
    kernel = functools.partial(_conv_mm_kernel, apply_act=apply_act, slope=slope)
    out = pl.pallas_call(
        kernel,
        out_shape=jax.ShapeDtypeStruct((c_out, m_pad), jnp.float32),
        grid_spec=pltpu.PrefetchScalarGridSpec(
            num_scalar_prefetch=0,
            grid=(m_pad // tm,),
            in_specs=[
                # big activation-patch tiles (bf16)
                pl.BlockSpec((tm, k), lambda i: (i, 0)),
                # weight with BN scale folded in; constant block index ->
                # resident in VMEM, not re-DMA'd per grid step.
                pl.BlockSpec((c_out, k), lambda i: (0, 0)),
            ],
            out_specs=pl.BlockSpec((c_out, tm), lambda i: (0, i)),
        ),
        compiler_params=pltpu.CompilerParams(
            dimension_semantics=("parallel",),
            vmem_limit_bytes=32 * 1024 * 1024,   # safe scoped limit on v5e/v6e/v7x
        ),
    )(x_mat, w_mat)
    return out[:, :m]


# ------------------------ model definition / params -----------------------

KSIZE = (4, 4, 4)
STRIDE = (1, 2, 2)
PAD = ((0, 0), (1, 1), (1, 1))
HAS_BN = (False, True, True, False)
HAS_ACT = (True, True, True, False)
BN_EPS = 1e-5


def init_weights(key, n_channels, ndf, n_output_neurons=1):
    c_ins = [n_channels, ndf, ndf * 2, ndf * 4]
    c_outs = [ndf, ndf * 2, ndf * 4, n_output_neurons]
    weights = []
    for c_in, c_out in zip(c_ins, c_outs):
        key, sub = jax.random.split(key)
        fan_in = c_in * 4 * 4 * 4
        weights.append(jax.random.normal(sub, (c_out, c_in, 4, 4, 4),
                                         jnp.float32) / math.sqrt(fan_in))
    return weights


def patch_video_discriminator_forward(x, weights):
    """x: (N, C, T, H, W) NCDHW (PyTorch layout). Returns (h.squeeze(), None)."""
    # Channel-last once at the top, kept end-to-end (no per-layer NCDHW trips).
    h = jnp.transpose(x, (0, 2, 3, 4, 1))            # (N, T, H, W, C)
    for li in range(4):
        w = weights[li]                              # (C_out, C_in, 4, 4, 4)
        c_out = w.shape[0]
        if HAS_BN[li]:
            # eval-mode BN with default running stats: per-channel scale only.
            scale = jnp.full((c_out, 1), 1.0 / math.sqrt(1.0 + BN_EPS),
                             jnp.float32)
        else:
            scale = jnp.ones((c_out, 1), jnp.float32)
        w_mat = (w.reshape(c_out, -1) * scale).astype(jnp.bfloat16)
        # im2col as one fused XLA op, channel-last. Feature ordering is
        # c_in-major then (kt, kh, kw) row-major, matching the PyTorch
        # (C_out, C_in, kT, kH, kW) weight reshape above.
        patches = lax.conv_general_dilated_patches(
            h.astype(jnp.bfloat16),
            filter_shape=KSIZE,
            window_strides=STRIDE,
            padding=PAD,
            dimension_numbers=("NDHWC", "DHWIO", "NDHWC"))
        n, to, ho, wo, k = patches.shape
        x_mat = patches.reshape(n * to * ho * wo, k)
        y = pallas_conv_matmul(x_mat, w_mat, apply_act=HAS_ACT[li])
        # (C_out, M) lane-dense kernel output -> NDHWC for the next layer
        # (small, non-inflated activation tensor).
        h = y.reshape(c_out, n, to, ho, wo).transpose(1, 2, 3, 4, 0)
    out = jnp.squeeze(jnp.transpose(h, (0, 4, 1, 2, 3)))  # NCDHW then .squeeze()
    return out, None


# ------------------------- pure-JAX reference -----------------------------

def ref_forward(x, weights):
    h = x
    for li in range(4):
        h = lax.conv_general_dilated(
            h, weights[li],
            window_strides=STRIDE,
            padding=PAD,
            dimension_numbers=("NCDHW", "OIDHW", "NCDHW"),
            precision=lax.Precision.HIGHEST)
        if HAS_BN[li]:
            h = h * (1.0 / math.sqrt(1.0 + BN_EPS))
        if HAS_ACT[li]:
            h = jnp.where(h > 0, h, 0.2 * h)
    return jnp.squeeze(h), None


# --------------------------------- main ------------------------------------

if __name__ == "__main__":
    # T=16 -> 13 -> 10 -> 7 -> 4 (kT=4, no time padding); H=W=32 -> 16 -> 8 -> 4 -> 2
    N, C, T, H, W = 2, 3, 16, 32, 32
    ndf = 8

    key = jax.random.PRNGKey(0)
    kx, kw = jax.random.split(key)
    x = jax.random.normal(kx, (N, C, T, H, W), jnp.float32)
    weights = init_weights(kw, C, ndf)

    fwd = jax.jit(patch_video_discriminator_forward)
    out, aux = fwd(x, weights)
    out = jax.block_until_ready(out)

    assert aux is None
    assert out.shape == (N, 4, 2, 2), out.shape

    ref, _ = ref_forward(x, weights)
    # bf16 matmul operands (f32 accumulation) vs f32 HIGHEST reference.
    assert jnp.allclose(out, ref, atol=3e-2, rtol=3e-2), \
        float(jnp.max(jnp.abs(out - ref)))

    print("KERNEL_OK")
</pallas_src>

<mosaic_0001>
module attributes {stable_mosaic.version = 11 : i64} {
  func.func @_conv_mm_kernel(%arg0: i32, %arg1: memref<3328x192xbf16, #tpu.memory_space<vmem>>, %arg2: memref<8x192xbf16, #tpu.memory_space<vmem>>, %arg3: memref<8x3328xf32, #tpu.memory_space<vmem>>) attributes {dimension_semantics = [#tpu.dimension_semantics<parallel>], iteration_bounds = array<i64: 2>, scalar_prefetch = 0 : i64, scratch_operands = 0 : i64, tpu.core_type = #tpu.core_type<tc>, window_params = [{transform_indices = @transform_0, window_bounds = array<i64: 3328, 192>}, {pipeline_mode = #tpu.pipeline_mode<synchronous>, transform_indices = @transform_1, window_bounds = array<i64: 8, 192>}, {transform_indices = @transform_2, window_bounds = array<i64: 8, 3328>}]} {
    %c0 = arith.constant 0 : index
    %c0_0 = arith.constant 0 : index
    %0 = vector.load %arg2[%c0, %c0_0] : memref<8x192xbf16, #tpu.memory_space<vmem>>, vector<8x192xbf16>
    %c0_1 = arith.constant 0 : index
    %c0_2 = arith.constant 0 : index
    %1 = vector.load %arg1[%c0_1, %c0_2] : memref<3328x192xbf16, #tpu.memory_space<vmem>>, vector<3328x192xbf16>
    %cst = arith.constant dense<0.000000e+00> : vector<8x3328xf32>
    %2 = tpu.matmul %0, %1, %cst {dimension_numbers = #tpu.dot_dimension_numbers<[1], [1], [0], [0], [0, 0, 1, 0], [], []>} : vector<8x192xbf16>, vector<3328x192xbf16>, vector<8x3328xf32> -> vector<8x3328xf32>
    %cst_3 = arith.constant 0.000000e+00 : f32
    %3 = vector.broadcast %cst_3 : f32 to vector<8x3328xf32>
    %4 = arith.cmpf ogt, %2, %3 : vector<8x3328xf32>
    %cst_4 = arith.constant 2.000000e-01 : f32
    %5 = vector.broadcast %cst_4 : f32 to vector<8x3328xf32>
    %6 = arith.mulf %5, %2 : vector<8x3328xf32>
    %7 = arith.select %4, %2, %6 : vector<8x3328xi1>, vector<8x3328xf32>
    %c0_5 = arith.constant 0 : index
    %c0_6 = arith.constant 0 : index
    %8 = vector.load %arg3[%c0_5, %c0_6] : memref<8x3328xf32, #tpu.memory_space<vmem>>, vector<8x3328xf32>
    tpu.vector_store %arg3[%c0_5, %c0_6], %7 {strides = array<i32>} : memref<8x3328xf32, #tpu.memory_space<vmem>>, vector<8x3328xf32>,
    return
  }
  func.func @transform_0(%arg0: i32) -> (i32, i32) {
    %c0_i32 = arith.constant 0 : i32
    %c0_i32_0 = arith.constant 0 : i32
    return %arg0, %c0_i32 : i32, i32
  }
  func.func @transform_1(%arg0: i32) -> (i32, i32) {
    %c0_i32 = arith.constant 0 : i32
    %c0_i32_0 = arith.constant 0 : i32
    %c0_i32_1 = arith.constant 0 : i32
    return %c0_i32, %c0_i32_0 : i32, i32
  }
  func.func @transform_2(%arg0: i32) -> (i32, i32) {
    %c0_i32 = arith.constant 0 : i32
    %c0_i32_0 = arith.constant 0 : i32
    return %c0_i32, %arg0 : i32, i32
  }
}

module attributes {stable_mosaic.version = 11 : i64} {
  func.func @_conv_mm_kernel(%arg0: i32, %arg1: memref<640x512xbf16, #tpu.memory_space<vmem>>, %arg2: memref<16x512xbf16, #tpu.memory_space<vmem>>, %arg3: memref<16x640xf32, #tpu.memory_space<vmem>>) attributes {dimension_semantics = [#tpu.dimension_semantics<parallel>], iteration_bounds = array<i64: 2>, scalar_prefetch = 0 : i64, scratch_operands = 0 : i64, tpu.core_type = #tpu.core_type<tc>, window_params = [{transform_indices = @transform_0, window_bounds = array<i64: 640, 512>}, {pipeline_mode = #tpu.pipeline_mode<synchronous>, transform_indices = @transform_1, window_bounds = array<i64: 16, 512>}, {transform_indices = @transform_2, window_bounds = array<i64: 16, 640>}]} {
    %c0 = arith.constant 0 : index
    %c0_0 = arith.constant 0 : index
    %0 = vector.load %arg2[%c0, %c0_0] : memref<16x512xbf16, #tpu.memory_space<vmem>>, vector<16x512xbf16>
    %c0_1 = arith.constant 0 : index
    %c0_2 = arith.constant 0 : index
    %1 = vector.load %arg1[%c0_1, %c0_2] : memref<640x512xbf16, #tpu.memory_space<vmem>>, vector<640x512xbf16>
    %cst = arith.constant dense<0.000000e+00> : vector<16x640xf32>
    %2 = tpu.matmul %0, %1, %cst {dimension_numbers = #tpu.dot_dimension_numbers<[1], [1], [0], [0], [0, 0, 1, 0], [], []>} : vector<16x512xbf16>, vector<640x512xbf16>, vector<16x640xf32> -> vector<16x640xf32>
    %cst_3 = arith.constant 0.000000e+00 : f32
    %3 = vector.broadcast %cst_3 : f32 to vector<16x640xf32>
    %4 = arith.cmpf ogt, %2, %3 : vector<16x640xf32>
    %cst_4 = arith.constant 2.000000e-01 : f32
    %5 = vector.broadcast %cst_4 : f32 to vector<16x640xf32>
    %6 = arith.mulf %5, %2 : vector<16x640xf32>
    %7 = arith.select %4, %2, %6 : vector<16x640xi1>, vector<16x640xf32>
    %c0_5 = arith.constant 0 : index
    %c0_6 = arith.constant 0 : index
    %8 = vector.load %arg3[%c0_5, %c0_6] : memref<16x640xf32, #tpu.memory_space<vmem>>, vector<16x640xf32>
    tpu.vector_store %arg3[%c0_5, %c0_6], %7 {strides = array<i32>} : memref<16x640xf32, #tpu.memory_space<vmem>>, vector<16x640xf32>,
    return
  }
  func.func @transform_0(%arg0: i32) -> (i32, i32) {
    %c0_i32 = arith.constant 0 : i32
    %c0_i32_0 = arith.constant 0 : i32
    return %arg0, %c0_i32 : i32, i32
  }
  func.func @transform_1(%arg0: i32) -> (i32, i32) {
    %c0_i32 = arith.constant 0 : i32
    %c0_i32_0 = arith.constant 0 : i32
    %c0_i32_1 = arith.constant 0 : i32
    return %c0_i32, %c0_i32_0 : i32, i32
  }
  func.func @transform_2(%arg0: i32) -> (i32, i32) {
    %c0_i32 = arith.constant 0 : i32
    %c0_i32_0 = arith.constant 0 : i32
    return %c0_i32, %arg0 : i32, i32
  }
}

module attributes {stable_mosaic.version = 11 : i64} {
  func.func @_conv_mm_kernel(%arg0: i32, %arg1: memref<128x1024xbf16, #tpu.memory_space<vmem>>, %arg2: memref<32x1024xbf16, #tpu.memory_space<vmem>>, %arg3: memref<32x128xf32, #tpu.memory_space<vmem>>) attributes {dimension_semantics = [#tpu.dimension_semantics<parallel>], iteration_bounds = array<i64: 2>, scalar_prefetch = 0 : i64, scratch_operands = 0 : i64, tpu.core_type = #tpu.core_type<tc>, window_params = [{transform_indices = @transform_0, window_bounds = array<i64: 128, 1024>}, {pipeline_mode = #tpu.pipeline_mode<synchronous>, transform_indices = @transform_1, window_bounds = array<i64: 32, 1024>}, {transform_indices = @transform_2, window_bounds = array<i64: 32, 128>}]} {
    %c0 = arith.constant 0 : index
    %c0_0 = arith.constant 0 : index
    %0 = vector.load %arg2[%c0, %c0_0] : memref<32x1024xbf16, #tpu.memory_space<vmem>>, vector<32x1024xbf16>
    %c0_1 = arith.constant 0 : index
    %c0_2 = arith.constant 0 : index
    %1 = vector.load %arg1[%c0_1, %c0_2] : memref<128x1024xbf16, #tpu.memory_space<vmem>>, vector<128x1024xbf16>
    %cst = arith.constant dense<0.000000e+00> : vector<32x128xf32>
    %2 = tpu.matmul %0, %1, %cst {dimension_numbers = #tpu.dot_dimension_numbers<[1], [1], [0], [0], [0, 0, 1, 0], [], []>} : vector<32x1024xbf16>, vector<128x1024xbf16>, vector<32x128xf32> -> vector<32x128xf32>
    %cst_3 = arith.constant 0.000000e+00 : f32
    %3 = vector.broadcast %cst_3 : f32 to vector<32x128xf32>
    %4 = arith.cmpf ogt, %2, %3 : vector<32x128xf32>
    %cst_4 = arith.constant 2.000000e-01 : f32
    %5 = vector.broadcast %cst_4 : f32 to vector<32x128xf32>
    %6 = arith.mulf %5, %2 : vector<32x128xf32>
    %7 = arith.select %4, %2, %6 : vector<32x128xi1>, vector<32x128xf32>
    %c0_5 = arith.constant 0 : index
    %c0_6 = arith.constant 0 : index
    %8 = vector.load %arg3[%c0_5, %c0_6] : memref<32x128xf32, #tpu.memory_space<vmem>>, vector<32x128xf32>
    tpu.vector_store %arg3[%c0_5, %c0_6], %7 {strides = array<i32>} : memref<32x128xf32, #tpu.memory_space<vmem>>, vector<32x128xf32>,
    return
  }
  func.func @transform_0(%arg0: i32) -> (i32, i32) {
    %c0_i32 = arith.constant 0 : i32
    %c0_i32_0 = arith.constant 0 : i32
    return %arg0, %c0_i32 : i32, i32
  }
  func.func @transform_1(%arg0: i32) -> (i32, i32) {
    %c0_i32 = arith.constant 0 : i32
    %c0_i32_0 = arith.constant 0 : i32
    %c0_i32_1 = arith.constant 0 : i32
    return %c0_i32, %c0_i32_0 : i32, i32
  }
  func.func @transform_2(%arg0: i32) -> (i32, i32) {
    %c0_i32 = arith.constant 0 : i32
    %c0_i32_0 = arith.constant 0 : i32
    return %c0_i32, %arg0 : i32, i32
  }
}

module attributes {stable_mosaic.version = 11 : i64} {
  func.func @_conv_mm_kernel(%arg0: i32, %arg1: memref<128x2048xbf16, #tpu.memory_space<vmem>>, %arg2: memref<1x2048xbf16, #tpu.memory_space<vmem>>, %arg3: memref<1x128xf32, #tpu.memory_space<vmem>>) attributes {dimension_semantics = [#tpu.dimension_semantics<parallel>], iteration_bounds = array<i64: 1>, scalar_prefetch = 0 : i64, scratch_operands = 0 : i64, tpu.core_type = #tpu.core_type<tc>, window_params = [{transform_indices = @transform_0, window_bounds = array<i64: 128, 2048>}, {pipeline_mode = #tpu.pipeline_mode<synchronous>, transform_indices = @transform_1, window_bounds = array<i64: 1, 2048>}, {transform_indices = @transform_2, window_bounds = array<i64: 1, 128>}]} {
    %c0 = arith.constant 0 : index
    %c0_0 = arith.constant 0 : index
    %0 = vector.load %arg2[%c0, %c0_0] : memref<1x2048xbf16, #tpu.memory_space<vmem>>, vector<1x2048xbf16>
    %c0_1 = arith.constant 0 : index
    %c0_2 = arith.constant 0 : index
    %1 = vector.load %arg1[%c0_1, %c0_2] : memref<128x2048xbf16, #tpu.memory_space<vmem>>, vector<128x2048xbf16>
    %cst = arith.constant dense<0.000000e+00> : vector<1x128xf32>
    %2 = tpu.matmul %0, %1, %cst {dimension_numbers = #tpu.dot_dimension_numbers<[1], [1], [0], [0], [0, 0, 1, 0], [], []>} : vector<1x2048xbf16>, vector<128x2048xbf16>, vector<1x128xf32> -> vector<1x128xf32>
    %c0_3 = arith.constant 0 : index
    %c0_4 = arith.constant 0 : index
    %3 = vector.load %arg3[%c0_3, %c0_4] : memref<1x128xf32, #tpu.memory_space<vmem>>, vector<1x128xf32>
    tpu.vector_store %arg3[%c0_3, %c0_4], %2 {strides = array<i32>} : memref<1x128xf32, #tpu.memory_space<vmem>>, vector<1x128xf32>,
    return
  }
  func.func @transform_0(%arg0: i32) -> (i32, i32) {
    %c0_i32 = arith.constant 0 : i32
    %c0_i32_0 = arith.constant 0 : i32
    return %arg0, %c0_i32 : i32, i32
  }
  func.func @transform_1(%arg0: i32) -> (i32, i32) {
    %c0_i32 = arith.constant 0 : i32
    %c0_i32_0 = arith.constant 0 : i32
    %c0_i32_1 = arith.constant 0 : i32
    return %c0_i32, %c0_i32_0 : i32, i32
  }
  func.func @transform_2(%arg0: i32) -> (i32, i32) {
    %c0_i32 = arith.constant 0 : i32
    %c0_i32_0 = arith.constant 0 : i32
    return %c0_i32, %arg0 : i32, i32
  }
}

</mosaic_0001>

<llo_original>
// kernel: patch_video_discriminator_forward.4
$region0: #{patch_video_discriminator_forward.4}
  #allocation0 [shape = 'u32[]', space=smem, size = 0x4, offset = 0x4, fixed_abs, tag = 'smem constant byte address 0x4 - core index']
  #allocation1 [shape = 'u32[72,128]{1,0:T(1,128)}', space=vmem, size = 0x9000, scoped, tag = 'internal scratch']
  %s0 = inlined_call_operand.vmem [shape: bf16[6656,192], index: 0, kind: input, shape index: {}]
  %s1 = inlined_call_operand.vmem [shape: bf16[8,192], index: 1, kind: input, shape index: {}]
  %s2 = inlined_call_operand.vmem [shape: f32[8,6656], index: 2, kind: output, shape index: {}]
  %s3 = sld [smem:[#allocation0]]
  $region41: #{patch_video_discriminator_forward.4} parent=0
    _
  %s5 = ssub.s32 1, %s3
  %s6 = scalar_select 0, %s5, %s3
  loop: start=0, step=1, limit=4
  $region2: #{patch_video_discriminator_forward.4} parent=0 // loop_pre_header
    _
  $region3: #{patch_video_discriminator_forward.4} parent=0 // loop_header
    %s8 = sphi 0, %s12
    %p9 = scmp.ge.s32.totalorder %s8, 4
    %s18 = sphi 0, %s20
    %s21 = sphi 0, %s18
    %s22 = sphi 0, %s21
    %s38 = sphi 0, %s22
    %s42 = sphi 0, %s42
    %s44 = sphi 0, %s42
    %s45 = sphi 0, %s44
    %s59 = sphi 0, %s45
    %s65 = sphi 0, %s67
    %s68 = sphi 0, %s65
    %s69 = sphi 0, %s68
    %s85 = sphi 0, %s69
  $region4: #{patch_video_discriminator_forward.4} parent=0 // loop_header_branch
    %11 = sbr.rel (%p9) target = $region8
  $region5: #{patch_video_discriminator_forward.4} parent=0 // loop_body
    %s13 = ssub.s32 %s8, 1
    %s14 = ssub.s32 %s8, 2
    %s15 = sadd.s32 %s8, 1
    %s16 = ssub.s32 %s8, %s15
    %p17 = scmp.eq.s32.totalorder %s16, 0
    %s19 = sadd.s32 %s18, 1
    %s20 = scalar_select %p17, %s18, %s19
    %p23 = pneg %p17
    %p24 = scmp.eq.s32.totalorder %s8, 1
    %p25 = por %p23, %p24
    %p26 = scmp.ne.s32.totalorder %s18, %s21
    %p27 = scmp.eq.s32.totalorder %s8, 0
    %p28 = por %p26, %p27
    %p29 = scmp.ne.s32.totalorder %s18, %s21
    %p30 = scmp.eq.s32.totalorder %s13, 1
    %p31 = por %p29, %p30
    %p32 = scmp.ne.s32.totalorder %s21, %s22
    %p33 = scmp.eq.s32.totalorder %s13, 0
    %p34 = por %p32, %p33
    %p35 = scmp.ne.s32.totalorder %s21, %s22
    %p36 = scmp.eq.s32.totalorder %s14, 1
    %p37 = por %p35, %p36
    %p39 = scmp.ne.s32.totalorder %s22, %s38
    %p40 = scmp.eq.s32.totalorder %s14, 0
    %p41 = por %p39, %p40
    %s43 = sadd.s32 %s42, 1
    %p46 = scmp.eq.s32.totalorder %s8, 1
    %p47 = scmp.ne.s32.totalorder %s42, %s44
    %p48 = scmp.eq.s32.totalorder %s8, 0
    %p49 = por %p47, %p48
    %p50 = scmp.ne.s32.totalorder %s42, %s44
    %p51 = scmp.eq.s32.totalorder %s13, 1
    %p52 = por %p50, %p51
    %p53 = scmp.ne.s32.totalorder %s44, %s45
    %p54 = scmp.eq.s32.totalorder %s13, 0
    %p55 = por %p53, %p54
    %p56 = scmp.ne.s32.totalorder %s44, %s45
    %p57 = scmp.eq.s32.totalorder %s14, 1
    %p58 = por %p56, %p57
    %p60 = scmp.ne.s32.totalorder %s45, %s59
    %p61 = scmp.eq.s32.totalorder %s14, 0
    %p62 = por %p60, %p61
    %s63 = ssub.s32 %s8, %s15
    %p64 = scmp.eq.s32.totalorder %s63, 0
    %s66 = sadd.s32 %s65, 1
    %s67 = scalar_select %p64, %s65, %s66
    %p70 = pneg %p64
    %p71 = scmp.eq.s32.totalorder %s8, 1
    %p72 = por %p70, %p71
    %p73 = scmp.ne.s32.totalorder %s65, %s68
    %p74 = scmp.eq.s32.totalorder %s8, 0
    %p75 = por %p73, %p74
    %p76 = scmp.ne.s32.totalorder %s65, %s68
    %p77 = scmp.eq.s32.totalorder %s13, 1
    %p78 = por %p76, %p77
    %p79 = scmp.ne.s32.totalorder %s68, %s69
    %p80 = scmp.eq.s32.totalorder %s13, 0
    %p81 = por %p79, %p80
    %p82 = scmp.ne.s32.totalorder %s68, %s69
    %p83 = scmp.eq.s32.totalorder %s14, 1
    %p84 = por %p82, %p83
    %p86 = scmp.ne.s32.totalorder %s69, %s85
    %p87 = scmp.eq.s32.totalorder %s14, 0
    %p88 = por %p86, %p87
    %p89 = scmp.le.s32.totalorder 1, %s8
    %p90 = scmp.lt.s32.totalorder %s8, 3
    %p91 = pnand %p89, %p90
    %p92 = pneg %p91
    // Predicated region
    $region9: #{patch_video_discriminator_forward.4} parent=5 // pred_check
      _
    $region10: #{patch_video_discriminator_forward.4} parent=5 // pred_check_branch
      %94 = sbr.rel (%p91) target = $region12
    $region11: #{patch_video_discriminator_forward.4} parent=5 // pred_region
      %s95 = ssub.s32 %s8, 1
      // Predicated region
      $region13: #{patch_video_discriminator_forward.4} parent=11 // pred_check
        %p96 = pneg %p55
      $region14: #{patch_video_discriminator_forward.4} parent=11 // pred_check_branch
        %98 = sbr.rel (%p96) target = $region16
      $region15: #{patch_video_discriminator_forward.4} parent=11 // pred_region
        _
      $region16: #{patch_video_discriminator_forward.4} parent=11 // pred_fallthru
        _
    $region12: #{patch_video_discriminator_forward.4} parent=5 // pred_fallthru
      _
    %p99 = scmp.lt.s32.totalorder %s8, 2
    // Predicated region
    $region17: #{patch_video_discriminator_forward.4} parent=5 // pred_check
      %p100 = pneg %p99
    $region18: #{patch_video_discriminator_forward.4} parent=5 // pred_check_branch
      %102 = sbr.rel (%p100) target = $region20
    $region19: #{patch_video_discriminator_forward.4} parent=5 // pred_region
      // Predicated region
      $region21: #{patch_video_discriminator_forward.4} parent=19 // pred_check
        %p103 = pneg %p28
      $region22: #{patch_video_discriminator_forward.4} parent=19 // pred_check_branch
        %105 = sbr.rel (%p103) target = $region24
      $region23: #{patch_video_discriminator_forward.4} parent=19 // pred_region
        %s106 = smul.u32 416, %s8
        %p107 = scmp.lt.s32.totalorder %s106, 831
        %s108 = scalar_select %p107, %s106, 831
        %s109 = smul.addr %s108, 2
        %s110 = smul.addr %s109, 4
        %s111 = scalar_lea.vmem %s0, %s110
        %s112 = smul.u32 416, %s8
      $region24: #{patch_video_discriminator_forward.4} parent=19 // pred_fallthru
        _
    $region20: #{patch_video_discriminator_forward.4} parent=5 // pred_fallthru
      _
    %p113 = scmp.le.s32.totalorder 1, %s8
    %p114 = scmp.lt.s32.totalorder %s8, 3
    %p115 = pnand %p113, %p114
    %p116 = pneg %p115
    // Predicated region
    $region25: #{patch_video_discriminator_forward.4} parent=5 // pred_check
      _
    $region26: #{patch_video_discriminator_forward.4} parent=5 // pred_check_branch
      %118 = sbr.rel (%p115) target = $region28
    $region27: #{patch_video_discriminator_forward.4} parent=5 // pred_region
      %s119 = ssub.s32 %s8, 1
      %s120 = smul.u32 416, %s13
      %p121 = scmp.lt.s32.totalorder %s120, 831
      %s122 = scalar_select %p121, %s120, 831
      %s123 = smul.addr %s122, 2
      %s124 = smul.addr %s123, 4
      %s125 = scalar_lea.vmem %s0, %s124
      %p126 = pneg %p34
      %p127 = pneg %p31
      %p128 = pneg %p55
      %p129 = pneg %p52
      %p130 = pneg %p81
      %p131 = pneg %p78
      %s132 = smul.u32 26, %s13
      %p133 = scmp.lt.s32.totalorder %s132, 51
      %s134 = scalar_select %p133, %s132, 51
      %s135 = smul.addr %s134, 8
      %s136 = scalar_lea.vmem %s2, %s135
      %s137 = smul.u32 416, %s13
      %p138 = scmp.lt.s32.totalorder %s137, 831
      %s139 = scalar_select %p138, %s137, 831
      %s140 = smul.addr %s139, 2
      %s141 = smul.addr %s140, 4
      %s142 = scalar_lea.vmem %s0, %s141
      %s143 = smul.u32 416, %s13
      %s144 = smul.u32 26, %s13
      %p145 = scmp.lt.s32.totalorder %s144, 51
      %s146 = scalar_select %p145, %s144, 51
      %s147 = smul.addr %s146, 8
      %s148 = scalar_lea.vmem %s2, %s147
      %s149 = smul.u32 26, %s13
      %v150 = vld [vmem:[%s1] sm:$0xff]
      %v151 = vld [vmem:[%s142] sm:$0xff]
      %v152 = vld [vmem:[%s142 + $0x8] sm:$0xff]
      %v153 = vld [vmem:[%s142 + $0x10] sm:$0xff]
      %v154 = vld [vmem:[%s142 + $0x18] sm:$0xff]
      %v155 = vld [vmem:[%s142 + $0x20] sm:$0xff]
      %v156 = vld [vmem:[%s142 + $0x28] sm:$0xff]
      %v157 = vld [vmem:[%s142 + $0x30] sm:$0xff]
      %v158 = vld [vmem:[%s142 + $0x38] sm:$0xff]
      %v159 = vld [vmem:[%s142 + $0x40] sm:$0xff]
      %v160 = vld [vmem:[%s142 + $0x48] sm:$0xff]
      %v161 = vld [vmem:[%s142 + $0x50] sm:$0xff]
      %v162 = vld [vmem:[%s142 + $0x58] sm:$0xff]
      %v163 = vld [vmem:[%s142 + $0x60] sm:$0xff]
      %v164 = vld [vmem:[%s142 + $0x68] sm:$0xff]
      %v165 = vld [vmem:[%s142 + $0x70] sm:$0xff]
      %v166 = vld [vmem:[%s142 + $0x78] sm:$0xff]
      %v167 = vld [vmem:[%s142 + $0x80] sm:$0xff]
      %v168 = vld [vmem:[%s142 + $0x88] sm:$0xff]
      %v169 = vld [vmem:[%s142 + $0x90] sm:$0xff]
      %v170 = vld [vmem:[%s142 + $0x98] sm:$0xff]
      %v171 = vld [vmem:[%s142 + $0xa0] sm:$0xff]
      %v172 = vld [vmem:[%s142 + $0xa8] sm:$0xff]
      %v173 = vld [vmem:[%s142 + $0xb0] sm:$0xff]
      %v174 = vld [vmem:[%s142 + $0xb8] sm:$0xff]
      %v175 = vld [vmem:[%s142 + $0xc0] sm:$0xff]
      %v176 = vld [vmem:[%s142 + $0xc8] sm:$0xff]
      %v177 = vld [vmem:[%s142 + $0xd0] sm:$0xff]
      %v178 = vld [vmem:[%s142 + $0xd8] sm:$0xff]
      %v179 = vld [vmem:[%s142 + $0xe0] sm:$0xff]
      %v180 = vld [vmem:[%s142 + $0xe8] sm:$0xff]
      %v181 = vld [vmem:[%s142 + $0xf0] sm:$0xff]
      %v182 = vld [vmem:[%s142 + $0xf8] sm:$0xff]
      %v183 = vld [vmem:[%s142 + $0x100] sm:$0xff]
      %v184 = vld [vmem:[%s142 + $0x108] sm:$0xff]
      %v185 = vld [vmem:[%s142 + $0x110] sm:$0xff]
      %v186 = vld [vmem:[%s142 + $0x118] sm:$0xff]
      %v187 = vld [vmem:[%s142 + $0x120] sm:$0xff]
      %v188 = vld [vmem:[%s142 + $0x128] sm:$0xff]
      %v189 = vld [vmem:[%s142 + $0x130] sm:$0xff]
      %v190 = vld [vmem:[%s142 + $0x138] sm:$0xff]
      %v191 = vld [vmem:[%s142 + $0x140] sm:$0xff]
      %v192 = vld [vmem:[%s142 + $0x148] sm:$0xff]
      %v193 = vld [vmem:[%s142 + $0x150] sm:$0xff]
      %v194 = vld [vmem:[%s142 + $0x158] sm:$0xff]
      %v195 = vld [vmem:[%s142 + $0x160] sm:$0xff]
      %v196 = vld [vmem:[%s142 + $0x168] sm:$0xff]
      %v197 = vld [vmem:[%s142 + $0x170] sm:$0xff]
      %v198 = vld [vmem:[%s142 + $0x178] sm:$0xff]
      %v199 = vld [vmem:[%s142 + $0x180] sm:$0xff]
      %v200 = vld [vmem:[%s142 + $0x188] sm:$0xff]
      %v201 = vld [vmem:[%s142 + $0x190] sm:$0xff]
      %v202 = vld [vmem:[%s142 + $0x198] sm:$0xff]
      %v203 = vld [vmem:[%s142 + $0x1a0] sm:$0xff]
      %v204 = vld [vmem:[%s142 + $0x1a8] sm:$0xff]
      %v205 = vld [vmem:[%s142 + $0x1b0] sm:$0xff]
      %v206 = vld [vmem:[%s142 + $0x1b8] sm:$0xff]
      %v207 = vld [vmem:[%s142 + $0x1c0] sm:$0xff]
      %v208 = vld [vmem:[%s142 + $0x1c8] sm:$0xff]
      %v209 = vld [vmem:[%s142 + $0x1d0] sm:$0xff]
      %v210 = vld [vmem:[%s142 + $0x1d8] sm:$0xff]
      %v211 = vld [vmem:[%s142 + $0x1e0] sm:$0xff]
      %v212 = vld [vmem:[%s142 + $0x1e8] sm:$0xff]
      %v213 = vld [vmem:[%s142 + $0x1f0] sm:$0xff]
      %v214 = vld [vmem:[%s142 + $0x1f8] sm:$0xff]
      %v215 = vld [vmem:[%s142 + $0x200] sm:$0xff]
      %v216 = vld [vmem:[%s142 + $0x208] sm:$0xff]
      %v217 = vld [vmem:[%s142 + $0x210] sm:$0xff]
      %v218 = vld [vmem:[%s142 + $0x218] sm:$0xff]
      %v219 = vld [vmem:[%s142 + $0x220] sm:$0xff]
      %v220 = vld [vmem:[%s142 + $0x228] sm:$0xff]
      %v221 = vld [vmem:[%s142 + $0x230] sm:$0xff]
      %v222 = vld [vmem:[%s142 + $0x238] sm:$0xff]
      %v223 = vld [vmem:[%s142 + $0x240] sm:$0xff]
      %v224 = vld [vmem:[%s142 + $0x248] sm:$0xff]
      %v225 = vld [vmem:[%s142 + $0x250] sm:$0xff]
      %v226 = vld [vmem:[%s142 + $0x258] sm:$0xff]
      %v227 = vld [vmem:[%s142 + $0x260] sm:$0xff]
      %v228 = vld [vmem:[%s142 + $0x268] sm:$0xff]
      %v229 = vld [vmem:[%s142 + $0x270] sm:$0xff]
      %v230 = vld [vmem:[%s142 + $0x278] sm:$0xff]
      %v231 = vld [vmem:[%s142 + $0x280] sm:$0xff]
      %v232 = vld [vmem:[%s142 + $0x288] sm:$0xff]
      %v233 = vld [vmem:[%s142 + $0x290] sm:$0xff]
      %v234 = vld [vmem:[%s142 + $0x298] sm:$0xff]
      %v235 = vld [vmem:[%s142 + $0x2a0] sm:$0xff]
      %v236 = vld [vmem:[%s142 + $0x2a8] sm:$0xff]
      %v237 = vld [vmem:[%s142 + $0x2b0] sm:$0xff]
      %v238 = vld [vmem:[%s142 + $0x2b8] sm:$0xff]
      %v239 = vld [vmem:[%s142 + $0x2c0] sm:$0xff]
      %v240 = vld [vmem:[%s142 + $0x2c8] sm:$0xff]
      %v241 = vld [vmem:[%s142 + $0x2d0] sm:$0xff]
      %v242 = vld [vmem:[%s142 + $0x2d8] sm:$0xff]
      %v243 = vld [vmem:[%s142 + $0x2e0] sm:$0xff]
      %v244 = vld [vmem:[%s142 + $0x2e8] sm:$0xff]
      %v245 = vld [vmem:[%s142 + $0x2f0] sm:$0xff]
      %v246 = vld [vmem:[%s142 + $0x2f8] sm:$0xff]
      %v247 = vld [vmem:[%s142 + $0x300] sm:$0xff]
      %v248 = vld [vmem:[%s142 + $0x308] sm:$0xff]
      %v249 = vld [vmem:[%s142 + $0x310] sm:$0xff]
      %v250 = vld [vmem:[%s142 + $0x318] sm:$0xff]
      %v251 = vld [vmem:[%s142 + $0x320] sm:$0xff]
      %v252 = vld [vmem:[%s142 + $0x328] sm:$0xff]
      %v253 = vld [vmem:[%s142 + $0x330] sm:$0xff]
      %v254 = vld [vmem:[%s142 + $0x338] sm:$0xff]
      %v255 = vld [vmem:[%s142 + $0x340] sm:$0xff]
      %v256 = vld [vmem:[%s142 + $0x348] sm:$0xff]
      %v257 = vld [vmem:[%s142 + $0x350] sm:$0xff]
      %v258 = vld [vmem:[%s142 + $0x358] sm:$0xff]
      %v259 = vld [vmem:[%s142 + $0x360] sm:$0xff]
      %v260 = vld [vmem:[%s142 + $0x368] sm:$0xff]
      %v261 = vld [vmem:[%s142 + $0x370] sm:$0xff]
      %v262 = vld [vmem:[%s142 + $0x378] sm:$0xff]
      %v263 = vld [vmem:[%s142 + $0x380] sm:$0xff]
      %v264 = vld [vmem:[%s142 + $0x388] sm:$0xff]
      %v265 = vld [vmem:[%s142 + $0x390] sm:$0xff]
      %v266 = vld [vmem:[%s142 + $0x398] sm:$0xff]
      %v267 = vld [vmem:[%s142 + $0x3a0] sm:$0xff]
      %v268 = vld [vmem:[%s142 + $0x3a8] sm:$0xff]
      %v269 = vld [vmem:[%s142 + $0x3b0] sm:$0xff]
      %v270 = vld [vmem:[%s142 + $0x3b8] sm:$0xff]
      %v271 = vld [vmem:[%s142 + $0x3c0] sm:$0xff]
      %v272 = vld [vmem:[%s142 + $0x3c8] sm:$0xff]
      %v273 = vld [vmem:[%s142 + $0x3d0] sm:$0xff]
      %v274 = vld [vmem:[%s142 + $0x3d8] sm:$0xff]
      %v275 = vld [vmem:[%s142 + $0x3e0] sm:$0xff]
      %v276 = vld [vmem:[%s142 + $0x3e8] sm:$0xff]
      %v277 = vld [vmem:[%s142 + $0x3f0] sm:$0xff]
      %v278 = vld [vmem:[%s142 + $0x3f8] sm:$0xff]
      %v279 = vld [vmem:[%s142 + $0x400] sm:$0xff]
      %v280 = vld [vmem:[%s142 + $0x408] sm:$0xff]
      %v281 = vld [vmem:[%s142 + $0x410] sm:$0xff]
      %v282 = vld [vmem:[%s142 + $0x418] sm:$0xff]
      %v283 = vld [vmem:[%s142 + $0x420] sm:$0xff]
      %v284 = vld [vmem:[%s142 + $0x428] sm:$0xff]
      %v285 = vld [vmem:[%s142 + $0x430] sm:$0xff]
      %v286 = vld [vmem:[%s142 + $0x438] sm:$0xff]
      %v287 = vld [vmem:[%s142 + $0x440] sm:$0xff]
      %v288 = vld [vmem:[%s142 + $0x448] sm:$0xff]
      %v289 = vld [vmem:[%s142 + $0x450] sm:$0xff]
      %v290 = vld [vmem:[%s142 + $0x458] sm:$0xff]
      %v291 = vld [vmem:[%s142 + $0x460] sm:$0xff]
      %v292 = vld [vmem:[%s142 + $0x468] sm:$0xff]
      %v293 = vld [vmem:[%s142 + $0x470] sm:$0xff]
      %v294 = vld [vmem:[%s142 + $0x478] sm:$0xff]
      %v295 = vld [vmem:[%s142 + $0x480] sm:$0xff]
      %v296 = vld [vmem:[%s142 + $0x488] sm:$0xff]
      %v297 = vld [vmem:[%s142 + $0x490] sm:$0xff]
      %v298 = vld [vmem:[%s142 + $0x498] sm:$0xff]
      %v299 = vld [vmem:[%s142 + $0x4a0] sm:$0xff]
      %v300 = vld [vmem:[%s142 + $0x4a8] sm:$0xff]
      %v301 = vld [vmem:[%s142 + $0x4b0] sm:$0xff]
      %v302 = vld [vmem:[%s142 + $0x4b8] sm:$0xff]
      %v303 = vld [vmem:[%s142 + $0x4c0] sm:$0xff]
      %v304 = vld [vmem:[%s142 + $0x4c8] sm:$0xff]
      %v305 = vld [vmem:[%s142 + $0x4d0] sm:$0xff]
      %v306 = vld [vmem:[%s142 + $0x4d8] sm:$0xff]
      %v307 = vld [vmem:[%s142 + $0x4e0] sm:$0xff]
      %v308 = vld [vmem:[%s142 + $0x4e8] sm:$0xff]
      %v309 = vld [vmem:[%s142 + $0x4f0] sm:$0xff]
      %v310 = vld [vmem:[%s142 + $0x4f8] sm:$0xff]
      %v311 = vld [vmem:[%s142 + $0x500] sm:$0xff]
      %v312 = vld [vmem:[%s142 + $0x508] sm:$0xff]
      %v313 = vld [vmem:[%s142 + $0x510] sm:$0xff]
      %v314 = vld [vmem:[%s142 + $0x518] sm:$0xff]
      %v315 = vld [vmem:[%s142 + $0x520] sm:$0xff]
      %v316 = vld [vmem:[%s142 + $0x528] sm:$0xff]
      %v317 = vld [vmem:[%s142 + $0x530] sm:$0xff]
      %v318 = vld [vmem:[%s142 + $0x538] sm:$0xff]
      %v319 = vld [vmem:[%s142 + $0x540] sm:$0xff]
      %v320 = vld [vmem:[%s142 + $0x548] sm:$0xff]
      %v321 = vld [vmem:[%s142 + $0x550] sm:$0xff]
      %v322 = vld [vmem:[%s142 + $0x558] sm:$0xff]
      %v323 = vld [vmem:[%s142 + $0x560] sm:$0xff]
      %v324 = vld [vmem:[%s142 + $0x568] sm:$0xff]
      %v325 = vld [vmem:[%s142 + $0x570] sm:$0xff]
      %v326 = vld [vmem:[%s142 + $0x578] sm:$0xff]
      %v327 = vld [vmem:[%s142 + $0x580] sm:$0xff]
      %v328 = vld [vmem:[%s142 + $0x588] sm:$0xff]
      %v329 = vld [vmem:[%s142 + $0x590] sm:$0xff]
      %v330 = vld [vmem:[%s142 + $0x598] sm:$0xff]
      %v331 = vld [vmem:[%s142 + $0x5a0] sm:$0xff]
      %v332 = vld [vmem:[%s142 + $0x5a8] sm:$0xff]
      %v333 = vld [vmem:[%s142 + $0x5b0] sm:$0xff]
      %v334 = vld [vmem:[%s142 + $0x5b8] sm:$0xff]
      %v335 = vld [vmem:[%s142 + $0x5c0] sm:$0xff]
      %v336 = vld [vmem:[%s142 + $0x5c8] sm:$0xff]
      %v337 = vld [vmem:[%s142 + $0x5d0] sm:$0xff]
      %v338 = vld [vmem:[%s142 + $0x5d8] sm:$0xff]
      %v339 = vld [vmem:[%s142 + $0x5e0] sm:$0xff]
      %v340 = vld [vmem:[%s142 + $0x5e8] sm:$0xff]
      %v341 = vld [vmem:[%s142 + $0x5f0] sm:$0xff]
      %v342 = vld [vmem:[%s142 + $0x5f8] sm:$0xff]
      %v343 = vld [vmem:[%s142 + $0x600] sm:$0xff]
      %v344 = vld [vmem:[%s142 + $0x608] sm:$0xff]
      %v345 = vld [vmem:[%s142 + $0x610] sm:$0xff]
      %v346 = vld [vmem:[%s142 + $0x618] sm:$0xff]
      %v347 = vld [vmem:[%s142 + $0x620] sm:$0xff]
      %v348 = vld [vmem:[%s142 + $0x628] sm:$0xff]
      %v349 = vld [vmem:[%s142 + $0x630] sm:$0xff]
      %v350 = vld [vmem:[%s142 + $0x638] sm:$0xff]
      %v351 = vld [vmem:[%s142 + $0x640] sm:$0xff]
      %v352 = vld [vmem:[%s142 + $0x648] sm:$0xff]
      %v353 = vld [vmem:[%s142 + $0x650] sm:$0xff]
      %v354 = vld [vmem:[%s142 + $0x658] sm:$0xff]
      %v355 = vld [vmem:[%s142 + $0x660] sm:$0xff]
      %v356 = vld [vmem:[%s142 + $0x668] sm:$0xff]
      %v357 = vld [vmem:[%s142 + $0x670] sm:$0xff]
      %v358 = vld [vmem:[%s142 + $0x678] sm:$0xff]
      %v359 = vld [vmem:[%s142 + $0x680] sm:$0xff]
      %v360 = vld [vmem:[%s142 + $0x688] sm:$0xff]
      %v361 = vld [vmem:[%s142 + $0x690] sm:$0xff]
      %v362 = vld [vmem:[%s142 + $0x698] sm:$0xff]
      %v363 = vld [vmem:[%s142 + $0x6a0] sm:$0xff]
      %v364 = vld [vmem:[%s142 + $0x6a8] sm:$0xff]
      %v365 = vld [vmem:[%s142 + $0x6b0] sm:$0xff]
      %v366 = vld [vmem:[%s142 + $0x6b8] sm:$0xff]
      %v367 = vld [vmem:[%s142 + $0x6c0] sm:$0xff]
      %v368 = vld [vmem:[%s142 + $0x6c8] sm:$0xff]
      %v369 = vld [vmem:[%s142 + $0x6d0] sm:$0xff]
      %v370 = vld [vmem:[%s142 + $0x6d8] sm:$0xff]
      %v371 = vld [vmem:[%s142 + $0x6e0] sm:$0xff]
      %v372 = vld [vmem:[%s142 + $0x6e8] sm:$0xff]
      %v373 = vld [vmem:[%s142 + $0x6f0] sm:$0xff]
      %v374 = vld [vmem:[%s142 + $0x6f8] sm:$0xff]
      %v375 = vld [vmem:[%s142 + $0x700] sm:$0xff]
      %v376 = vld [vmem:[%s142 + $0x708] sm:$0xff]
      %v377 = vld [vmem:[%s142 + $0x710] sm:$0xff]
      %v378 = vld [vmem:[%s142 + $0x718] sm:$0xff]
      %v379 = vld [vmem:[%s142 + $0x720] sm:$0xff]
      %v380 = vld [vmem:[%s142 + $0x728] sm:$0xff]
      %v381 = vld [vmem:[%s142 + $0x730] sm:$0xff]
      %v382 = vld [vmem:[%s142 + $0x738] sm:$0xff]
      %v383 = vld [vmem:[%s142 + $0x740] sm:$0xff]
      %v384 = vld [vmem:[%s142 + $0x748] sm:$0xff]
      %v385 = vld [vmem:[%s142 + $0x750] sm:$0xff]
      %v386 = vld [vmem:[%s142 + $0x758] sm:$0xff]
      %v387 = vld [vmem:[%s142 + $0x760] sm:$0xff]
      %v388 = vld [vmem:[%s142 + $0x768] sm:$0xff]
      %v389 = vld [vmem:[%s142 + $0x770] sm:$0xff]
      %v390 = vld [vmem:[%s142 + $0x778] sm:$0xff]
      %v391 = vld [vmem:[%s142 + $0x780] sm:$0xff]
      %v392 = vld [vmem:[%s142 + $0x788] sm:$0xff]
      %v393 = vld [vmem:[%s142 + $0x790] sm:$0xff]
      %v394 = vld [vmem:[%s142 + $0x798] sm:$0xff]
      %v395 = vld [vmem:[%s142 + $0x7a0] sm:$0xff]
      %v396 = vld [vmem:[%s142 + $0x7a8] sm:$0xff]
      %v397 = vld [vmem:[%s142 + $0x7b0] sm:$0xff]
      %v398 = vld [vmem:[%s142 + $0x7b8] sm:$0xff]
      %v399 = vld [vmem:[%s142 + $0x7c0] sm:$0xff]
      %v400 = vld [vmem:[%s142 + $0x7c8] sm:$0xff]
      %v401 = vld [vmem:[%s142 + $0x7d0] sm:$0xff]
      %v402 = vld [vmem:[%s142 + $0x7d8] sm:$0xff]
      %v403 = vld [vmem:[%s142 + $0x7e0] sm:$0xff]
      %v404 = vld [vmem:[%s142 + $0x7e8] sm:$0xff]
      %v405 = vld [vmem:[%s142 + $0x7f0] sm:$0xff]
      %v406 = vld [vmem:[%s142 + $0x7f8] sm:$0xff]
      %v407 = vld [vmem:[%s142 + $0x800] sm:$0xff]
      %v408 = vld [vmem:[%s142 + $0x808] sm:$0xff]
      %v409 = vld [vmem:[%s142 + $0x810] sm:$0xff]
      %v410 = vld [vmem:[%s142 + $0x818] sm:$0xff]
      %v411 = vld [vmem:[%s142 + $0x820] sm:$0xff]
      %v412 = vld [vmem:[%s142 + $0x828] sm:$0xff]
      %v413 = vld [vmem:[%s142 + $0x830] sm:$0xff]
      %v414 = vld [vmem:[%s142 + $0x838] sm:$0xff]
      %v415 = vld [vmem:[%s142 + $0x840] sm:$0xff]
      %v416 = vld [vmem:[%s142 + $0x848] sm:$0xff]
      %v417 = vld [vmem:[%s142 + $0x850] sm:$0xff]
      %v418 = vld [vmem:[%s142 + $0x858] sm:$0xff]
      %v419 = vld [vmem:[%s142 + $0x860] sm:$0xff]
      %v420 = vld [vmem:[%s142 + $0x868] sm:$0xff]
      %v421 = vld [vmem:[%s142 + $0x870] sm:$0xff]
      %v422 = vld [vmem:[%s142 + $0x878] sm:$0xff]
      %v423 = vld [vmem:[%s142 + $0x880] sm:$0xff]
      %v424 = vld [vmem:[%s142 + $0x888] sm:$0xff]
      %v425 = vld [vmem:[%s142 + $0x890] sm:$0xff]
      %v426 = vld [vmem:[%s142 + $0x898] sm:$0xff]
      %v427 = vld [vmem:[%s142 + $0x8a0] sm:$0xff]
      %v428 = vld [vmem:[%s142 + $0x8a8] sm:$0xff]
      %v429 = vld [vmem:[%s142 + $0x8b0] sm:$0xff]
      %v430 = vld [vmem:[%s142 + $0x8b8] sm:$0xff]
      %v431 = vld [vmem:[%s142 + $0x8c0] sm:$0xff]
      %v432 = vld [vmem:[%s142 + $0x8c8] sm:$0xff]
      %v433 = vld [vmem:[%s142 + $0x8d0] sm:$0xff]
      %v434 = vld [vmem:[%s142 + $0x8d8] sm:$0xff]
      %v435 = vld [vmem:[%s142 + $0x8e0] sm:$0xff]
      %v436 = vld [vmem:[%s142 + $0x8e8] sm:$0xff]
      %v437 = vld [vmem:[%s142 + $0x8f0] sm:$0xff]
      %v438 = vld [vmem:[%s142 + $0x8f8] sm:$0xff]
      %v439 = vld [vmem:[%s142 + $0x900] sm:$0xff]
      %v440 = vld [vmem:[%s142 + $0x908] sm:$0xff]
      %v441 = vld [vmem:[%s142 + $0x910] sm:$0xff]
      %v442 = vld [vmem:[%s142 + $0x918] sm:$0xff]
      %v443 = vld [vmem:[%s142 + $0x920] sm:$0xff]
      %v444 = vld [vmem:[%s142 + $0x928] sm:$0xff]
      %v445 = vld [vmem:[%s142 + $0x930] sm:$0xff]
      %v446 = vld [vmem:[%s142 + $0x938] sm:$0xff]
      %v447 = vld [vmem:[%s142 + $0x940] sm:$0xff]
      %v448 = vld [vmem:[%s142 + $0x948] sm:$0xff]
      %v449 = vld [vmem:[%s142 + $0x950] sm:$0xff]
      %v450 = vld [vmem:[%s142 + $0x958] sm:$0xff]
      %v451 = vld [vmem:[%s142 + $0x960] sm:$0xff]
      %v452 = vld [vmem:[%s142 + $0x968] sm:$0xff]
      %v453 = vld [vmem:[%s142 + $0x970] sm:$0xff]
      %v454 = vld [vmem:[%s142 + $0x978] sm:$0xff]
      %v455 = vld [vmem:[%s142 + $0x980] sm:$0xff]
      %v456 = vld [vmem:[%s142 + $0x988] sm:$0xff]
      %v457 = vld [vmem:[%s142 + $0x990] sm:$0xff]
      %v458 = vld [vmem:[%s142 + $0x998] sm:$0xff]
      %v459 = vld [vmem:[%s142 + $0x9a0] sm:$0xff]
      %v460 = vld [vmem:[%s142 + $0x9a8] sm:$0xff]
      %v461 = vld [vmem:[%s142 + $0x9b0] sm:$0xff]
      %v462 = vld [vmem:[%s142 + $0x9b8] sm:$0xff]
      %v463 = vld [vmem:[%s142 + $0x9c0] sm:$0xff]
      %v464 = vld [vmem:[%s142 + $0x9c8] sm:$0xff]
      %v465 = vld [vmem:[%s142 + $0x9d0] sm:$0xff]
      %v466 = vld [vmem:[%s142 + $0x9d8] sm:$0xff]
      %v467 = vld [vmem:[%s142 + $0x9e0] sm:$0xff]
      %v468 = vld [vmem:[%s142 + $0x9e8] sm:$0xff]
      %v469 = vld [vmem:[%s142 + $0x9f0] sm:$0xff]
      %v470 = vld [vmem:[%s142 + $0x9f8] sm:$0xff]
      %v471 = vld [vmem:[%s142 + $0xa00] sm:$0xff]
      %v472 = vld [vmem:[%s142 + $0xa08] sm:$0xff]
      %v473 = vld [vmem:[%s142 + $0xa10] sm:$0xff]
      %v474 = vld [vmem:[%s142 + $0xa18] sm:$0xff]
      %v475 = vld [vmem:[%s142 + $0xa20] sm:$0xff]
      %v476 = vld [vmem:[%s142 + $0xa28] sm:$0xff]
      %v477 = vld [vmem:[%s142 + $0xa30] sm:$0xff]
      %v478 = vld [vmem:[%s142 + $0xa38] sm:$0xff]
      %v479 = vld [vmem:[%s142 + $0xa40] sm:$0xff]
      %v480 = vld [vmem:[%s142 + $0xa48] sm:$0xff]
      %v481 = vld [vmem:[%s142 + $0xa50] sm:$0xff]
      %v482 = vld [vmem:[%s142 + $0xa58] sm:$0xff]
      %v483 = vld [vmem:[%s142 + $0xa60] sm:$0xff]
      %v484 = vld [vmem:[%s142 + $0xa68] sm:$0xff]
      %v485 = vld [vmem:[%s142 + $0xa70] sm:$0xff]
      %v486 = vld [vmem:[%s142 + $0xa78] sm:$0xff]
      %v487 = vld [vmem:[%s142 + $0xa80] sm:$0xff]
      %v488 = vld [vmem:[%s142 + $0xa88] sm:$0xff]
      %v489 = vld [vmem:[%s142 + $0xa90] sm:$0xff]
      %v490 = vld [vmem:[%s142 + $0xa98] sm:$0xff]
      %v491 = vld [vmem:[%s142 + $0xaa0] sm:$0xff]
      %v492 = vld [vmem:[%s142 + $0xaa8] sm:$0xff]
      %v493 = vld [vmem:[%s142 + $0xab0] sm:$0xff]
      %v494 = vld [vmem:[%s142 + $0xab8] sm:$0xff]
      %v495 = vld [vmem:[%s142 + $0xac0] sm:$0xff]
      %v496 = vld [vmem:[%s142 + $0xac8] sm:$0xff]
      %v497 = vld [vmem:[%s142 + $0xad0] sm:$0xff]
      %v498 = vld [vmem:[%s142 + $0xad8] sm:$0xff]
      %v499 = vld [vmem:[%s142 + $0xae0] sm:$0xff]
      %v500 = vld [vmem:[%s142 + $0xae8] sm:$0xff]
      %v501 = vld [vmem:[%s142 + $0xaf0] sm:$0xff]
      %v502 = vld [vmem:[%s142 + $0xaf8] sm:$0xff]
      %v503 = vld [vmem:[%s142 + $0xb00] sm:$0xff]
      %v504 = vld [vmem:[%s142 + $0xb08] sm:$0xff]
      %v505 = vld [vmem:[%s142 + $0xb10] sm:$0xff]
      %v506 = vld [vmem:[%s142 + $0xb18] sm:$0xff]
      %v507 = vld [vmem:[%s142 + $0xb20] sm:$0xff]
      %v508 = vld [vmem:[%s142 + $0xb28] sm:$0xff]
      %v509 = vld [vmem:[%s142 + $0xb30] sm:$0xff]
      %v510 = vld [vmem:[%s142 + $0xb38] sm:$0xff]
      %v511 = vld [vmem:[%s142 + $0xb40] sm:$0xff]
      %v512 = vld [vmem:[%s142 + $0xb48] sm:$0xff]
      %v513 = vld [vmem:[%s142 + $0xb50] sm:$0xff]
      %v514 = vld [vmem:[%s142 + $0xb58] sm:$0xff]
      %v515 = vld [vmem:[%s142 + $0xb60] sm:$0xff]
      %v516 = vld [vmem:[%s142 + $0xb68] sm:$0xff]
      %v517 = vld [vmem:[%s142 + $0xb70] sm:$0xff]
      %v518 = vld [vmem:[%s142 + $0xb78] sm:$0xff]
      %v519 = vld [vmem:[%s142 + $0xb80] sm:$0xff]
      %v520 = vld [vmem:[%s142 + $0xb88] sm:$0xff]
      %v521 = vld [vmem:[%s142 + $0xb90] sm:$0xff]
      %v522 = vld [vmem:[%s142 + $0xb98] sm:$0xff]
      %v523 = vld [vmem:[%s142 + $0xba0] sm:$0xff]
      %v524 = vld [vmem:[%s142 + $0xba8] sm:$0xff]
      %v525 = vld [vmem:[%s142 + $0xbb0] sm:$0xff]
      %v526 = vld [vmem:[%s142 + $0xbb8] sm:$0xff]
      %v527 = vld [vmem:[%s142 + $0xbc0] sm:$0xff]
      %v528 = vld [vmem:[%s142 + $0xbc8] sm:$0xff]
      %v529 = vld [vmem:[%s142 + $0xbd0] sm:$0xff]
      %v530 = vld [vmem:[%s142 + $0xbd8] sm:$0xff]
      %v531 = vld [vmem:[%s142 + $0xbe0] sm:$0xff]
      %v532 = vld [vmem:[%s142 + $0xbe8] sm:$0xff]
      %v533 = vld [vmem:[%s142 + $0xbf0] sm:$0xff]
      %v534 = vld [vmem:[%s142 + $0xbf8] sm:$0xff]
      %v535 = vld [vmem:[%s142 + $0xc00] sm:$0xff]
      %v536 = vld [vmem:[%s142 + $0xc08] sm:$0xff]
      %v537 = vld [vmem:[%s142 + $0xc10] sm:$0xff]
      %v538 = vld [vmem:[%s142 + $0xc18] sm:$0xff]
      %v539 = vld [vmem:[%s142 + $0xc20] sm:$0xff]
      %v540 = vld [vmem:[%s142 + $0xc28] sm:$0xff]
      %v541 = vld [vmem:[%s142 + $0xc30] sm:$0xff]
      %v542 = vld [vmem:[%s142 + $0xc38] sm:$0xff]
      %v543 = vld [vmem:[%s142 + $0xc40] sm:$0xff]
      %v544 = vld [vmem:[%s142 + $0xc48] sm:$0xff]
      %v545 = vld [vmem:[%s142 + $0xc50] sm:$0xff]
      %v546 = vld [vmem:[%s142 + $0xc58] sm:$0xff]
      %v547 = vld [vmem:[%s142 + $0xc60] sm:$0xff]
      %v548 = vld [vmem:[%s142 + $0xc68] sm:$0xff]
      %v549 = vld [vmem:[%s142 + $0xc70] sm:$0xff]
      %v550 = vld [vmem:[%s142 + $0xc78] sm:$0xff]
      %v551 = vld [vmem:[%s142 + $0xc80] sm:$0xff]
      %v552 = vld [vmem:[%s142 + $0xc88] sm:$0xff]
      %v553 = vld [vmem:[%s142 + $0xc90] sm:$0xff]
      %v554 = vld [vmem:[%s142 + $0xc98] sm:$0xff]
      %v555 = vld [vmem:[%s142 + $0xca0] sm:$0xff]
      %v556 = vld [vmem:[%s142 + $0xca8] sm:$0xff]
      %v557 = vld [vmem:[%s142 + $0xcb0] sm:$0xff]
      %v558 = vld [vmem:[%s142 + $0xcb8] sm:$0xff]
      %v559 = vld [vmem:[%s142 + $0xcc0] sm:$0xff]
      %v560 = vld [vmem:[%s142 + $0xcc8] sm:$0xff]
      %v561 = vld [vmem:[%s142 + $0xcd0] sm:$0xff]
      %v562 = vld [vmem:[%s142 + $0xcd8] sm:$0xff]
      %v563 = vld [vmem:[%s142 + $0xce0] sm:$0xff]
      %v564 = vld [vmem:[%s142 + $0xce8] sm:$0xff]
      %v565 = vld [vmem:[%s142 + $0xcf0] sm:$0xff]
      %v566 = vld [vmem:[%s142 + $0xcf8] sm:$0xff]
      %v568 = vunpack.c.l.b16 %v150
      %v569 = vunpack.c.h.b16 %v150
      %v570 = vpack.c.b16 %v568, %v568
      %v571 = vpack.c.b16 %v569, %v569
      %v989 = vunpack.c.l.b16 %v151
      %v990 = vunpack.c.h.b16 %v151
      %v991 = vunpack.c.l.b16 %v152
      %v992 = vunpack.c.h.b16 %v152
      %v993 = vunpack.c.l.b16 %v153
      %v994 = vunpack.c.h.b16 %v153
      %v995 = vunpack.c.l.b16 %v154
      %v996 = vunpack.c.h.b16 %v154
      %v997 = vunpack.c.l.b16 %v155
      %v998 = vunpack.c.h.b16 %v155
      %v999 = vunpack.c.l.b16 %v156
      %v1000 = vunpack.c.h.b16 %v156
      %v1001 = vunpack.c.l.b16 %v157
      %v1002 = vunpack.c.h.b16 %v157
      %v1003 = vunpack.c.l.b16 %v158
      %v1004 = vunpack.c.h.b16 %v158
      %v1005 = vunpack.c.l.b16 %v159
      %v1006 = vunpack.c.h.b16 %v159
      %v1007 = vunpack.c.l.b16 %v160
      %v1008 = vunpack.c.h.b16 %v160
      %v1009 = vunpack.c.l.b16 %v161
      %v1010 = vunpack.c.h.b16 %v161
      %v1011 = vunpack.c.l.b16 %v162
      %v1012 = vunpack.c.h.b16 %v162
      %v1013 = vunpack.c.l.b16 %v163
      %v1014 = vunpack.c.h.b16 %v163
      %v1015 = vunpack.c.l.b16 %v164
      %v1016 = vunpack.c.h.b16 %v164
      %v1017 = vunpack.c.l.b16 %v165
      %v1018 = vunpack.c.h.b16 %v165
      %v1019 = vunpack.c.l.b16 %v166
      %v1020 = vunpack.c.h.b16 %v166
      %v1021 = vunpack.c.l.b16 %v167
      %v1022 = vunpack.c.h.b16 %v167
      %v1023 = vunpack.c.l.b16 %v168
      %v1024 = vunpack.c.h.b16 %v168
      %v1025 = vunpack.c.l.b16 %v169
      %v1026 = vunpack.c.h.b16 %v169
      %v1027 = vunpack.c.l.b16 %v170
      %v1028 = vunpack.c.h.b16 %v170
      %v1029 = vunpack.c.l.b16 %v171
      %v1030 = vunpack.c.h.b16 %v171
      %v1031 = vunpack.c.l.b16 %v172
      %v1032 = vunpack.c.h.b16 %v172
      %v1033 = vunpack.c.l.b16 %v173
      %v1034 = vunpack.c.h.b16 %v173
      %v1035 = vunpack.c.l.b16 %v174
      %v1036 = vunpack.c.h.b16 %v174
      %v1037 = vunpack.c.l.b16 %v175
      %v1038 = vunpack.c.h.b16 %v175
      %v1039 = vunpack.c.l.b16 %v176
      %v1040 = vunpack.c.h.b16 %v176
      %v1041 = vunpack.c.l.b16 %v177
      %v1042 = vunpack.c.h.b16 %v177
      %v1043 = vunpack.c.l.b16 %v178
      %v1044 = vunpack.c.h.b16 %v178
      %v1045 = vunpack.c.l.b16 %v179
      %v1046 = vunpack.c.h.b16 %v179
      %v1047 = vunpack.c.l.b16 %v180
      %v1048 = vunpack.c.h.b16 %v180
      %v1049 = vunpack.c.l.b16 %v181
      %v1050 = vunpack.c.h.b16 %v181
      %v1051 = vunpack.c.l.b16 %v182
      %v1052 = vunpack.c.h.b16 %v182
      %v1053 = vunpack.c.l.b16 %v183
      %v1054 = vunpack.c.h.b16 %v183
      %v1055 = vunpack.c.l.b16 %v184
      %v1056 = vunpack.c.h.b16 %v184
      %v1057 = vunpack.c.l.b16 %v185
      %v1058 = vunpack.c.h.b16 %v185
      %v1059 = vunpack.c.l.b16 %v186
      %v1060 = vunpack.c.h.b16 %v186
      %v1061 = vunpack.c.l.b16 %v187
      %v1062 = vunpack.c.h.b16 %v187
      %v1063 = vunpack.c.l.b16 %v188
      %v1064 = vunpack.c.h.b16 %v188
      %v1065 = vunpack.c.l.b16 %v189
      %v1066 = vunpack.c.h.b16 %v189
      %v1067 = vunpack.c.l.b16 %v190
      %v1068 = vunpack.c.h.b16 %v190
      %v1069 = vunpack.c.l.b16 %v191
      %v1070 = vunpack.c.h.b16 %v191
      %v1071 = vunpack.c.l.b16 %v192
      %v1072 = vunpack.c.h.b16 %v192
      %v1073 = vunpack.c.l.b16 %v193
      %v1074 = vunpack.c.h.b16 %v193
      %v1075 = vunpack.c.l.b16 %v194
      %v1076 = vunpack.c.h.b16 %v194
      %v1077 = vunpack.c.l.b16 %v195
      %v1078 = vunpack.c.h.b16 %v195
      %v1079 = vunpack.c.l.b16 %v196
      %v1080 = vunpack.c.h.b16 %v196
      %v1081 = vunpack.c.l.b16 %v197
      %v1082 = vunpack.c.h.b16 %v197
      %v1083 = vunpack.c.l.b16 %v198
      %v1084 = vunpack.c.h.b16 %v198
      %v1085 = vunpack.c.l.b16 %v199
      %v1086 = vunpack.c.h.b16 %v199
      %v1087 = vunpack.c.l.b16 %v200
      %v1088 = vunpack.c.h.b16 %v200
      %v1089 = vunpack.c.l.b16 %v201
      %v1090 = vunpack.c.h.b16 %v201
      %v1091 = vunpack.c.l.b16 %v202
      %v1092 = vunpack.c.h.b16 %v202
      %v1093 = vunpack.c.l.b16 %v203
      %v1094 = vunpack.c.h.b16 %v203
      %v1095 = vunpack.c.l.b16 %v204
      %v1096 = vunpack.c.h.b16 %v204
      %v1097 = vunpack.c.l.b16 %v205
      %v1098 = vunpack.c.h.b16 %v205
      %v1099 = vunpack.c.l.b16 %v206
      %v1100 = vunpack.c.h.b16 %v206
      %v1101 = vunpack.c.l.b16 %v207
      %v1102 = vunpack.c.h.b16 %v207
      %v1103 = vunpack.c.l.b16 %v208
      %v1104 = vunpack.c.h.b16 %v208
      %v1105 = vunpack.c.l.b16 %v209
      %v1106 = vunpack.c.h.b16 %v209
      %v1107 = vunpack.c.l.b16 %v210
      %v1108 = vunpack.c.h.b16 %v210
      %v1109 = vunpack.c.l.b16 %v211
      %v1110 = vunpack.c.h.b16 %v211
      %v1111 = vunpack.c.l.b16 %v212
      %v1112 = vunpack.c.h.b16 %v212
      %v1113 = vunpack.c.l.b16 %v213
      %v1114 = vunpack.c.h.b16 %v213
      %v1115 = vunpack.c.l.b16 %v214
      %v1116 = vunpack.c.h.b16 %v214
      %v1117 = vunpack.c.l.b16 %v215
      %v1118 = vunpack.c.h.b16 %v215
      %v1119 = vunpack.c.l.b16 %v216
      %v1120 = vunpack.c.h.b16 %v216
      %v1121 = vunpack.c.l.b16 %v217
      %v1122 = vunpack.c.h.b16 %v217
      %v1123 = vunpack.c.l.b16 %v218
      %v1124 = vunpack.c.h.b16 %v218
      %v1125 = vunpack.c.l.b16 %v219
      %v1126 = vunpack.c.h.b16 %v219
      %v1127 = vunpack.c.l.b16 %v220
      %v1128 = vunpack.c.h.b16 %v220
      %v1129 = vunpack.c.l.b16 %v221
      %v1130 = vunpack.c.h.b16 %v221
      %v1131 = vunpack.c.l.b16 %v222
      %v1132 = vunpack.c.h.b16 %v222
      %v1133 = vunpack.c.l.b16 %v223
      %v1134 = vunpack.c.h.b16 %v223
      %v1135 = vunpack.c.l.b16 %v224
      %v1136 = vunpack.c.h.b16 %v224
      %v1137 = vunpack.c.l.b16 %v225
      %v1138 = vunpack.c.h.b16 %v225
      %v1139 = vunpack.c.l.b16 %v226
      %v1140 = vunpack.c.h.b16 %v226
      %v1141 = vunpack.c.l.b16 %v227
      %v1142 = vunpack.c.h.b16 %v227
      %v1143 = vunpack.c.l.b16 %v228
      %v1144 = vunpack.c.h.b16 %v228
      %v1145 = vunpack.c.l.b16 %v229
      %v1146 = vunpack.c.h.b16 %v229
      %v1147 = vunpack.c.l.b16 %v230
      %v1148 = vunpack.c.h.b16 %v230
      %v1149 = vunpack.c.l.b16 %v231
      %v1150 = vunpack.c.h.b16 %v231
      %v1151 = vunpack.c.l.b16 %v232
      %v1152 = vunpack.c.h.b16 %v232
      %v1153 = vunpack.c.l.b16 %v233
      %v1154 = vunpack.c.h.b16 %v233
      %v1155 = vunpack.c.l.b16 %v234
      %v1156 = vunpack.c.h.b16 %v234
      %v1157 = vunpack.c.l.b16 %v235
      %v1158 = vunpack.c.h.b16 %v235
      %v1159 = vunpack.c.l.b16 %v236
      %v1160 = vunpack.c.h.b16 %v236
      %v1161 = vunpack.c.l.b16 %v237
      %v1162 = vunpack.c.h.b16 %v237
      %v1163 = vunpack.c.l.b16 %v238
      %v1164 = vunpack.c.h.b16 %v238
      %v1165 = vunpack.c.l.b16 %v239
      %v1166 = vunpack.c.h.b16 %v239
      %v1167 = vunpack.c.l.b16 %v240
      %v1168 = vunpack.c.h.b16 %v240
      %v1169 = vunpack.c.l.b16 %v241
      %v1170 = vunpack.c.h.b16 %v241
      %v1171 = vunpack.c.l.b16 %v242
      %v1172 = vunpack.c.h.b16 %v242
      %v1173 = vunpack.c.l.b16 %v243
      %v1174 = vunpack.c.h.b16 %v243
      %v1175 = vunpack.c.l.b16 %v244
      %v1176 = vunpack.c.h.b16 %v244
      %v1177 = vunpack.c.l.b16 %v245
      %v1178 = vunpack.c.h.b16 %v245
      %v1179 = vunpack.c.l.b16 %v246
      %v1180 = vunpack.c.h.b16 %v246
      %v1181 = vunpack.c.l.b16 %v247
      %v1182 = vunpack.c.h.b16 %v247
      %v1183 = vunpack.c.l.b16 %v248
      %v1184 = vunpack.c.h.b16 %v248
      %v1185 = vunpack.c.l.b16 %v249
      %v1186 = vunpack.c.h.b16 %v249
      %v1187 = vunpack.c.l.b16 %v250
      %v1188 = vunpack.c.h.b16 %v250
      %v1189 = vunpack.c.l.b16 %v251
      %v1190 = vunpack.c.h.b16 %v251
      %v1191 = vunpack.c.l.b16 %v252
      %v1192 = vunpack.c.h.b16 %v252
      %v1193 = vunpack.c.l.b16 %v253
      %v1194 = vunpack.c.h.b16 %v253
      %v1195 = vunpack.c.l.b16 %v254
      %v1196 = vunpack.c.h.b16 %v254
      %v1197 = vunpack.c.l.b16 %v255
      %v1198 = vunpack.c.h.b16 %v255
      %v1199 = vunpack.c.l.b16 %v256
      %v1200 = vunpack.c.h.b16 %v256
      %v1201 = vunpack.c.l.b16 %v257
      %v1202 = vunpack.c.h.b16 %v257
      %v1203 = vunpack.c.l.b16 %v258
      %v1204 = vunpack.c.h.b16 %v258
      %v1205 = vunpack.c.l.b16 %v259
      %v1206 = vunpack.c.h.b16 %v259
      %v1207 = vunpack.c.l.b16 %v260
      %v1208 = vunpack.c.h.b16 %v260
      %v1209 = vunpack.c.l.b16 %v261
      %v1210 = vunpack.c.h.b16 %v261
      %v1211 = vunpack.c.l.b16 %v262
      %v1212 = vunpack.c.h.b16 %v262
      %v1213 = vunpack.c.l.b16 %v263
      %v1214 = vunpack.c.h.b16 %v263
      %v1215 = vunpack.c.l.b16 %v264
      %v1216 = vunpack.c.h.b16 %v264
      %v1217 = vunpack.c.l.b16 %v265
      %v1218 = vunpack.c.h.b16 %v265
      %v1219 = vunpack.c.l.b16 %v266
      %v1220 = vunpack.c.h.b16 %v266
      %v1221 = vunpack.c.l.b16 %v267
      %v1222 = vunpack.c.h.b16 %v267
      %v1223 = vunpack.c.l.b16 %v268
      %v1224 = vunpack.c.h.b16 %v268
      %v1225 = vunpack.c.l.b16 %v269
      %v1226 = vunpack.c.h.b16 %v269
      %v1227 = vunpack.c.l.b16 %v270
      %v1228 = vunpack.c.h.b16 %v270
      %v1229 = vunpack.c.l.b16 %v271
      %v1230 = vunpack.c.h.b16 %v271
      %v1231 = vunpack.c.l.b16 %v272
      %v1232 = vunpack.c.h.b16 %v272
      %v1233 = vunpack.c.l.b16 %v273
      %v1234 = vunpack.c.h.b16 %v273
      %v1235 = vunpack.c.l.b16 %v274
      %v1236 = vunpack.c.h.b16 %v274
      %v1237 = vunpack.c.l.b16 %v275
      %v1238 = vunpack.c.h.b16 %v275
      %v1239 = vunpack.c.l.b16 %v276
      %v1240 = vunpack.c.h.b16 %v276
      %v1241 = vunpack.c.l.b16 %v277
      %v1242 = vunpack.c.h.b16 %v277
      %v1243 = vunpack.c.l.b16 %v278
      %v1244 = vunpack.c.h.b16 %v278
      %v1245 = vunpack.c.l.b16 %v279
      %v1246 = vunpack.c.h.b16 %v279
      %v1247 = vunpack.c.l.b16 %v280
      %v1248 = vunpack.c.h.b16 %v280
      %v1249 = vunpack.c.l.b16 %v281
      %v1250 = vunpack.c.h.b16 %v281
      %v1251 = vunpack.c.l.b16 %v282
      %v1252 = vunpack.c.h.b16 %v282
      %v1253 = vunpack.c.l.b16 %v283
      %v1254 = vunpack.c.h.b16 %v283
      %v1255 = vunpack.c.l.b16 %v284
      %v1256 = vunpack.c.h.b16 %v284
      %v1257 = vunpack.c.l.b16 %v285
      %v1258 = vunpack.c.h.b16 %v285
      %v1259 = vunpack.c.l.b16 %v286
      %v1260 = vunpack.c.h.b16 %v286
      %v1261 = vunpack.c.l.b16 %v287
      %v1262 = vunpack.c.h.b16 %v287
      %v1263 = vunpack.c.l.b16 %v288
      %v1264 = vunpack.c.h.b16 %v288
      %v1265 = vunpack.c.l.b16 %v289
      %v1266 = vunpack.c.h.b16 %v289
      %v1267 = vunpack.c.l.b16 %v290
      %v1268 = vunpack.c.h.b16 %v290
      %v1269 = vunpack.c.l.b16 %v291
      %v1270 = vunpack.c.h.b16 %v291
      %v1271 = vunpack.c.l.b16 %v292
      %v1272 = vunpack.c.h.b16 %v292
      %v1273 = vunpack.c.l.b16 %v293
      %v1274 = vunpack.c.h.b16 %v293
      %v1275 = vunpack.c.l.b16 %v294
      %v1276 = vunpack.c.h.b16 %v294
      %v1277 = vunpack.c.l.b16 %v295
      %v1278 = vunpack.c.h.b16 %v295
      %v1279 = vunpack.c.l.b16 %v296
      %v1280 = vunpack.c.h.b16 %v296
      %v1281 = vunpack.c.l.b16 %v297
      %v1282 = vunpack.c.h.b16 %v297
      %v1283 = vunpack.c.l.b16 %v298
      %v1284 = vunpack.c.h.b16 %v298
      %v1285 = vunpack.c.l.b16 %v299
      %v1286 = vunpack.c.h.b16 %v299
      %v1287 = vunpack.c.l.b16 %v300
      %v1288 = vunpack.c.h.b16 %v300
      %v1289 = vunpack.c.l.b16 %v301
      %v1290 = vunpack.c.h.b16 %v301
      %v1291 = vunpack.c.l.b16 %v302
      %v1292 = vunpack.c.h.b16 %v302
      %v1293 = vunpack.c.l.b16 %v303
      %v1294 = vunpack.c.h.b16 %v303
      %v1295 = vunpack.c.l.b16 %v304
      %v1296 = vunpack.c.h.b16 %v304
      %v1297 = vunpack.c.l.b16 %v305
      %v1298 = vunpack.c.h.b16 %v305
      %v1299 = vunpack.c.l.b16 %v306
      %v1300 = vunpack.c.h.b16 %v306
      %v1301 = vunpack.c.l.b16 %v307
      %v1302 = vunpack.c.h.b16 %v307
      %v1303 = vunpack.c.l.b16 %v308
      %v1304 = vunpack.c.h.b16 %v308
      %v1305 = vunpack.c.l.b16 %v309
      %v1306 = vunpack.c.h.b16 %v309
      %v1307 = vunpack.c.l.b16 %v310
      %v1308 = vunpack.c.h.b16 %v310
      %v1309 = vunpack.c.l.b16 %v311
      %v1310 = vunpack.c.h.b16 %v311
      %v1311 = vunpack.c.l.b16 %v312
      %v1312 = vunpack.c.h.b16 %v312
      %v1313 = vunpack.c.l.b16 %v313
      %v1314 = vunpack.c.h.b16 %v313
      %v1315 = vunpack.c.l.b16 %v314
      %v1316 = vunpack.c.h.b16 %v314
      %v1317 = vunpack.c.l.b16 %v315
      %v1318 = vunpack.c.h.b16 %v315
      %v1319 = vunpack.c.l.b16 %v316
      %v1320 = vunpack.c.h.b16 %v316
      %v1321 = vunpack.c.l.b16 %v317
      %v1322 = vunpack.c.h.b16 %v317
      %v1323 = vunpack.c.l.b16 %v318
      %v1324 = vunpack.c.h.b16 %v318
      %v1325 = vunpack.c.l.b16 %v319
      %v1326 = vunpack.c.h.b16 %v319
      %v1327 = vunpack.c.l.b16 %v320
      %v1328 = vunpack.c.h.b16 %v320
      %v1329 = vunpack.c.l.b16 %v321
      %v1330 = vunpack.c.h.b16 %v321
      %v1331 = vunpack.c.l.b16 %v322
      %v1332 = vunpack.c.h.b16 %v322
      %v1333 = vunpack.c.l.b16 %v323
      %v1334 = vunpack.c.h.b16 %v323
      %v1335 = vunpack.c.l.b16 %v324
      %v1336 = vunpack.c.h.b16 %v324
      %v1337 = vunpack.c.l.b16 %v325
      %v1338 = vunpack.c.h.b16 %v325
      %v1339 = vunpack.c.l.b16 %v326
      %v1340 = vunpack.c.h.b16 %v326
      %v1341 = vunpack.c.l.b16 %v327
      %v1342 = vunpack.c.h.b16 %v327
      %v1343 = vunpack.c.l.b16 %v328
      %v1344 = vunpack.c.h.b16 %v328
      %v1345 = vunpack.c.l.b16 %v329
      %v1346 = vunpack.c.h.b16 %v329
      %v1347 = vunpack.c.l.b16 %v330
      %v1348 = vunpack.c.h.b16 %v330
      %v1349 = vunpack.c.l.b16 %v331
      %v1350 = vunpack.c.h.b16 %v331
      %v1351 = vunpack.c.l.b16 %v332
      %v1352 = vunpack.c.h.b16 %v332
      %v1353 = vunpack.c.l.b16 %v333
      %v1354 = vunpack.c.h.b16 %v333
      %v1355 = vunpack.c.l.b16 %v334
      %v1356 = vunpack.c.h.b16 %v334
      %v1357 = vunpack.c.l.b16 %v335
      %v1358 = vunpack.c.h.b16 %v335
      %v1359 = vunpack.c.l.b16 %v336
      %v1360 = vunpack.c.h.b16 %v336
      %v1361 = vunpack.c.l.b16 %v337
      %v1362 = vunpack.c.h.b16 %v337
      %v1363 = vunpack.c.l.b16 %v338
      %v1364 = vunpack.c.h.b16 %v338
      %v1365 = vunpack.c.l.b16 %v339
      %v1366 = vunpack.c.h.b16 %v339
      %v1367 = vunpack.c.l.b16 %v340
      %v1368 = vunpack.c.h.b16 %v340
      %v1369 = vunpack.c.l.b16 %v341
      %v1370 = vunpack.c.h.b16 %v341
      %v1371 = vunpack.c.l.b16 %v342
      %v1372 = vunpack.c.h.b16 %v342
      %v1373 = vunpack.c.l.b16 %v343
      %v1374 = vunpack.c.h.b16 %v343
      %v1375 = vunpack.c.l.b16 %v344
      %v1376 = vunpack.c.h.b16 %v344
      %v1377 = vunpack.c.l.b16 %v345
      %v1378 = vunpack.c.h.b16 %v345
      %v1379 = vunpack.c.l.b16 %v346
      %v1380 = vunpack.c.h.b16 %v346
      %v1381 = vunpack.c.l.b16 %v347
      %v1382 = vunpack.c.h.b16 %v347
      %v1383 = vunpack.c.l.b16 %v348
      %v1384 = vunpack.c.h.b16 %v348
      %v1385 = vunpack.c.l.b16 %v349
      %v1386 = vunpack.c.h.b16 %v349
      %v1387 = vunpack.c.l.b16 %v350
      %v1388 = vunpack.c.h.b16 %v350
      %v1389 = vunpack.c.l.b16 %v351
      %v1390 = vunpack.c.h.b16 %v351
      %v1391 = vunpack.c.l.b16 %v352
      %v1392 = vunpack.c.h.b16 %v352
      %v1393 = vunpack.c.l.b16 %v353
      %v1394 = vunpack.c.h.b16 %v353
      %v1395 = vunpack.c.l.b16 %v354
      %v1396 = vunpack.c.h.b16 %v354
      %v1397 = vunpack.c.l.b16 %v355
      %v1398 = vunpack.c.h.b16 %v355
      %v1399 = vunpack.c.l.b16 %v356
      %v1400 = vunpack.c.h.b16 %v356
      %v1401 = vunpack.c.l.b16 %v357
      %v1402 = vunpack.c.h.b16 %v357
      %v1403 = vunpack.c.l.b16 %v358
      %v1404 = vunpack.c.h.b16 %v358
      %v1405 = vunpack.c.l.b16 %v359
      %v1406 = vunpack.c.h.b16 %v359
      %v1407 = vunpack.c.l.b16 %v360
      %v1408 = vunpack.c.h.b16 %v360
      %v1409 = vunpack.c.l.b16 %v361
      %v1410 = vunpack.c.h.b16 %v361
      %v1411 = vunpack.c.l.b16 %v362
      %v1412 = vunpack.c.h.b16 %v362
      %v1413 = vunpack.c.l.b16 %v363
      %v1414 = vunpack.c.h.b16 %v363
      %v1415 = vunpack.c.l.b16 %v364
      %v1416 = vunpack.c.h.b16 %v364
      %v1417 = vunpack.c.l.b16 %v365
      %v1418 = vunpack.c.h.b16 %v365
      %v1419 = vunpack.c.l.b16 %v366
      %v1420 = vunpack.c.h.b16 %v366
      %v1421 = vunpack.c.l.b16 %v367
      %v1422 = vunpack.c.h.b16 %v367
      %v1423 = vunpack.c.l.b16 %v368
      %v1424 = vunpack.c.h.b16 %v368
      %v1425 = vunpack.c.l.b16 %v369
      %v1426 = vunpack.c.h.b16 %v369
      %v1427 = vunpack.c.l.b16 %v370
      %v1428 = vunpack.c.h.b16 %v370
      %v1429 = vunpack.c.l.b16 %v371
      %v1430 = vunpack.c.h.b16 %v371
      %v1431 = vunpack.c.l.b16 %v372
      %v1432 = vunpack.c.h.b16 %v372
      %v1433 = vunpack.c.l.b16 %v373
      %v1434 = vunpack.c.h.b16 %v373
      %v1435 = vunpack.c.l.b16 %v374
      %v1436 = vunpack.c.h.b16 %v374
      %v1437 = vunpack.c.l.b16 %v375
      %v1438 = vunpack.c.h.b16 %v375
      %v1439 = vunpack.c.l.b16 %v376
      %v1440 = vunpack.c.h.b16 %v376
      %v1441 = vunpack.c.l.b16 %v377
      %v1442 = vunpack.c.h.b16 %v377
      %v1443 = vunpack.c.l.b16 %v378
      %v1444 = vunpack.c.h.b16 %v378
      %v1445 = vunpack.c.l.b16 %v379
      %v1446 = vunpack.c.h.b16 %v379
      %v1447 = vunpack.c.l.b16 %v380
      %v1448 = vunpack.c.h.b16 %v380
      %v1449 = vunpack.c.l.b16 %v381
      %v1450 = vunpack.c.h.b16 %v381
      %v1451 = vunpack.c.l.b16 %v382
      %v1452 = vunpack.c.h.b16 %v382
      %v1453 = vunpack.c.l.b16 %v383
      %v1454 = vunpack.c.h.b16 %v383
      %v1455 = vunpack.c.l.b16 %v384
      %v1456 = vunpack.c.h.b16 %v384
      %v1457 = vunpack.c.l.b16 %v385
      %v1458 = vunpack.c.h.b16 %v385
      %v1459 = vunpack.c.l.b16 %v386
      %v1460 = vunpack.c.h.b16 %v386
      %v1461 = vunpack.c.l.b16 %v387
      %v1462 = vunpack.c.h.b16 %v387
      %v1463 = vunpack.c.l.b16 %v388
      %v1464 = vunpack.c.h.b16 %v388
      %v1465 = vunpack.c.l.b16 %v389
      %v1466 = vunpack.c.h.b16 %v389
      %v1467 = vunpack.c.l.b16 %v390
      %v1468 = vunpack.c.h.b16 %v390
      %v1469 = vunpack.c.l.b16 %v391
      %v1470 = vunpack.c.h.b16 %v391
      %v1471 = vunpack.c.l.b16 %v392
      %v1472 = vunpack.c.h.b16 %v392
      %v1473 = vunpack.c.l.b16 %v393
      %v1474 = vunpack.c.h.b16 %v393
      %v1475 = vunpack.c.l.b16 %v394
      %v1476 = vunpack.c.h.b16 %v394
      %v1477 = vunpack.c.l.b16 %v395
      %v1478 = vunpack.c.h.b16 %v395
      %v1479 = vunpack.c.l.b16 %v396
      %v1480 = vunpack.c.h.b16 %v396
      %v1481 = vunpack.c.l.b16 %v397
      %v1482 = vunpack.c.h.b16 %v397
      %v1483 = vunpack.c.l.b16 %v398
      %v1484 = vunpack.c.h.b16 %v398
      %v1485 = vunpack.c.l.b16 %v399
      %v1486 = vunpack.c.h.b16 %v399
      %v1487 = vunpack.c.l.b16 %v400
      %v1488 = vunpack.c.h.b16 %v400
      %v1489 = vunpack.c.l.b16 %v401
      %v1490 = vunpack.c.h.b16 %v401
      %v1491 = vunpack.c.l.b16 %v402
      %v1492 = vunpack.c.h.b16 %v402
      %v1493 = vunpack.c.l.b16 %v403
      %v1494 = vunpack.c.h.b16 %v403
      %v1495 = vunpack.c.l.b16 %v404
      %v1496 = vunpack.c.h.b16 %v404
      %v1497 = vunpack.c.l.b16 %v405
      %v1498 = vunpack.c.h.b16 %v405
      %v1499 = vunpack.c.l.b16 %v406
      %v1500 = vunpack.c.h.b16 %v406
      %v1501 = vunpack.c.l.b16 %v407
      %v1502 = vunpack.c.h.b16 %v407
      %v1503 = vunpack.c.l.b16 %v408
      %v1504 = vunpack.c.h.b16 %v408
      %v1505 = vunpack.c.l.b16 %v409
      %v1506 = vunpack.c.h.b16 %v409
      %v1507 = vunpack.c.l.b16 %v410
      %v1508 = vunpack.c.h.b16 %v410
      %v1509 = vunpack.c.l.b16 %v411
      %v1510 = vunpack.c.h.b16 %v411
      %v1511 = vunpack.c.l.b16 %v412
      %v1512 = vunpack.c.h.b16 %v412
      %v1513 = vunpack.c.l.b16 %v413
      %v1514 = vunpack.c.h.b16 %v413
      %v1515 = vunpack.c.l.b16 %v414
      %v1516 = vunpack.c.h.b16 %v414
      %v1517 = vunpack.c.l.b16 %v415
      %v1518 = vunpack.c.h.b16 %v415
      %v1519 = vunpack.c.l.b16 %v416
      %v1520 = vunpack.c.h.b16 %v416
      %v1521 = vunpack.c.l.b16 %v417
      %v1522 = vunpack.c.h.b16 %v417
      %v1523 = vunpack.c.l.b16 %v418
      %v1524 = vunpack.c.h.b16 %v418
      %v1525 = vunpack.c.l.b16 %v419
      %v1526 = vunpack.c.h.b16 %v419
      %v1527 = vunpack.c.l.b16 %v420
      %v1528 = vunpack.c.h.b16 %v420
      %v1529 = vunpack.c.l.b16 %v421
      %v1530 = vunpack.c.h.b16 %v421
      %v1531 = vunpack.c.l.b16 %v422
      %v1532 = vunpack.c.h.b16 %v422
      %v1533 = vunpack.c.l.b16 %v423
      %v1534 = vunpack.c.h.b16 %v423
      %v1535 = vunpack.c.l.b16 %v424
      %v1536 = vunpack.c.h.b16 %v424
      %v1537 = vunpack.c.l.b16 %v425
      %v1538 = vunpack.c.h.b16 %v425
      %v1539 = vunpack.c.l.b16 %v426
      %v1540 = vunpack.c.h.b16 %v426
      %v1541 = vunpack.c.l.b16 %v427
      %v1542 = vunpack.c.h.b16 %v427
      %v1543 = vunpack.c.l.b16 %v428
      %v1544 = vunpack.c.h.b16 %v428
      %v1545 = vunpack.c.l.b16 %v429
      %v1546 = vunpack.c.h.b16 %v429
      %v1547 = vunpack.c.l.b16 %v430
      %v1548 = vunpack.c.h.b16 %v430
      %v1549 = vunpack.c.l.b16 %v431
      %v1550 = vunpack.c.h.b16 %v431
      %v1551 = vunpack.c.l.b16 %v432
      %v1552 = vunpack.c.h.b16 %v432
      %v1553 = vunpack.c.l.b16 %v433
      %v1554 = vunpack.c.h.b16 %v433
      %v1555 = vunpack.c.l.b16 %v434
      %v1556 = vunpack.c.h.b16 %v434
      %v1557 = vunpack.c.l.b16 %v435
      %v1558 = vunpack.c.h.b16 %v435
      %v1559 = vunpack.c.l.b16 %v436
      %v1560 = vunpack.c.h.b16 %v436
      %v1561 = vunpack.c.l.b16 %v437
      %v1562 = vunpack.c.h.b16 %v437
      %v1563 = vunpack.c.l.b16 %v438
      %v1564 = vunpack.c.h.b16 %v438
      %v1565 = vunpack.c.l.b16 %v439
      %v1566 = vunpack.c.h.b16 %v439
      %v1567 = vunpack.c.l.b16 %v440
      %v1568 = vunpack.c.h.b16 %v440
      %v1569 = vunpack.c.l.b16 %v441
      %v1570 = vunpack.c.h.b16 %v441
      %v1571 = vunpack.c.l.b16 %v442
      %v1572 = vunpack.c.h.b16 %v442
      %v1573 = vunpack.c.l.b16 %v443
      %v1574 = vunpack.c.h.b16 %v443
      %v1575 = vunpack.c.l.b16 %v444
      %v1576 = vunpack.c.h.b16 %v444
      %v1577 = vunpack.c.l.b16 %v445
      %v1578 = vunpack.c.h.b16 %v445
      %v1579 = vunpack.c.l.b16 %v446
      %v1580 = vunpack.c.h.b16 %v446
      %v1581 = vunpack.c.l.b16 %v447
      %v1582 = vunpack.c.h.b16 %v447
      %v1583 = vunpack.c.l.b16 %v448
      %v1584 = vunpack.c.h.b16 %v448
      %v1585 = vunpack.c.l.b16 %v449
      %v1586 = vunpack.c.h.b16 %v449
      %v1587 = vunpack.c.l.b16 %v450
      %v1588 = vunpack.c.h.b16 %v450
      %v1589 = vunpack.c.l.b16 %v451
      %v1590 = vunpack.c.h.b16 %v451
      %v1591 = vunpack.c.l.b16 %v452
      %v1592 = vunpack.c.h.b16 %v452
      %v1593 = vunpack.c.l.b16 %v453
      %v1594 = vunpack.c.h.b16 %v453
      %v1595 = vunpack.c.l.b16 %v454
      %v1596 = vunpack.c.h.b16 %v454
      %v1597 = vunpack.c.l.b16 %v455
      %v1598 = vunpack.c.h.b16 %v455
      %v1599 = vunpack.c.l.b16 %v456
      %v1600 = vunpack.c.h.b16 %v456
      %v1601 = vunpack.c.l.b16 %v457
      %v1602 = vunpack.c.h.b16 %v457
      %v1603 = vunpack.c.l.b16 %v458
      %v1604 = vunpack.c.h.b16 %v458
      %v1605 = vunpack.c.l.b16 %v459
      %v1606 = vunpack.c.h.b16 %v459
      %v1607 = vunpack.c.l.b16 %v460
      %v1608 = vunpack.c.h.b16 %v460
      %v1609 = vunpack.c.l.b16 %v461
      %v1610 = vunpack.c.h.b16 %v461
      %v1611 = vunpack.c.l.b16 %v462
      %v1612 = vunpack.c.h.b16 %v462
      %v1613 = vunpack.c.l.b16 %v463
      %v1614 = vunpack.c.h.b16 %v463
      %v1615 = vunpack.c.l.b16 %v464
      %v1616 = vunpack.c.h.b16 %v464
      %v1617 = vunpack.c.l.b16 %v465
      %v1618 = vunpack.c.h.b16 %v465
      %v1619 = vunpack.c.l.b16 %v466
      %v1620 = vunpack.c.h.b16 %v466
      %v1621 = vunpack.c.l.b16 %v467
      %v1622 = vunpack.c.h.b16 %v467
      %v1623 = vunpack.c.l.b16 %v468
      %v1624 = vunpack.c.h.b16 %v468
      %v1625 = vunpack.c.l.b16 %v469
      %v1626 = vunpack.c.h.b16 %v469
      %v1627 = vunpack.c.l.b16 %v470
      %v1628 = vunpack.c.h.b16 %v470
      %v1629 = vunpack.c.l.b16 %v471
      %v1630 = vunpack.c.h.b16 %v471
      %v1631 = vunpack.c.l.b16 %v472
      %v1632 = vunpack.c.h.b16 %v472
      %v1633 = vunpack.c.l.b16 %v473
      %v1634 = vunpack.c.h.b16 %v473
      %v1635 = vunpack.c.l.b16 %v474
      %v1636 = vunpack.c.h.b16 %v474
      %v1637 = vunpack.c.l.b16 %v475
      %v1638 = vunpack.c.h.b16 %v475
      %v1639 = vunpack.c.l.b16 %v476
      %v1640 = vunpack.c.h.b16 %v476
      %v1641 = vunpack.c.l.b16 %v477
      %v1642 = vunpack.c.h.b16 %v477
      %v1643 = vunpack.c.l.b16 %v478
      %v1644 = vunpack.c.h.b16 %v478
      %v1645 = vunpack.c.l.b16 %v479
      %v1646 = vunpack.c.h.b16 %v479
      %v1647 = vunpack.c.l.b16 %v480
      %v1648 = vunpack.c.h.b16 %v480
      %v1649 = vunpack.c.l.b16 %v481
      %v1650 = vunpack.c.h.b16 %v481
      %v1651 = vunpack.c.l.b16 %v482
      %v1652 = vunpack.c.h.b16 %v482
      %v1653 = vunpack.c.l.b16 %v483
      %v1654 = vunpack.c.h.b16 %v483
      %v1655 = vunpack.c.l.b16 %v484
      %v1656 = vunpack.c.h.b16 %v484
      %v1657 = vunpack.c.l.b16 %v485
      %v1658 = vunpack.c.h.b16 %v485
      %v1659 = vunpack.c.l.b16 %v486
      %v1660 = vunpack.c.h.b16 %v486
      %v1661 = vunpack.c.l.b16 %v487
      %v1662 = vunpack.c.h.b16 %v487
      %v1663 = vunpack.c.l.b16 %v488
      %v1664 = vunpack.c.h.b16 %v488
      %v1665 = vunpack.c.l.b16 %v489
      %v1666 = vunpack.c.h.b16 %v489
      %v1667 = vunpack.c.l.b16 %v490
      %v1668 = vunpack.c.h.b16 %v490
      %v1669 = vunpack.c.l.b16 %v491
      %v1670 = vunpack.c.h.b16 %v491
      %v1671 = vunpack.c.l.b16 %v492
      %v1672 = vunpack.c.h.b16 %v492
      %v1673 = vunpack.c.l.b16 %v493
      %v1674 = vunpack.c.h.b16 %v493
      %v1675 = vunpack.c.l.b16 %v494
      %v1676 = vunpack.c.h.b16 %v494
      %v1677 = vunpack.c.l.b16 %v495
      %v1678 = vunpack.c.h.b16 %v495
      %v1679 = vunpack.c.l.b16 %v496
      %v1680 = vunpack.c.h.b16 %v496
      %v1681 = vunpack.c.l.b16 %v497
      %v1682 = vunpack.c.h.b16 %v497
      %v1683 = vunpack.c.l.b16 %v498
      %v1684 = vunpack.c.h.b16 %v498
      %v1685 = vunpack.c.l.b16 %v499
      %v1686 = vunpack.c.h.b16 %v499
      %v1687 = vunpack.c.l.b16 %v500
      %v1688 = vunpack.c.h.b16 %v500
      %v1689 = vunpack.c.l.b16 %v501
      %v1690 = vunpack.c.h.b16 %v501
      %v1691 = vunpack.c.l.b16 %v502
      %v1692 = vunpack.c.h.b16 %v502
      %v1693 = vunpack.c.l.b16 %v503
      %v1694 = vunpack.c.h.b16 %v503
      %v1695 = vunpack.c.l.b16 %v504
      %v1696 = vunpack.c.h.b16 %v504
      %v1697 = vunpack.c.l.b16 %v505
      %v1698 = vunpack.c.h.b16 %v505
      %v1699 = vunpack.c.l.b16 %v506
      %v1700 = vunpack.c.h.b16 %v506
      %v1701 = vunpack.c.l.b16 %v507
      %v1702 = vunpack.c.h.b16 %v507
      %v1703 = vunpack.c.l.b16 %v508
      %v1704 = vunpack.c.h.b16 %v508
      %v1705 = vunpack.c.l.b16 %v509
      %v1706 = vunpack.c.h.b16 %v509
      %v1707 = vunpack.c.l.b16 %v510
      %v1708 = vunpack.c.h.b16 %v510
      %v1709 = vunpack.c.l.b16 %v511
      %v1710 = vunpack.c.h.b16 %v511
      %v1711 = vunpack.c.l.b16 %v512
      %v1712 = vunpack.c.h.b16 %v512
      %v1713 = vunpack.c.l.b16 %v513
      %v1714 = vunpack.c.h.b16 %v513
      %v1715 = vunpack.c.l.b16 %v514
      %v1716 = vunpack.c.h.b16 %v514
      %v1717 = vunpack.c.l.b16 %v515
      %v1718 = vunpack.c.h.b16 %v515
      %v1719 = vunpack.c.l.b16 %v516
      %v1720 = vunpack.c.h.b16 %v516
      %v1721 = vunpack.c.l.b16 %v517
      %v1722 = vunpack.c.h.b16 %v517
      %v1723 = vunpack.c.l.b16 %v518
      %v1724 = vunpack.c.h.b16 %v518
      %v1725 = vunpack.c.l.b16 %v519
      %v1726 = vunpack.c.h.b16 %v519
      %v1727 = vunpack.c.l.b16 %v520
      %v1728 = vunpack.c.h.b16 %v520
      %v1729 = vunpack.c.l.b16 %v521
      %v1730 = vunpack.c.h.b16 %v521
      %v1731 = vunpack.c.l.b16 %v522
      %v1732 = vunpack.c.h.b16 %v522
      %v1733 = vunpack.c.l.b16 %v523
      %v1734 = vunpack.c.h.b16 %v523
      %v1735 = vunpack.c.l.b16 %v524
      %v1736 = vunpack.c.h.b16 %v524
      %v1737 = vunpack.c.l.b16 %v525
      %v1738 = vunpack.c.h.b16 %v525
      %v1739 = vunpack.c.l.b16 %v526
      %v1740 = vunpack.c.h.b16 %v526
      %v1741 = vunpack.c.l.b16 %v527
      %v1742 = vunpack.c.h.b16 %v527
      %v1743 = vunpack.c.l.b16 %v528
      %v1744 = vunpack.c.h.b16 %v528
      %v1745 = vunpack.c.l.b16 %v529
      %v1746 = vunpack.c.h.b16 %v529
      %v1747 = vunpack.c.l.b16 %v530
      %v1748 = vunpack.c.h.b16 %v530
      %v1749 = vunpack.c.l.b16 %v531
      %v1750 = vunpack.c.h.b16 %v531
      %v1751 = vunpack.c.l.b16 %v532
      %v1752 = vunpack.c.h.b16 %v532
      %v1753 = vunpack.c.l.b16 %v533
      %v1754 = vunpack.c.h.b16 %v533
      %v1755 = vunpack.c.l.b16 %v534
      %v1756 = vunpack.c.h.b16 %v534
      %v1757 = vunpack.c.l.b16 %v535
      %v1758 = vunpack.c.h.b16 %v535
      %v1759 = vunpack.c.l.b16 %v536
      %v1760 = vunpack.c.h.b16 %v536
      %v1761 = vunpack.c.l.b16 %v537
      %v1762 = vunpack.c.h.b16 %v537
      %v1763 = vunpack.c.l.b16 %v538
      %v1764 = vunpack.c.h.b16 %v538
      %v1765 = vunpack.c.l.b16 %v539
      %v1766 = vunpack.c.h.b16 %v539
      %v1767 = vunpack.c.l.b16 %v540
      %v1768 = vunpack.c.h.b16 %v540
      %v1769 = vunpack.c.l.b16 %v541
      %v1770 = vunpack.c.h.b16 %v541
      %v1771 = vunpack.c.l.b16 %v542
      %v1772 = vunpack.c.h.b16 %v542
      %v1773 = vunpack.c.l.b16 %v543
      %v1774 = vunpack.c.h.b16 %v543
      %v1775 = vunpack.c.l.b16 %v544
      %v1776 = vunpack.c.h.b16 %v544
      %v1777 = vunpack.c.l.b16 %v545
      %v1778 = vunpack.c.h.b16 %v545
      %v1779 = vunpack.c.l.b16 %v546
      %v1780 = vunpack.c.h.b16 %v546
      %v1781 = vunpack.c.l.b16 %v547
      %v1782 = vunpack.c.h.b16 %v547
      %v1783 = vunpack.c.l.b16 %v548
      %v1784 = vunpack.c.h.b16 %v548
      %v1785 = vunpack.c.l.b16 %v549
      %v1786 = vunpack.c.h.b16 %v549
      %v1787 = vunpack.c.l.b16 %v550
      %v1788 = vunpack.c.h.b16 %v550
      %v1789 = vunpack.c.l.b16 %v551
      %v1790 = vunpack.c.h.b16 %v551
      %v1791 = vunpack.c.l.b16 %v552
      %v1792 = vunpack.c.h.b16 %v552
      %v1793 = vunpack.c.l.b16 %v553
      %v1794 = vunpack.c.h.b16 %v553
      %v1795 = vunpack.c.l.b16 %v554
      %v1796 = vunpack.c.h.b16 %v554
      %v1797 = vunpack.c.l.b16 %v555
      %v1798 = vunpack.c.h.b16 %v555
      %v1799 = vunpack.c.l.b16 %v556
      %v1800 = vunpack.c.h.b16 %v556
      %v1801 = vunpack.c.l.b16 %v557
      %v1802 = vunpack.c.h.b16 %v557
      %v1803 = vunpack.c.l.b16 %v558
      %v1804 = vunpack.c.h.b16 %v558
      %v1805 = vunpack.c.l.b16 %v559
      %v1806 = vunpack.c.h.b16 %v559
      %v1807 = vunpack.c.l.b16 %v560
      %v1808 = vunpack.c.h.b16 %v560
      %v1809 = vunpack.c.l.b16 %v561
      %v1810 = vunpack.c.h.b16 %v561
      %v1811 = vunpack.c.l.b16 %v562
      %v1812 = vunpack.c.h.b16 %v562
      %v1813 = vunpack.c.l.b16 %v563
      %v1814 = vunpack.c.h.b16 %v563
      %v1815 = vunpack.c.l.b16 %v564
      %v1816 = vunpack.c.h.b16 %v564
      %v1817 = vunpack.c.l.b16 %v565
      %v1818 = vunpack.c.h.b16 %v565
      %v1819 = vunpack.c.l.b16 %v566
      %v1820 = vunpack.c.h.b16 %v566
      %v1821 = vpack.c.b16 %v991, %v989
      %v1822 = vpack.c.b16 %v992, %v990
      %v1823 = vpack.c.b16 %v995, %v993
      %v1824 = vpack.c.b16 %v996, %v994
      %v1825 = vpack.c.b16 %v999, %v997
      %v1826 = vpack.c.b16 %v1000, %v998
      %v1827 = vpack.c.b16 %v1003, %v1001
      %v1828 = vpack.c.b16 %v1004, %v1002
      %v1829 = vpack.c.b16 %v1007, %v1005
      %v1830 = vpack.c.b16 %v1008, %v1006
      %v1831 = vpack.c.b16 %v1011, %v1009
      %v1832 = vpack.c.b16 %v1012, %v1010
      %v1833 = vpack.c.b16 %v1015, %v1013
      %v1834 = vpack.c.b16 %v1016, %v1014
      %v1835 = vpack.c.b16 %v1019, %v1017
      %v1836 = vpack.c.b16 %v1020, %v1018
      %v1837 = vpack.c.b16 %v1023, %v1021
      %v1838 = vpack.c.b16 %v1024, %v1022
      %v1839 = vpack.c.b16 %v1027, %v1025
      %v1840 = vpack.c.b16 %v1028, %v1026
      %v1841 = vpack.c.b16 %v1031, %v1029
      %v1842 = vpack.c.b16 %v1032, %v1030
      %v1843 = vpack.c.b16 %v1035, %v1033
      %v1844 = vpack.c.b16 %v1036, %v1034
      %v1845 = vpack.c.b16 %v1039, %v1037
      %v1846 = vpack.c.b16 %v1040, %v1038
      %v1847 = vpack.c.b16 %v1043, %v1041
      %v1848 = vpack.c.b16 %v1044, %v1042
      %v1849 = vpack.c.b16 %v1047, %v1045
      %v1850 = vpack.c.b16 %v1048, %v1046
      %v1851 = vpack.c.b16 %v1051, %v1049
      %v1852 = vpack.c.b16 %v1052, %v1050
      %v1853 = vpack.c.b16 %v1055, %v1053
      %v1854 = vpack.c.b16 %v1056, %v1054
      %v1855 = vpack.c.b16 %v1059, %v1057
      %v1856 = vpack.c.b16 %v1060, %v1058
      %v1857 = vpack.c.b16 %v1063, %v1061
      %v1858 = vpack.c.b16 %v1064, %v1062
      %v1859 = vpack.c.b16 %v1067, %v1065
      %v1860 = vpack.c.b16 %v1068, %v1066
      %v1861 = vpack.c.b16 %v1071, %v1069
      %v1862 = vpack.c.b16 %v1072, %v1070
      %v1863 = vpack.c.b16 %v1075, %v1073
      %v1864 = vpack.c.b16 %v1076, %v1074
      %v1865 = vpack.c.b16 %v1079, %v1077
      %v1866 = vpack.c.b16 %v1080, %v1078
      %v1867 = vpack.c.b16 %v1083, %v1081
      %v1868 = vpack.c.b16 %v1084, %v1082
      %v1869 = vpack.c.b16 %v1087, %v1085
      %v1870 = vpack.c.b16 %v1088, %v1086
      %v1871 = vpack.c.b16 %v1091, %v1089
      %v1872 = vpack.c.b16 %v1092, %v1090
      %v1873 = vpack.c.b16 %v1095, %v1093
      %v1874 = vpack.c.b16 %v1096, %v1094
      %v1875 = vpack.c.b16 %v1099, %v1097
      %v1876 = vpack.c.b16 %v1100, %v1098
      %v1877 = vpack.c.b16 %v1103, %v1101
      %v1878 = vpack.c.b16 %v1104, %v1102
      %v1879 = vpack.c.b16 %v1107, %v1105
      %v1880 = vpack.c.b16 %v1108, %v1106
      %v1881 = vpack.c.b16 %v1111, %v1109
      %v1882 = vpack.c.b16 %v1112, %v1110
      %v1883 = vpack.c.b16 %v1115, %v1113
      %v1884 = vpack.c.b16 %v1116, %v1114
      %v1885 = vpack.c.b16 %v1119, %v1117
      %v1886 = vpack.c.b16 %v1120, %v1118
      %v1887 = vpack.c.b16 %v1123, %v1121
      %v1888 = vpack.c.b16 %v1124, %v1122
      %v1889 = vpack.c.b16 %v1127, %v1125
      %v1890 = vpack.c.b16 %v1128, %v1126
      %v1891 = vpack.c.b16 %v1131, %v1129
      %v1892 = vpack.c.b16 %v1132, %v1130
      %v1893 = vpack.c.b16 %v1135, %v1133
      %v1894 = vpack.c.b16 %v1136, %v1134
      %v1895 = vpack.c.b16 %v1139, %v1137
      %v1896 = vpack.c.b16 %v1140, %v1138
      %v1897 = vpack.c.b16 %v1143, %v1141
      %v1898 = vpack.c.b16 %v1144, %v1142
      %v1899 = vpack.c.b16 %v1147, %v1145
      %v1900 = vpack.c.b16 %v1148, %v1146
      %v1901 = vpack.c.b16 %v1151, %v1149
      %v1902 = vpack.c.b16 %v1152, %v1150
      %v1903 = vpack.c.b16 %v1155, %v1153
      %v1904 = vpack.c.b16 %v1156, %v1154
      %v1905 = vpack.c.b16 %v1159, %v1157
      %v1906 = vpack.c.b16 %v1160, %v1158
      %v1907 = vpack.c.b16 %v1163, %v1161
      %v1908 = vpack.c.b16 %v1164, %v1162
      %v1909 = vpack.c.b16 %v1167, %v1165
      %v1910 = vpack.c.b16 %v1168, %v1166
      %v1911 = vpack.c.b16 %v1171, %v1169
      %v1912 = vpack.c.b16 %v1172, %v1170
      %v1913 = vpack.c.b16 %v1175, %v1173
      %v1914 = vpack.c.b16 %v1176, %v1174
      %v1915 = vpack.c.b16 %v1179, %v1177
      %v1916 = vpack.c.b16 %v1180, %v1178
      %v1917 = vpack.c.b16 %v1183, %v1181
      %v1918 = vpack.c.b16 %v1184, %v1182
      %v1919 = vpack.c.b16 %v1187, %v1185
      %v1920 = vpack.c.b16 %v1188, %v1186
      %v1921 = vpack.c.b16 %v1191, %v1189
      %v1922 = vpack.c.b16 %v1192, %v1190
      %v1923 = vpack.c.b16 %v1195, %v1193
      %v1924 = vpack.c.b16 %v1196, %v1194
      %v1925 = vpack.c.b16 %v1199, %v1197
      %v1926 = vpack.c.b16 %v1200, %v1198
      %v1927 = vpack.c.b16 %v1203, %v1201
      %v1928 = vpack.c.b16 %v1204, %v1202
      %v1929 = vpack.c.b16 %v1207, %v1205
      %v1930 = vpack.c.b16 %v1208, %v1206
      %v1931 = vpack.c.b16 %v1211, %v1209
      %v1932 = vpack.c.b16 %v1212, %v1210
      %v1933 = vpack.c.b16 %v1215, %v1213
      %v1934 = vpack.c.b16 %v1216, %v1214
      %v1935 = vpack.c.b16 %v1219, %v1217
      %v1936 = vpack.c.b16 %v1220, %v1218
      %v1937 = vpack.c.b16 %v1223, %v1221
      %v1938 = vpack.c.b16 %v1224, %v1222
      %v1939 = vpack.c.b16 %v1227, %v1225
      %v1940 = vpack.c.b16 %v1228, %v1226
      %v1941 = vpack.c.b16 %v1231, %v1229
      %v1942 = vpack.c.b16 %v1232, %v1230
      %v1943 = vpack.c.b16 %v1235, %v1233
      %v1944 = vpack.c.b16 %v1236, %v1234
      %v1945 = vpack.c.b16 %v1239, %v1237
      %v1946 = vpack.c.b16 %v1240, %v1238
      %v1947 = vpack.c.b16 %v1243, %v1241
      %v1948 = vpack.c.b16 %v1244, %v1242
      %v1949 = vpack.c.b16 %v1247, %v1245
      %v1950 = vpack.c.b16 %v1248, %v1246
      %v1951 = vpack.c.b16 %v1251, %v1249
      %v1952 = vpack.c.b16 %v1252, %v1250
      %v1953 = vpack.c.b16 %v1255, %v1253
      %v1954 = vpack.c.b16 %v1256, %v1254
      %v1955 = vpack.c.b16 %v1259, %v1257
      %v1956 = vpack.c.b16 %v1260, %v1258
      %v1957 = vpack.c.b16 %v1263, %v1261
      %v1958 = vpack.c.b16 %v1264, %v1262
      %v1959 = vpack.c.b16 %v1267, %v1265
      %v1960 = vpack.c.b16 %v1268, %v1266
      %v1961 = vpack.c.b16 %v1271, %v1269
      %v1962 = vpack.c.b16 %v1272, %v1270
      %v1963 = vpack.c.b16 %v1275, %v1273
      %v1964 = vpack.c.b16 %v1276, %v1274
      %v1965 = vpack.c.b16 %v1279, %v1277
      %v1966 = vpack.c.b16 %v1280, %v1278
      %v1967 = vpack.c.b16 %v1283, %v1281
      %v1968 = vpack.c.b16 %v1284, %v1282
      %v1969 = vpack.c.b16 %v1287, %v1285
      %v1970 = vpack.c.b16 %v1288, %v1286
      %v1971 = vpack.c.b16 %v1291, %v1289
      %v1972 = vpack.c.b16 %v1292, %v1290
      %v1973 = vpack.c.b16 %v1295, %v1293
      %v1974 = vpack.c.b16 %v1296, %v1294
      %v1975 = vpack.c.b16 %v1299, %v1297
      %v1976 = vpack.c.b16 %v1300, %v1298
      %v1977 = vpack.c.b16 %v1303, %v1301
      %v1978 = vpack.c.b16 %v1304, %v1302
      %v1979 = vpack.c.b16 %v1307, %v1305
      %v1980 = vpack.c.b16 %v1308, %v1306
      %v1981 = vpack.c.b16 %v1311, %v1309
      %v1982 = vpack.c.b16 %v1312, %v1310
      %v1983 = vpack.c.b16 %v1315, %v1313
      %v1984 = vpack.c.b16 %v1316, %v1314
      %v1985 = vpack.c.b16 %v1319, %v1317
      %v1986 = vpack.c.b16 %v1320, %v1318
      %v1987 = vpack.c.b16 %v1323, %v1321
      %v1988 = vpack.c.b16 %v1324, %v1322
      %v1989 = vpack.c.b16 %v1327, %v1325
      %v1990 = vpack.c.b16 %v1328, %v1326
      %v1991 = vpack.c.b16 %v1331, %v1329
      %v1992 = vpack.c.b16 %v1332, %v1330
      %v1993 = vpack.c.b16 %v1335, %v1333
      %v1994 = vpack.c.b16 %v1336, %v1334
      %v1995 = vpack.c.b16 %v1339, %v1337
      %v1996 = vpack.c.b16 %v1340, %v1338
      %v1997 = vpack.c.b16 %v1343, %v1341
      %v1998 = vpack.c.b16 %v1344, %v1342
      %v1999 = vpack.c.b16 %v1347, %v1345
      %v2000 = vpack.c.b16 %v1348, %v1346
      %v2001 = vpack.c.b16 %v1351, %v1349
      %v2002 = vpack.c.b16 %v1352, %v1350
      %v2003 = vpack.c.b16 %v1355, %v1353
      %v2004 = vpack.c.b16 %v1356, %v1354
      %v2005 = vpack.c.b16 %v1359, %v1357
      %v2006 = vpack.c.b16 %v1360, %v1358
      %v2007 = vpack.c.b16 %v1363, %v1361
      %v2008 = vpack.c.b16 %v1364, %v1362
      %v2009 = vpack.c.b16 %v1367, %v1365
      %v2010 = vpack.c.b16 %v1368, %v1366
      %v2011 = vpack.c.b16 %v1371, %v1369
      %v2012 = vpack.c.b16 %v1372, %v1370
      %v2013 = vpack.c.b16 %v1375, %v1373
      %v2014 = vpack.c.b16 %v1376, %v1374
      %v2015 = vpack.c.b16 %v1379, %v1377
      %v2016 = vpack.c.b16 %v1380, %v1378
      %v2017 = vpack.c.b16 %v1383, %v1381
      %v2018 = vpack.c.b16 %v1384, %v1382
      %v2019 = vpack.c.b16 %v1387, %v1385
      %v2020 = vpack.c.b16 %v1388, %v1386
      %v2021 = vpack.c.b16 %v1391, %v1389
      %v2022 = vpack.c.b16 %v1392, %v1390
      %v2023 = vpack.c.b16 %v1395, %v1393
      %v2024 = vpack.c.b16 %v1396, %v1394
      %v2025 = vpack.c.b16 %v1399, %v1397
      %v2026 = vpack.c.b16 %v1400, %v1398
      %v2027 = vpack.c.b16 %v1403, %v1401
      %v2028 = vpack.c.b16 %v1404, %v1402
      %v2029 = vpack.c.b16 %v1407, %v1405
      %v2030 = vpack.c.b16 %v1408, %v1406
      %v2031 = vpack.c.b16 %v1411, %v1409
      %v2032 = vpack.c.b16 %v1412, %v1410
      %v2033 = vpack.c.b16 %v1415, %v1413
      %v2034 = vpack.c.b16 %v1416, %v1414
      %v2035 = vpack.c.b16 %v1419, %v1417
      %v2036 = vpack.c.b16 %v1420, %v1418
      %v2037 = vpack.c.b16 %v1423, %v1421
      %v2038 = vpack.c.b16 %v1424, %v1422
      %v2039 = vpack.c.b16 %v1427, %v1425
      %v2040 = vpack.c.b16 %v1428, %v1426
      %v2041 = vpack.c.b16 %v1431, %v1429
      %v2042 = vpack.c.b16 %v1432, %v1430
      %v2043 = vpack.c.b16 %v1435, %v1433
      %v2044 = vpack.c.b16 %v1436, %v1434
      %v2045 = vpack.c.b16 %v1439, %v1437
      %v2046 = vpack.c.b16 %v1440, %v1438
      %v2047 = vpack.c.b16 %v1443, %v1441
      %v2048 = vpack.c.b16 %v1444, %v1442
      %v2049 = vpack.c.b16 %v1447, %v1445
      %v2050 = vpack.c.b16 %v1448, %v1446
      %v2051 = vpack.c.b16 %v1451, %v1449
      %v2052 = vpack.c.b16 %v1452, %v1450
      %v2053 = vpack.c.b16 %v1455, %v1453
      %v2054 = vpack.c.b16 %v1456, %v1454
      %v2055 = vpack.c.b16 %v1459, %v1457
      %v2056 = vpack.c.b16 %v1460, %v1458
      %v2057 = vpack.c.b16 %v1463, %v1461
      %v2058 = vpack.c.b16 %v1464, %v1462
      %v2059 = vpack.c.b16 %v1467, %v1465
      %v2060 = vpack.c.b16 %v1468, %v1466
      %v2061 = vpack.c.b16 %v1471, %v1469
      %v2062 = vpack.c.b16 %v1472, %v1470
      %v2063 = vpack.c.b16 %v1475, %v1473
      %v2064 = vpack.c.b16 %v1476, %v1474
      %v2065 = vpack.c.b16 %v1479, %v1477
      %v2066 = vpack.c.b16 %v1480, %v1478
      %v2067 = vpack.c.b16 %v1483, %v1481
      %v2068 = vpack.c.b16 %v1484, %v1482
      %v2069 = vpack.c.b16 %v1487, %v1485
      %v2070 = vpack.c.b16 %v1488, %v1486
      %v2071 = vpack.c.b16 %v1491, %v1489
      %v2072 = vpack.c.b16 %v1492, %v1490
      %v2073 = vpack.c.b16 %v1495, %v1493
      %v2074 = vpack.c.b16 %v1496, %v1494
      %v2075 = vpack.c.b16 %v1499, %v1497
      %v2076 = vpack.c.b16 %v1500, %v1498
      %v2077 = vpack.c.b16 %v1503, %v1501
      %v2078 = vpack.c.b16 %v1504, %v1502
      %v2079 = vpack.c.b16 %v1507, %v1505
      %v2080 = vpack.c.b16 %v1508, %v1506
      %v2081 = vpack.c.b16 %v1511, %v1509
      %v2082 = vpack.c.b16 %v1512, %v1510
      %v2083 = vpack.c.b16 %v1515, %v1513
      %v2084 = vpack.c.b16 %v1516, %v1514
      %v2085 = vpack.c.b16 %v1519, %v1517
      %v2086 = vpack.c.b16 %v1520, %v1518
      %v2087 = vpack.c.b16 %v1523, %v1521
      %v2088 = vpack.c.b16 %v1524, %v1522
      %v2089 = vpack.c.b16 %v1527, %v1525
      %v2090 = vpack.c.b16 %v1528, %v1526
      %v2091 = vpack.c.b16 %v1531, %v1529
      %v2092 = vpack.c.b16 %v1532, %v1530
      %v2093 = vpack.c.b16 %v1535, %v1533
      %v2094 = vpack.c.b16 %v1536, %v1534
      %v2095 = vpack.c.b16 %v1539, %v1537
      %v2096 = vpack.c.b16 %v1540, %v1538
      %v2097 = vpack.c.b16 %v1543, %v1541
      %v2098 = vpack.c.b16 %v1544, %v1542
      %v2099 = vpack.c.b16 %v1547, %v1545
      %v2100 = vpack.c.b16 %v1548, %v1546
      %v2101 = vpack.c.b16 %v1551, %v1549
      %v2102 = vpack.c.b16 %v1552, %v1550
      %v2103 = vpack.c.b16 %v1555, %v1553
      %v2104 = vpack.c.b16 %v1556, %v1554
      %v2105 = vpack.c.b16 %v1559, %v1557
      %v2106 = vpack.c.b16 %v1560, %v1558
      %v2107 = vpack.c.b16 %v1563, %v1561
      %v2108 = vpack.c.b16 %v1564, %v1562
      %v2109 = vpack.c.b16 %v1567, %v1565
      %v2110 = vpack.c.b16 %v1568, %v1566
      %v2111 = vpack.c.b16 %v1571, %v1569
      %v2112 = vpack.c.b16 %v1572, %v1570
      %v2113 = vpack.c.b16 %v1575, %v1573
      %v2114 = vpack.c.b16 %v1576, %v1574
      %v2115 = vpack.c.b16 %v1579, %v1577
      %v2116 = vpack.c.b16 %v1580, %v1578
      %v2117 = vpack.c.b16 %v1583, %v1581
      %v2118 = vpack.c.b16 %v1584, %v1582
      %v2119 = vpack.c.b16 %v1587, %v1585
      %v2120 = vpack.c.b16 %v1588, %v1586
      %v2121 = vpack.c.b16 %v1591, %v1589
      %v2122 = vpack.c.b16 %v1592, %v1590
      %v2123 = vpack.c.b16 %v1595, %v1593
      %v2124 = vpack.c.b16 %v1596, %v1594
      %v2125 = vpack.c.b16 %v1599, %v1597
      %v2126 = vpack.c.b16 %v1600, %v1598
      %v2127 = vpack.c.b16 %v1603, %v1601
      %v2128 = vpack.c.b16 %v1604, %v1602
      %v2129 = vpack.c.b16 %v1607, %v1605
      %v2130 = vpack.c.b16 %v1608, %v1606
      %v2131 = vpack.c.b16 %v1611, %v1609
      %v2132 = vpack.c.b16 %v1612, %v1610
      %v2133 = vpack.c.b16 %v1615, %v1613
      %v2134 = vpack.c.b16 %v1616, %v1614
      %v2135 = vpack.c.b16 %v1619, %v1617
      %v2136 = vpack.c.b16 %v1620, %v1618
      %v2137 = vpack.c.b16 %v1623, %v1621
      %v2138 = vpack.c.b16 %v1624, %v1622
      %v2139 = vpack.c.b16 %v1627, %v1625
      %v2140 = vpack.c.b16 %v1628, %v1626
      %v2141 = vpack.c.b16 %v1631, %v1629
      %v2142 = vpack.c.b16 %v1632, %v1630
      %v2143 = vpack.c.b16 %v1635, %v1633
      %v2144 = vpack.c.b16 %v1636, %v1634
      %v2145 = vpack.c.b16 %v1639, %v1637
      %v2146 = vpack.c.b16 %v1640, %v1638
      %v2147 = vpack.c.b16 %v1643, %v1641
      %v2148 = vpack.c.b16 %v1644, %v1642
      %v2149 = vpack.c.b16 %v1647, %v1645
      %v2150 = vpack.c.b16 %v1648, %v1646
      %v2151 = vpack.c.b16 %v1651, %v1649
      %v2152 = vpack.c.b16 %v1652, %v1650
      %v2153 = vpack.c.b16 %v1655, %v1653
      %v2154 = vpack.c.b16 %v1656, %v1654
      %v2155 = vpack.c.b16 %v1659, %v1657
      %v2156 = vpack.c.b16 %v1660, %v1658
      %v2157 = vpack.c.b16 %v1663, %v1661
      %v2158 = vpack.c.b16 %v1664, %v1662
      %v2159 = vpack.c.b16 %v1667, %v1665
      %v2160 = vpack.c.b16 %v1668, %v1666
      %v2161 = vpack.c.b16 %v1671, %v1669
      %v2162 = vpack.c.b16 %v1672, %v1670
      %v2163 = vpack.c.b16 %v1675, %v1673
      %v2164 = vpack.c.b16 %v1676, %v1674
      %v2165 = vpack.c.b16 %v1679, %v1677
      %v2166 = vpack.c.b16 %v1680, %v1678
      %v2167 = vpack.c.b16 %v1683, %v1681
      %v2168 = vpack.c.b16 %v1684, %v1682
      %v2169 = vpack.c.b16 %v1687, %v1685
      %v2170 = vpack.c.b16 %v1688, %v1686
      %v2171 = vpack.c.b16 %v1691, %v1689
      %v2172 = vpack.c.b16 %v1692, %v1690
      %v2173 = vpack.c.b16 %v1695, %v1693
      %v2174 = vpack.c.b16 %v1696, %v1694
      %v2175 = vpack.c.b16 %v1699, %v1697
      %v2176 = vpack.c.b16 %v1700, %v1698
      %v2177 = vpack.c.b16 %v1703, %v1701
      %v2178 = vpack.c.b16 %v1704, %v1702
      %v2179 = vpack.c.b16 %v1707, %v1705
      %v2180 = vpack.c.b16 %v1708, %v1706
      %v2181 = vpack.c.b16 %v1711, %v1709
      %v2182 = vpack.c.b16 %v1712, %v1710
      %v2183 = vpack.c.b16 %v1715, %v1713
      %v2184 = vpack.c.b16 %v1716, %v1714
      %v2185 = vpack.c.b16 %v1719, %v1717
      %v2186 = vpack.c.b16 %v1720, %v1718
      %v2187 = vpack.c.b16 %v1723, %v1721
      %v2188 = vpack.c.b16 %v1724, %v1722
      %v2189 = vpack.c.b16 %v1727, %v1725
      %v2190 = vpack.c.b16 %v1728, %v1726
      %v2191 = vpack.c.b16 %v1731, %v1729
      %v2192 = vpack.c.b16 %v1732, %v1730
      %v2193 = vpack.c.b16 %v1735, %v1733
      %v2194 = vpack.c.b16 %v1736, %v1734
      %v2195 = vpack.c.b16 %v1739, %v1737
      %v2196 = vpack.c.b16 %v1740, %v1738
      %v2197 = vpack.c.b16 %v1743, %v1741
      %v2198 = vpack.c.b16 %v1744, %v1742
      %v2199 = vpack.c.b16 %v1747, %v1745
      %v2200 = vpack.c.b16 %v1748, %v1746
      %v2201 = vpack.c.b16 %v1751, %v1749
      %v2202 = vpack.c.b16 %v1752, %v1750
      %v2203 = vpack.c.b16 %v1755, %v1753
      %v2204 = vpack.c.b16 %v1756, %v1754
      %v2205 = vpack.c.b16 %v1759, %v1757
      %v2206 = vpack.c.b16 %v1760, %v1758
      %v2207 = vpack.c.b16 %v1763, %v1761
      %v2208 = vpack.c.b16 %v1764, %v1762
      %v2209 = vpack.c.b16 %v1767, %v1765
      %v2210 = vpack.c.b16 %v1768, %v1766
      %v2211 = vpack.c.b16 %v1771, %v1769
      %v2212 = vpack.c.b16 %v1772, %v1770
      %v2213 = vpack.c.b16 %v1775, %v1773
      %v2214 = vpack.c.b16 %v1776, %v1774
      %v2215 = vpack.c.b16 %v1779, %v1777
      %v2216 = vpack.c.b16 %v1780, %v1778
      %v2217 = vpack.c.b16 %v1783, %v1781
      %v2218 = vpack.c.b16 %v1784, %v1782
      %v2219 = vpack.c.b16 %v1787, %v1785
      %v2220 = vpack.c.b16 %v1788, %v1786
      %v2221 = vpack.c.b16 %v1791, %v1789
      %v2222 = vpack.c.b16 %v1792, %v1790
      %v2223 = vpack.c.b16 %v1795, %v1793
      %v2224 = vpack.c.b16 %v1796, %v1794
      %v2225 = vpack.c.b16 %v1799, %v1797
      %v2226 = vpack.c.b16 %v1800, %v1798
      %v2227 = vpack.c.b16 %v1803, %v1801
      %v2228 = vpack.c.b16 %v1804, %v1802
      %v2229 = vpack.c.b16 %v1807, %v1805
      %v2230 = vpack.c.b16 %v1808, %v1806
      %v2231 = vpack.c.b16 %v1811, %v1809
      %v2232 = vpack.c.b16 %v1812, %v1810
      %v2233 = vpack.c.b16 %v1815, %v1813
      %v2234 = vpack.c.b16 %v1816, %v1814
      %v2235 = vpack.c.b16 %v1819, %v1817
      %v2236 = vpack.c.b16 %v1820, %v1818
      %vm2445 = vcmask 523264
      %v2447 = vsel %vm2445, %v571, 0
      %v2450 = vsel %vm2445, %v1822, 0
      %v2453 = vsel %vm2445, %v1824, 0
      %v2456 = vsel %vm2445, %v1826, 0
      %v2459 = vsel %vm2445, %v1828, 0
      %v2462 = vsel %vm2445, %v1830, 0
      %v2465 = vsel %vm2445, %v1832, 0
      %v2468 = vsel %vm2445, %v1834, 0
      %v2471 = vsel %vm2445, %v1836, 0
      %v2474 = vsel %vm2445, %v1838, 0
      %v2477 = vsel %vm2445, %v1840, 0
      %v2480 = vsel %vm2445, %v1842, 0
      %v2483 = vsel %vm2445, %v1844, 0
      %v2486 = vsel %vm2445, %v1846, 0
      %v2489 = vsel %vm2445, %v1848, 0
      %v2492 = vsel %vm2445, %v1850, 0
      %v2495 = vsel %vm2445, %v1852, 0
      %v2498 = vsel %vm2445, %v1854, 0
      %v2501 = vsel %vm2445, %v1856, 0
      %v2504 = vsel %vm2445, %v1858, 0
      %v2507 = vsel %vm2445, %v1860, 0
      %v2510 = vsel %vm2445, %v1862, 0
      %v2513 = vsel %vm2445, %v1864, 0
      %v2516 = vsel %vm2445, %v1866, 0
      %v2519 = vsel %vm2445, %v1868, 0
      %v2522 = vsel %vm2445, %v1870, 0
      %v2525 = vsel %vm2445, %v1872, 0
      %v2528 = vsel %vm2445, %v1874, 0
      %v2531 = vsel %vm2445, %v1876, 0
      %v2534 = vsel %vm2445, %v1878, 0
      %v2537 = vsel %vm2445, %v1880, 0
      %v2540 = vsel %vm2445, %v1882, 0
      %v2543 = vsel %vm2445, %v1884, 0
      %v2546 = vsel %vm2445, %v1886, 0
      %v2549 = vsel %vm2445, %v1888, 0
      %v2552 = vsel %vm2445, %v1890, 0
      %v2555 = vsel %vm2445, %v1892, 0
      %v2558 = vsel %vm2445, %v1894, 0
      %v2561 = vsel %vm2445, %v1896, 0
      %v2564 = vsel %vm2445, %v1898, 0
      %v2567 = vsel %vm2445, %v1900, 0
      %v2570 = vsel %vm2445, %v1902, 0
      %v2573 = vsel %vm2445, %v1904, 0
      %v2576 = vsel %vm2445, %v1906, 0
      %v2579 = vsel %vm2445, %v1908, 0
      %v2582 = vsel %vm2445, %v1910, 0
      %v2585 = vsel %vm2445, %v1912, 0
      %v2588 = vsel %vm2445, %v1914, 0
      %v2591 = vsel %vm2445, %v1916, 0
      %v2594 = vsel %vm2445, %v1918, 0
      %v2597 = vsel %vm2445, %v1920, 0
      %v2600 = vsel %vm2445, %v1922, 0
      %v2603 = vsel %vm2445, %v1924, 0
      %v2606 = vsel %vm2445, %v1926, 0
      %v2609 = vsel %vm2445, %v1928, 0
      %v2612 = vsel %vm2445, %v1930, 0
      %v2615 = vsel %vm2445, %v1932, 0
      %v2618 = vsel %vm2445, %v1934, 0
      %v2621 = vsel %vm2445, %v1936, 0
      %v2624 = vsel %vm2445, %v1938, 0
      %v2627 = vsel %vm2445, %v1940, 0
      %v2630 = vsel %vm2445, %v1942, 0
      %v2633 = vsel %vm2445, %v1944, 0
      %v2636 = vsel %vm2445, %v1946, 0
      %v2639 = vsel %vm2445, %v1948, 0
      %v2642 = vsel %vm2445, %v1950, 0
      %v2645 = vsel %vm2445, %v1952, 0
      %v2648 = vsel %vm2445, %v1954, 0
      %v2651 = vsel %vm2445, %v1956, 0
      %v2654 = vsel %vm2445, %v1958, 0
      %v2657 = vsel %vm2445, %v1960, 0
      %v2660 = vsel %vm2445, %v1962, 0
      %v2663 = vsel %vm2445, %v1964, 0
      %v2666 = vsel %vm2445, %v1966, 0
      %v2669 = vsel %vm2445, %v1968, 0
      %v2672 = vsel %vm2445, %v1970, 0
      %v2675 = vsel %vm2445, %v1972, 0
      %v2678 = vsel %vm2445, %v1974, 0
      %v2681 = vsel %vm2445, %v1976, 0
      %v2684 = vsel %vm2445, %v1978, 0
      %v2687 = vsel %vm2445, %v1980, 0
      %v2690 = vsel %vm2445, %v1982, 0
      %v2693 = vsel %vm2445, %v1984, 0
      %v2696 = vsel %vm2445, %v1986, 0
      %v2699 = vsel %vm2445, %v1988, 0
      %v2702 = vsel %vm2445, %v1990, 0
      %v2705 = vsel %vm2445, %v1992, 0
      %v2708 = vsel %vm2445, %v1994, 0
      %v2711 = vsel %vm2445, %v1996, 0
      %v2714 = vsel %vm2445, %v1998, 0
      %v2717 = vsel %vm2445, %v2000, 0
      %v2720 = vsel %vm2445, %v2002, 0
      %v2723 = vsel %vm2445, %v2004, 0
      %v2726 = vsel %vm2445, %v2006, 0
      %v2729 = vsel %vm2445, %v2008, 0
      %v2732 = vsel %vm2445, %v2010, 0
      %v2735 = vsel %vm2445, %v2012, 0
      %v2738 = vsel %vm2445, %v2014, 0
      %v2741 = vsel %vm2445, %v2016, 0
      %v2744 = vsel %vm2445, %v2018, 0
      %v2747 = vsel %vm2445, %v2020, 0
      %v2750 = vsel %vm2445, %v2022, 0
      %v2753 = vsel %vm2445, %v2024, 0
      %v2756 = vsel %vm2445, %v2026, 0
      %v2759 = vsel %vm2445, %v2028, 0
      %v2762 = vsel %vm2445, %v2030, 0
      %v2765 = vsel %vm2445, %v2032, 0
      %v2768 = vsel %vm2445, %v2034, 0
      %v2771 = vsel %vm2445, %v2036, 0
      %v2774 = vsel %vm2445, %v2038, 0
      %v2777 = vsel %vm2445, %v2040, 0
      %v2780 = vsel %vm2445, %v2042, 0
      %v2783 = vsel %vm2445, %v2044, 0
      %v2786 = vsel %vm2445, %v2046, 0
      %v2789 = vsel %vm2445, %v2048, 0
      %v2792 = vsel %vm2445, %v2050, 0
      %v2795 = vsel %vm2445, %v2052, 0
      %v2798 = vsel %vm2445, %v2054, 0
      %v2801 = vsel %vm2445, %v2056, 0
      %v2804 = vsel %vm2445, %v2058, 0
      %v2807 = vsel %vm2445, %v2060, 0
      %v2810 = vsel %vm2445, %v2062, 0
      %v2813 = vsel %vm2445, %v2064, 0
      %v2816 = vsel %vm2445, %v2066, 0
      %v2819 = vsel %vm2445, %v2068, 0
      %v2822 = vsel %vm2445, %v2070, 0
      %v2825 = vsel %vm2445, %v2072, 0
      %v2828 = vsel %vm2445, %v2074, 0
      %v2831 = vsel %vm2445, %v2076, 0
      %v2834 = vsel %vm2445, %v2078, 0
      %v2837 = vsel %vm2445, %v2080, 0
      %v2840 = vsel %vm2445, %v2082, 0
      %v2843 = vsel %vm2445, %v2084, 0
      %v2846 = vsel %vm2445, %v2086, 0
      %v2849 = vsel %vm2445, %v2088, 0
      %v2852 = vsel %vm2445, %v2090, 0
      %v2855 = vsel %vm2445, %v2092, 0
      %v2858 = vsel %vm2445, %v2094, 0
      %v2861 = vsel %vm2445, %v2096, 0
      %v2864 = vsel %vm2445, %v2098, 0
      %v2867 = vsel %vm2445, %v2100, 0
      %v2870 = vsel %vm2445, %v2102, 0
      %v2873 = vsel %vm2445, %v2104, 0
      %v2876 = vsel %vm2445, %v2106, 0
      %v2879 = vsel %vm2445, %v2108, 0
      %v2882 = vsel %vm2445, %v2110, 0
      %v2885 = vsel %vm2445, %v2112, 0
      %v2888 = vsel %vm2445, %v2114, 0
      %v2891 = vsel %vm2445, %v2116, 0
      %v2894 = vsel %vm2445, %v2118, 0
      %v2897 = vsel %vm2445, %v2120, 0
      %v2900 = vsel %vm2445, %v2122, 0
      %v2903 = vsel %vm2445, %v2124, 0
      %v2906 = vsel %vm2445, %v2126, 0
      %v2909 = vsel %vm2445, %v2128, 0
      %v2912 = vsel %vm2445, %v2130, 0
      %v2915 = vsel %vm2445, %v2132, 0
      %v2918 = vsel %vm2445, %v2134, 0
      %v2921 = vsel %vm2445, %v2136, 0
      %v2924 = vsel %vm2445, %v2138, 0
      %v2927 = vsel %vm2445, %v2140, 0
      %v2930 = vsel %vm2445, %v2142, 0
      %v2933 = vsel %vm2445, %v2144, 0
      %v2936 = vsel %vm2445, %v2146, 0
      %v2939 = vsel %vm2445, %v2148, 0
      %v2942 = vsel %vm2445, %v2150, 0
      %v2945 = vsel %vm2445, %v2152, 0
      %v2948 = vsel %vm2445, %v2154, 0
      %v2951 = vsel %vm2445, %v2156, 0
      %v2954 = vsel %vm2445, %v2158, 0
      %v2957 = vsel %vm2445, %v2160, 0
      %v2960 = vsel %vm2445, %v2162, 0
      %v2963 = vsel %vm2445, %v2164, 0
      %v2966 = vsel %vm2445, %v2166, 0
      %v2969 = vsel %vm2445, %v2168, 0
      %v2972 = vsel %vm2445, %v2170, 0
      %v2975 = vsel %vm2445, %v2172, 0
      %v2978 = vsel %vm2445, %v2174, 0
      %v2981 = vsel %vm2445, %v2176, 0
      %v2984 = vsel %vm2445, %v2178, 0
      %v2987 = vsel %vm2445, %v2180, 0
      %v2990 = vsel %vm2445, %v2182, 0
      %v2993 = vsel %vm2445, %v2184, 0
      %v2996 = vsel %vm2445, %v2186, 0
      %v2999 = vsel %vm2445, %v2188, 0
      %v3002 = vsel %vm2445, %v2190, 0
      %v3005 = vsel %vm2445, %v2192, 0
      %v3008 = vsel %vm2445, %v2194, 0
      %v3011 = vsel %vm2445, %v2196, 0
      %v3014 = vsel %vm2445, %v2198, 0
      %v3017 = vsel %vm2445, %v2200, 0
      %v3020 = vsel %vm2445, %v2202, 0
      %v3023 = vsel %vm2445, %v2204, 0
      %v3026 = vsel %vm2445, %v2206, 0
      %v3029 = vsel %vm2445, %v2208, 0
      %v3032 = vsel %vm2445, %v2210, 0
      %v3035 = vsel %vm2445, %v2212, 0
      %v3038 = vsel %vm2445, %v2214, 0
      %v3041 = vsel %vm2445, %v2216, 0
      %v3044 = vsel %vm2445, %v2218, 0
      %v3047 = vsel %vm2445, %v2220, 0
      %v3050 = vsel %vm2445, %v2222, 0
      %v3053 = vsel %vm2445, %v2224, 0
      %v3056 = vsel %vm2445, %v2226, 0
      %v3059 = vsel %vm2445, %v2228, 0
      %v3062 = vsel %vm2445, %v2230, 0
      %v3065 = vsel %vm2445, %v2232, 0
      %v3068 = vsel %vm2445, %v2234, 0
      %v3071 = vsel %vm2445, %v2236, 0
      %3073 = vmatpush.bf16.xpose.msra.mxu0 %v1835
      %3074 = vmatpush.bf16.xpose.msra.mxu0 %v1833
      %3075 = vmatpush.bf16.xpose.msra.mxu0 %v1831
      %3076 = vmatpush.bf16.xpose.msra.mxu0 %v1829
      %3077 = vmatpush.bf16.xpose.msra.mxu0 %v1827
      %3078 = vmatpush.bf16.xpose.msra.mxu0 %v1825
      %3079 = vmatpush.bf16.xpose.msra.mxu0 %v1823
      %3080 = vmatpush.bf16.xpose.msra.mxu0 %v1821
      %3081 = vmatmul.bf16.gmra.mxu0 %v570
      %v3082 = vpop.f32.mrf.mxu0
      %v3083 = vadd.f32 0.0, %v3082
      %v3084 = vpop.f32.mrf.mxu0
      %3085 = vdwg.mxu0
      %3086 = vmatpush.bf16.xpose.msra.mxu0 %v2471
      %3087 = vmatpush.bf16.xpose.msra.mxu0 %v2468
      %3088 = vmatpush.bf16.xpose.msra.mxu0 %v2465
      %3089 = vmatpush.bf16.xpose.msra.mxu0 %v2462
      %3090 = vmatpush.bf16.xpose.msra.mxu0 %v2459
      %3091 = vmatpush.bf16.xpose.msra.mxu0 %v2456
      %3092 = vmatpush.bf16.xpose.msra.mxu0 %v2453
      %3093 = vmatpush.bf16.xpose.msra.mxu0 %v2450
      %3094 = vmatmul.bf16.gmra.mxu0 %v2447
      %v3095 = vpop.f32.mrf.mxu0
      %v3096 = vadd.f32 %v3083, %v3095
      %v3097 = vpop.f32.mrf.mxu0
      %3098 = vdwg.mxu0
      %3099 = vmatpush.bf16.xpose.msra.mxu0 %v1851
      %3100 = vmatpush.bf16.xpose.msra.mxu0 %v1849
      %3101 = vmatpush.bf16.xpose.msra.mxu0 %v1847
      %3102 = vmatpush.bf16.xpose.msra.mxu0 %v1845
      %3103 = vmatpush.bf16.xpose.msra.mxu0 %v1843
      %3104 = vmatpush.bf16.xpose.msra.mxu0 %v1841
      %3105 = vmatpush.bf16.xpose.msra.mxu0 %v1839
      %3106 = vmatpush.bf16.xpose.msra.mxu0 %v1837
      %3107 = vmatmul.bf16.gmra.mxu0 %v570
      %v3108 = vpop.f32.mrf.mxu0
      %v3109 = vadd.f32 0.0, %v3108
      %v3110 = vpop.f32.mrf.mxu0
      %3111 = vdwg.mxu0
      %3112 = vmatpush.bf16.xpose.msra.mxu0 %v2495
      %3113 = vmatpush.bf16.xpose.msra.mxu0 %v2492
      %3114 = vmatpush.bf16.xpose.msra.mxu0 %v2489
      %3115 = vmatpush.bf16.xpose.msra.mxu0 %v2486
      %3116 = vmatpush.bf16.xpose.msra.mxu0 %v2483
      %3117 = vmatpush.bf16.xpose.msra.mxu0 %v2480
      %3118 = vmatpush.bf16.xpose.msra.mxu0 %v2477
      %3119 = vmatpush.bf16.xpose.msra.mxu0 %v2474
      %3120 = vmatmul.bf16.gmra.mxu0 %v2447
      %v3121 = vpop.f32.mrf.mxu0
      %v3122 = vadd.f32 %v3109, %v3121
      %v3123 = vpop.f32.mrf.mxu0
      %3124 = vdwg.mxu0
      %3125 = vmatpush.bf16.xpose.msra.mxu0 %v1867
      %3126 = vmatpush.bf16.xpose.msra.mxu0 %v1865
      %3127 = vmatpush.bf16.xpose.msra.mxu0 %v1863
      %3128 = vmatpush.bf16.xpose.msra.mxu0 %v1861
      %3129 = vmatpush.bf16.xpose.msra.mxu0 %v1859
      %3130 = vmatpush.bf16.xpose.msra.mxu0 %v1857
      %3131 = vmatpush.bf16.xpose.msra.mxu0 %v1855
      %3132 = vmatpush.bf16.xpose.msra.mxu0 %v1853
      %3133 = vmatmul.bf16.gmra.mxu0 %v570
      %v3134 = vpop.f32.mrf.mxu0
      %v3135 = vadd.f32 0.0, %v3134
      %v3136 = vpop.f32.mrf.mxu0
      %3137 = vdwg.mxu0
      %3138 = vmatpush.bf16.xpose.msra.mxu0 %v2519
      %3139 = vmatpush.bf16.xpose.msra.mxu0 %v2516
      %3140 = vmatpush.bf16.xpose.msra.mxu0 %v2513
      %3141 = vmatpush.bf16.xpose.msra.mxu0 %v2510
      %3142 = vmatpush.bf16.xpose.msra.mxu0 %v2507
      %3143 = vmatpush.bf16.xpose.msra.mxu0 %v2504
      %3144 = vmatpush.bf16.xpose.msra.mxu0 %v2501
      %3145 = vmatpush.bf16.xpose.msra.mxu0 %v2498
      %3146 = vmatmul.bf16.gmra.mxu0 %v2447
      %v3147 = vpop.f32.mrf.mxu0
      %v3148 = vadd.f32 %v3135, %v3147
      %v3149 = vpop.f32.mrf.mxu0
      %3150 = vdwg.mxu0
      %3151 = vmatpush.bf16.xpose.msra.mxu0 %v1883
      %3152 = vmatpush.bf16.xpose.msra.mxu0 %v1881
      %3153 = vmatpush.bf16.xpose.msra.mxu0 %v1879
      %3154 = vmatpush.bf16.xpose.msra.mxu0 %v1877
      %3155 = vmatpush.bf16.xpose.msra.mxu0 %v1875
      %3156 = vmatpush.bf16.xpose.msra.mxu0 %v1873
      %3157 = vmatpush.bf16.xpose.msra.mxu0 %v1871
      %3158 = vmatpush.bf16.xpose.msra.mxu0 %v1869
      %3159 = vmatmul.bf16.gmra.mxu0 %v570
      %v3160 = vpop.f32.mrf.mxu0
      %v3161 = vadd.f32 0.0, %v3160
      %v3162 = vpop.f32.mrf.mxu0
      %3163 = vdwg.mxu0
      %3164 = vmatpush.bf16.xpose.msra.mxu0 %v2543
      %3165 = vmatpush.bf16.xpose.msra.mxu0 %v2540
      %3166 = vmatpush.bf16.xpose.msra.mxu0 %v2537
      %3167 = vmatpush.bf16.xpose.msra.mxu0 %v2534
      %3168 = vmatpush.bf16.xpose.msra.mxu0 %v2531
      %3169 = vmatpush.bf16.xpose.msra.mxu0 %v2528
      %3170 = vmatpush.bf16.xpose.msra.mxu0 %v2525
      %3171 = vmatpush.bf16.xpose.msra.mxu0 %v2522
      %3172 = vmatmul.bf16.gmra.mxu0 %v2447
      %v3173 = vpop.f32.mrf.mxu0
      %v3174 = vadd.f32 %v3161, %v3173
      %v3175 = vpop.f32.mrf.mxu0
      %3176 = vdwg.mxu0
      %3177 = vmatpush.bf16.xpose.msra.mxu0 %v1899
      %3178 = vmatpush.bf16.xpose.msra.mxu0 %v1897
      %3179 = vmatpush.bf16.xpose.msra.mxu0 %v1895
      %3180 = vmatpush.bf16.xpose.msra.mxu0 %v1893
      %3181 = vmatpush.bf16.xpose.msra.mxu0 %v1891
      %3182 = vmatpush.bf16.xpose.msra.mxu0 %v1889
      %3183 = vmatpush.bf16.xpose.msra.mxu0 %v1887
      %3184 = vmatpush.bf16.xpose.msra.mxu0 %v1885
      %3185 = vmatmul.bf16.gmra.mxu0 %v570
      %v3186 = vpop.f32.mrf.mxu0
      %v3187 = vadd.f32 0.0, %v3186
      %v3188 = vpop.f32.mrf.mxu0
      %3189 = vdwg.mxu0
      %3190 = vmatpush.bf16.xpose.msra.mxu0 %v2567
      %3191 = vmatpush.bf16.xpose.msra.mxu0 %v2564
      %3192 = vmatpush.bf16.xpose.msra.mxu0 %v2561
      %3193 = vmatpush.bf16.xpose.msra.mxu0 %v2558
      %3194 = vmatpush.bf16.xpose.msra.mxu0 %v2555
      %3195 = vmatpush.bf16.xpose.msra.mxu0 %v2552
      %3196 = vmatpush.bf16.xpose.msra.mxu0 %v2549
      %3197 = vmatpush.bf16.xpose.msra.mxu0 %v2546
      %3198 = vmatmul.bf16.gmra.mxu0 %v2447
      %v3199 = vpop.f32.mrf.mxu0
      %v3200 = vadd.f32 %v3187, %v3199
      %v3201 = vpop.f32.mrf.mxu0
      %3202 = vdwg.mxu0
      %3203 = vmatpush.bf16.xpose.msra.mxu0 %v1915
      %3204 = vmatpush.bf16.xpose.msra.mxu0 %v1913
      %3205 = vmatpush.bf16.xpose.msra.mxu0 %v1911
      %3206 = vmatpush.bf16.xpose.msra.mxu0 %v1909
      %3207 = vmatpush.bf16.xpose.msra.mxu0 %v1907
      %3208 = vmatpush.bf16.xpose.msra.mxu0 %v1905
      %3209 = vmatpush.bf16.xpose.msra.mxu0 %v1903
      %3210 = vmatpush.bf16.xpose.msra.mxu0 %v1901
      %3211 = vmatmul.bf16.gmra.mxu0 %v570
      %v3212 = vpop.f32.mrf.mxu0
      %v3213 = vadd.f32 0.0, %v3212
      %v3214 = vpop.f32.mrf.mxu0
      %3215 = vdwg.mxu0
      %3216 = vmatpush.bf16.xpose.msra.mxu0 %v2591
      %3217 = vmatpush.bf16.xpose.msra.mxu0 %v2588
      %3218 = vmatpush.bf16.xpose.msra.mxu0 %v2585
      %3219 = vmatpush.bf16.xpose.msra.mxu0 %v2582
      %3220 = vmatpush.bf16.xpose.msra.mxu0 %v2579
      %3221 = vmatpush.bf16.xpose.msra.mxu0 %v2576
      %3222 = vmatpush.bf16.xpose.msra.mxu0 %v2573
      %3223 = vmatpush.bf16.xpose.msra.mxu0 %v2570
      %3224 = vmatmul.bf16.gmra.mxu0 %v2447
      %v3225 = vpop.f32.mrf.mxu0
      %v3226 = vadd.f32 %v3213, %v3225
      %v3227 = vpop.f32.mrf.mxu0
      %3228 = vdwg.mxu0
      %3229 = vmatpush.bf16.xpose.msra.mxu0 %v1931
      %3230 = vmatpush.bf16.xpose.msra.mxu0 %v1929
      %3231 = vmatpush.bf16.xpose.msra.mxu0 %v1927
      %3232 = vmatpush.bf16.xpose.msra.mxu0 %v1925
      %3233 = vmatpush.bf16.xpose.msra.mxu0 %v1923
      %3234 = vmatpush.bf16.xpose.msra.mxu0 %v1921
      %3235 = vmatpush.bf16.xpose.msra.mxu0 %v1919
      %3236 = vmatpush.bf16.xpose.msra.mxu0 %v1917
      %3237 = vmatmul.bf16.gmra.mxu0 %v570
      %v3238 = vpop.f32.mrf.mxu0
      %v3239 = vadd.f32 0.0, %v3238
      %v3240 = vpop.f32.mrf.mxu0
      %3241 = vdwg.mxu0
      %3242 = vmatpush.bf16.xpose.msra.mxu0 %v2615
      %3243 = vmatpush.bf16.xpose.msra.mxu0 %v2612
      %3244 = vmatpush.bf16.xpose.msra.mxu0 %v2609
      %3245 = vmatpush.bf16.xpose.msra.mxu0 %v2606
      %3246 = vmatpush.bf16.xpose.msra.mxu0 %v2603
      %3247 = vmatpush.bf16.xpose.msra.mxu0 %v2600
      %3248 = vmatpush.bf16.xpose.msra.mxu0 %v2597
      %3249 = vmatpush.bf16.xpose.msra.mxu0 %v2594
      %3250 = vmatmul.bf16.gmra.mxu0 %v2447
      %v3251 = vpop.f32.mrf.mxu0
      %v3252 = vadd.f32 %v3239, %v3251
      %v3253 = vpop.f32.mrf.mxu0
      %3254 = vdwg.mxu0
      %3255 = vmatpush.bf16.xpose.msra.mxu0 %v1947
      %3256 = vmatpush.bf16.xpose.msra.mxu0 %v1945
      %3257 = vmatpush.bf16.xpose.msra.mxu0 %v1943
      %3258 = vmatpush.bf16.xpose.msra.mxu0 %v1941
      %3259 = vmatpush.bf16.xpose.msra.mxu0 %v1939
      %3260 = vmatpush.bf16.xpose.msra.mxu0 %v1937
      %3261 = vmatpush.bf16.xpose.msra.mxu0 %v1935
      %3262 = vmatpush.bf16.xpose.msra.mxu0 %v1933
      %3263 = vmatmul.bf16.gmra.mxu0 %v570
      %v3264 = vpop.f32.mrf.mxu0
      %v3265 = vadd.f32 0.0, %v3264
      %v3266 = vpop.f32.mrf.mxu0
      %3267 = vdwg.mxu0
      %3268 = vmatpush.bf16.xpose.msra.mxu0 %v2639
      %3269 = vmatpush.bf16.xpose.msra.mxu0 %v2636
      %3270 = vmatpush.bf16.xpose.msra.mxu0 %v2633
      %3271 = vmatpush.bf16.xpose.msra.mxu0 %v2630
      %3272 = vmatpush.bf16.xpose.msra.mxu0 %v2627
      %3273 = vmatpush.bf16.xpose.msra.mxu0 %v2624
      %3274 = vmatpush.bf16.xpose.msra.mxu0 %v2621
      %3275 = vmatpush.bf16.xpose.msra.mxu0 %v2618
      %3276 = vmatmul.bf16.gmra.mxu0 %v2447
      %v3277 = vpop.f32.mrf.mxu0
      %v3278 = vadd.f32 %v3265, %v3277
      %v3279 = vpop.f32.mrf.mxu0
      %3280 = vdwg.mxu0
      %3281 = vmatpush.bf16.xpose.msra.mxu0 %v1963
      %3282 = vmatpush.bf16.xpose.msra.mxu0 %v1961
      %3283 = vmatpush.bf16.xpose.msra.mxu0 %v1959
      %3284 = vmatpush.bf16.xpose.msra.mxu0 %v1957
      %3285 = vmatpush.bf16.xpose.msra.mxu0 %v1955
      %3286 = vmatpush.bf16.xpose.msra.mxu0 %v1953
      %3287 = vmatpush.bf16.xpose.msra.mxu0 %v1951
      %3288 = vmatpush.bf16.xpose.msra.mxu0 %v1949
      %3289 = vmatmul.bf16.gmra.mxu0 %v570
      %v3290 = vpop.f32.mrf.mxu0
      %v3291 = vadd.f32 0.0, %v3290
      %v3292 = vpop.f32.mrf.mxu0
      %3293 = vdwg.mxu0
      %3294 = vmatpush.bf16.xpose.msra.mxu0 %v2663
      %3295 = vmatpush.bf16.xpose.msra.mxu0 %v2660
      %3296 = vmatpush.bf16.xpose.msra.mxu0 %v2657
      %3297 = vmatpush.bf16.xpose.msra.mxu0 %v2654
      %3298 = vmatpush.bf16.xpose.msra.mxu0 %v2651
      %3299 = vmatpush.bf16.xpose.msra.mxu0 %v2648
      %3300 = vmatpush.bf16.xpose.msra.mxu0 %v2645
      %3301 = vmatpush.bf16.xpose.msra.mxu0 %v2642
      %3302 = vmatmul.bf16.gmra.mxu0 %v2447
      %v3303 = vpop.f32.mrf.mxu0
      %v3304 = vadd.f32 %v3291, %v3303
      %v3305 = vpop.f32.mrf.mxu0
      %3306 = vdwg.mxu0
      %3307 = vmatpush.bf16.xpose.msra.mxu0 %v1979
      %3308 = vmatpush.bf16.xpose.msra.mxu0 %v1977
      %3309 = vmatpush.bf16.xpose.msra.mxu0 %v1975
      %3310 = vmatpush.bf16.xpose.msra.mxu0 %v1973
      %3311 = vmatpush.bf16.xpose.msra.mxu0 %v1971
      %3312 = vmatpush.bf16.xpose.msra.mxu0 %v1969
      %3313 = vmatpush.bf16.xpose.msra.mxu0 %v1967
      %3314 = vmatpush.bf16.xpose.msra.mxu0 %v1965
      %3315 = vmatmul.bf16.gmra.mxu0 %v570
      %v3316 = vpop.f32.mrf.mxu0
      %v3317 = vadd.f32 0.0, %v3316
      %v3318 = vpop.f32.mrf.mxu0
      %3319 = vdwg.mxu0
      %3320 = vmatpush.bf16.xpose.msra.mxu0 %v2687
      %3321 = vmatpush.bf16.xpose.msra.mxu0 %v2684
      %3322 = vmatpush.bf16.xpose.msra.mxu0 %v2681
      %3323 = vmatpush.bf16.xpose.msra.mxu0 %v2678
      %3324 = vmatpush.bf16.xpose.msra.mxu0 %v2675
      %3325 = vmatpush.bf16.xpose.msra.mxu0 %v2672
      %3326 = vmatpush.bf16.xpose.msra.mxu0 %v2669
      %3327 = vmatpush.bf16.xpose.msra.mxu0 %v2666
      %3328 = vmatmul.bf16.gmra.mxu0 %v2447
      %v3329 = vpop.f32.mrf.mxu0
      %v3330 = vadd.f32 %v3317, %v3329
      %v3331 = vpop.f32.mrf.mxu0
      %3332 = vdwg.mxu0
      %3333 = vmatpush.bf16.xpose.msra.mxu0 %v1995
      %3334 = vmatpush.bf16.xpose.msra.mxu0 %v1993
      %3335 = vmatpush.bf16.xpose.msra.mxu0 %v1991
      %3336 = vmatpush.bf16.xpose.msra.mxu0 %v1989
      %3337 = vmatpush.bf16.xpose.msra.mxu0 %v1987
      %3338 = vmatpush.bf16.xpose.msra.mxu0 %v1985
      %3339 = vmatpush.bf16.xpose.msra.mxu0 %v1983
      %3340 = vmatpush.bf16.xpose.msra.mxu0 %v1981
      %3341 = vmatmul.bf16.gmra.mxu0 %v570
      %v3342 = vpop.f32.mrf.mxu0
      %v3343 = vadd.f32 0.0, %v3342
      %v3344 = vpop.f32.mrf.mxu0
      %3345 = vdwg.mxu0
      %3346 = vmatpush.bf16.xpose.msra.mxu0 %v2711
      %3347 = vmatpush.bf16.xpose.msra.mxu0 %v2708
      %3348 = vmatpush.bf16.xpose.msra.mxu0 %v2705
      %3349 = vmatpush.bf16.xpose.msra.mxu0 %v2702
      %3350 = vmatpush.bf16.xpose.msra.mxu0 %v2699
      %3351 = vmatpush.bf16.xpose.msra.mxu0 %v2696
      %3352 = vmatpush.bf16.xpose.msra.mxu0 %v2693
      %3353 = vmatpush.bf16.xpose.msra.mxu0 %v2690
      %3354 = vmatmul.bf16.gmra.mxu0 %v2447
      %v3355 = vpop.f32.mrf.mxu0
      %v3356 = vadd.f32 %v3343, %v3355
      %v3357 = vpop.f32.mrf.mxu0
      %3358 = vdwg.mxu0
      %3359 = vmatpush.bf16.xpose.msra.mxu0 %v2011
      %3360 = vmatpush.bf16.xpose.msra.mxu0 %v2009
      %3361 = vmatpush.bf16.xpose.msra.mxu0 %v2007
      %3362 = vmatpush.bf16.xpose.msra.mxu0 %v2005
      %3363 = vmatpush.bf16.xpose.msra.mxu0 %v2003
      %3364 = vmatpush.bf16.xpose.msra.mxu0 %v2001
      %3365 = vmatpush.bf16.xpose.msra.mxu0 %v1999
      %3366 = vmatpush.bf16.xpose.msra.mxu0 %v1997
      %3367 = vmatmul.bf16.gmra.mxu0 %v570
      %v3368 = vpop.f32.mrf.mxu0
      %v3369 = vadd.f32 0.0, %v3368
      %v3370 = vpop.f32.mrf.mxu0
      %3371 = vdwg.mxu0
      %3372 = vmatpush.bf16.xpose.msra.mxu0 %v2735
      %3373 = vmatpush.bf16.xpose.msra.mxu0 %v2732
      %3374 = vmatpush.bf16.xpose.msra.mxu0 %v2729
      %3375 = vmatpush.bf16.xpose.msra.mxu0 %v2726
      %3376 = vmatpush.bf16.xpose.msra.mxu0 %v2723
      %3377 = vmatpush.bf16.xpose.msra.mxu0 %v2720
      %3378 = vmatpush.bf16.xpose.msra.mxu0 %v2717
      %3379 = vmatpush.bf16.xpose.msra.mxu0 %v2714
      %3380 = vmatmul.bf16.gmra.mxu0 %v2447
      %v3381 = vpop.f32.mrf.mxu0
      %v3382 = vadd.f32 %v3369, %v3381
      %v3383 = vpop.f32.mrf.mxu0
      %3384 = vdwg.mxu0
      %3385 = vmatpush.bf16.xpose.msra.mxu0 %v2027
      %3386 = vmatpush.bf16.xpose.msra.mxu0 %v2025
      %3387 = vmatpush.bf16.xpose.msra.mxu0 %v2023
      %3388 = vmatpush.bf16.xpose.msra.mxu0 %v2021
      %3389 = vmatpush.bf16.xpose.msra.mxu0 %v2019
      %3390 = vmatpush.bf16.xpose.msra.mxu0 %v2017
      %3391 = vmatpush.bf16.xpose.msra.mxu0 %v2015
      %3392 = vmatpush.bf16.xpose.msra.mxu0 %v2013
      %3393 = vmatmul.bf16.gmra.mxu0 %v570
      %v3394 = vpop.f32.mrf.mxu0
      %v3395 = vadd.f32 0.0, %v3394
      %v3396 = vpop.f32.mrf.mxu0
      %3397 = vdwg.mxu0
      %3398 = vmatpush.bf16.xpose.msra.mxu0 %v2759
      %3399 = vmatpush.bf16.xpose.msra.mxu0 %v2756
      %3400 = vmatpush.bf16.xpose.msra.mxu0 %v2753
      %3401 = vmatpush.bf16.xpose.msra.mxu0 %v2750
      %3402 = vmatpush.bf16.xpose.msra.mxu0 %v2747
      %3403 = vmatpush.bf16.xpose.msra.mxu0 %v2744
      %3404 = vmatpush.bf16.xpose.msra.mxu0 %v2741
      %3405 = vmatpush.bf16.xpose.msra.mxu0 %v2738
      %3406 = vmatmul.bf16.gmra.mxu0 %v2447
      %v3407 = vpop.f32.mrf.mxu0
      %v3408 = vadd.f32 %v3395, %v3407
      %v3409 = vpop.f32.mrf.mxu0
      %3410 = vdwg.mxu0
      %3411 = vmatpush.bf16.xpose.msra.mxu0 %v2043
      %3412 = vmatpush.bf16.xpose.msra.mxu0 %v2041
      %3413 = vmatpush.bf16.xpose.msra.mxu0 %v2039
      %3414 = vmatpush.bf16.xpose.msra.mxu0 %v2037
      %3415 = vmatpush.bf16.xpose.msra.mxu0 %v2035
      %3416 = vmatpush.bf16.xpose.msra.mxu0 %v2033
      %3417 = vmatpush.bf16.xpose.msra.mxu0 %v2031
      %3418 = vmatpush.bf16.xpose.msra.mxu0 %v2029
      %3419 = vmatmul.bf16.gmra.mxu0 %v570
      %v3420 = vpop.f32.mrf.mxu0
      %v3421 = vadd.f32 0.0, %v3420
      %v3422 = vpop.f32.mrf.mxu0
      %3423 = vdwg.mxu0
      %3424 = vmatpush.bf16.xpose.msra.mxu0 %v2783
      %3425 = vmatpush.bf16.xpose.msra.mxu0 %v2780
      %3426 = vmatpush.bf16.xpose.msra.mxu0 %v2777
      %3427 = vmatpush.bf16.xpose.msra.mxu0 %v2774
      %3428 = vmatpush.bf16.xpose.msra.mxu0 %v2771
      %3429 = vmatpush.bf16.xpose.msra.mxu0 %v2768
      %3430 = vmatpush.bf16.xpose.msra.mxu0 %v2765
      %3431 = vmatpush.bf16.xpose.msra.mxu0 %v2762
      %3432 = vmatmul.bf16.gmra.mxu0 %v2447
      %v3433 = vpop.f32.mrf.mxu0
      %v3434 = vadd.f32 %v3421, %v3433
      %v3435 = vpop.f32.mrf.mxu0
      %3436 = vdwg.mxu0
      %3437 = vmatpush.bf16.xpose.msra.mxu0 %v2059
      %3438 = vmatpush.bf16.xpose.msra.mxu0 %v2057
      %3439 = vmatpush.bf16.xpose.msra.mxu0 %v2055
      %3440 = vmatpush.bf16.xpose.msra.mxu0 %v2053
      %3441 = vmatpush.bf16.xpose.msra.mxu0 %v2051
      %3442 = vmatpush.bf16.xpose.msra.mxu0 %v2049
      %3443 = vmatpush.bf16.xpose.msra.mxu0 %v2047
      %3444 = vmatpush.bf16.xpose.msra.mxu0 %v2045
      %3445 = vmatmul.bf16.gmra.mxu0 %v570
      %v3446 = vpop.f32.mrf.mxu0
      %v3447 = vadd.f32 0.0, %v3446
      %v3448 = vpop.f32.mrf.mxu0
      %3449 = vdwg.mxu0
      %3450 = vmatpush.bf16.xpose.msra.mxu0 %v2807
      %3451 = vmatpush.bf16.xpose.msra.mxu0 %v2804
      %3452 = vmatpush.bf16.xpose.msra.mxu0 %v2801
      %3453 = vmatpush.bf16.xpose.msra.mxu0 %v2798
      %3454 = vmatpush.bf16.xpose.msra.mxu0 %v2795
      %3455 = vmatpush.bf16.xpose.msra.mxu0 %v2792
      %3456 = vmatpush.bf16.xpose.msra.mxu0 %v2789
      %3457 = vmatpush.bf16.xpose.msra.mxu0 %v2786
      %3458 = vmatmul.bf16.gmra.mxu0 %v2447
      %v3459 = vpop.f32.mrf.mxu0
      %v3460 = vadd.f32 %v3447, %v3459
      %v3461 = vpop.f32.mrf.mxu0
      %3462 = vdwg.mxu0
      %3463 = vmatpush.bf16.xpose.msra.mxu0 %v2075
      %3464 = vmatpush.bf16.xpose.msra.mxu0 %v2073
      %3465 = vmatpush.bf16.xpose.msra.mxu0 %v2071
      %3466 = vmatpush.bf16.xpose.msra.mxu0 %v2069
      %3467 = vmatpush.bf16.xpose.msra.mxu0 %v2067
      %3468 = vmatpush.bf16.xpose.msra.mxu0 %v2065
      %3469 = vmatpush.bf16.xpose.msra.mxu0 %v2063
      %3470 = vmatpush.bf16.xpose.msra.mxu0 %v2061
      %3471 = vmatmul.bf16.gmra.mxu0 %v570
      %v3472 = vpop.f32.mrf.mxu0
      %v3473 = vadd.f32 0.0, %v3472
      %v3474 = vpop.f32.mrf.mxu0
      %3475 = vdwg.mxu0
      %3476 = vmatpush.bf16.xpose.msra.mxu0 %v2831
      %3477 = vmatpush.bf16.xpose.msra.mxu0 %v2828
      %3478 = vmatpush.bf16.xpose.msra.mxu0 %v2825
      %3479 = vmatpush.bf16.xpose.msra.mxu0 %v2822
      %3480 = vmatpush.bf16.xpose.msra.mxu0 %v2819
      %3481 = vmatpush.bf16.xpose.msra.mxu0 %v2816
      %3482 = vmatpush.bf16.xpose.msra.mxu0 %v2813
      %3483 = vmatpush.bf16.xpose.msra.mxu0 %v2810
      %3484 = vmatmul.bf16.gmra.mxu0 %v2447
      %v3485 = vpop.f32.mrf.mxu0
      %v3486 = vadd.f32 %v3473, %v3485
      %v3487 = vpop.f32.mrf.mxu0
      %3488 = vdwg.mxu0
      %3489 = vmatpush.bf16.xpose.msra.mxu0 %v2091
      %3490 = vmatpush.bf16.xpose.msra.mxu0 %v2089
      %3491 = vmatpush.bf16.xpose.msra.mxu0 %v2087
      %3492 = vmatpush.bf16.xpose.msra.mxu0 %v2085
      %3493 = vmatpush.bf16.xpose.msra.mxu0 %v2083
      %3494 = vmatpush.bf16.xpose.msra.mxu0 %v2081
      %3495 = vmatpush.bf16.xpose.msra.mxu0 %v2079
      %3496 = vmatpush.bf16.xpose.msra.mxu0 %v2077
      %3497 = vmatmul.bf16.gmra.mxu0 %v570
      %v3498 = vpop.f32.mrf.mxu0
      %v3499 = vadd.f32 0.0, %v3498
      %v3500 = vpop.f32.mrf.mxu0
      %3501 = vdwg.mxu0
      %3502 = vmatpush.bf16.xpose.msra.mxu0 %v2855
      %3503 = vmatpush.bf16.xpose.msra.mxu0 %v2852
      %3504 = vmatpush.bf16.xpose.msra.mxu0 %v2849
      %3505 = vmatpush.bf16.xpose.msra.mxu0 %v2846
      %3506 = vmatpush.bf16.xpose.msra.mxu0 %v2843
      %3507 = vmatpush.bf16.xpose.msra.mxu0 %v2840
      %3508 = vmatpush.bf16.xpose.msra.mxu0 %v2837
      %3509 = vmatpush.bf16.xpose.msra.mxu0 %v2834
      %3510 = vmatmul.bf16.gmra.mxu0 %v2447
      %v3511 = vpop.f32.mrf.mxu0
      %v3512 = vadd.f32 %v3499, %v3511
      %v3513 = vpop.f32.mrf.mxu0
      %3514 = vdwg.mxu0
      %3515 = vmatpush.bf16.xpose.msra.mxu0 %v2107
      %3516 = vmatpush.bf16.xpose.msra.mxu0 %v2105
      %3517 = vmatpush.bf16.xpose.msra.mxu0 %v2103
      %3518 = vmatpush.bf16.xpose.msra.mxu0 %v2101
      %3519 = vmatpush.bf16.xpose.msra.mxu0 %v2099
      %3520 = vmatpush.bf16.xpose.msra.mxu0 %v2097
      %3521 = vmatpush.bf16.xpose.msra.mxu0 %v2095
      %3522 = vmatpush.bf16.xpose.msra.mxu0 %v2093
      %3523 = vmatmul.bf16.gmra.mxu0 %v570
      %v3524 = vpop.f32.mrf.mxu0
      %v3525 = vadd.f32 0.0, %v3524
      %v3526 = vpop.f32.mrf.mxu0
      %3527 = vdwg.mxu0
      %3528 = vmatpush.bf16.xpose.msra.mxu0 %v2879
      %3529 = vmatpush.bf16.xpose.msra.mxu0 %v2876
      %3530 = vmatpush.bf16.xpose.msra.mxu0 %v2873
      %3531 = vmatpush.bf16.xpose.msra.mxu0 %v2870
      %3532 = vmatpush.bf16.xpose.msra.mxu0 %v2867
      %3533 = vmatpush.bf16.xpose.msra.mxu0 %v2864
      %3534 = vmatpush.bf16.xpose.msra.mxu0 %v2861
      %3535 = vmatpush.bf16.xpose.msra.mxu0 %v2858
      %3536 = vmatmul.bf16.gmra.mxu0 %v2447
      %v3537 = vpop.f32.mrf.mxu0
      %v3538 = vadd.f32 %v3525, %v3537
      %v3539 = vpop.f32.mrf.mxu0
      %3540 = vdwg.mxu0
      %3541 = vmatpush.bf16.xpose.msra.mxu0 %v2123
      %3542 = vmatpush.bf16.xpose.msra.mxu0 %v2121
      %3543 = vmatpush.bf16.xpose.msra.mxu0 %v2119
      %3544 = vmatpush.bf16.xpose.msra.mxu0 %v2117
      %3545 = vmatpush.bf16.xpose.msra.mxu0 %v2115
      %3546 = vmatpush.bf16.xpose.msra.mxu0 %v2113
      %3547 = vmatpush.bf16.xpose.msra.mxu0 %v2111
      %3548 = vmatpush.bf16.xpose.msra.mxu0 %v2109
      %3549 = vmatmul.bf16.gmra.mxu0 %v570
      %v3550 = vpop.f32.mrf.mxu0
      %v3551 = vadd.f32 0.0, %v3550
      %v3552 = vpop.f32.mrf.mxu0
      %3553 = vdwg.mxu0
      %3554 = vmatpush.bf16.xpose.msra.mxu0 %v2903
      %3555 = vmatpush.bf16.xpose.msra.mxu0 %v2900
      %3556 = vmatpush.bf16.xpose.msra.mxu0 %v2897
      %3557 = vmatpush.bf16.xpose.msra.mxu0 %v2894
      %3558 = vmatpush.bf16.xpose.msra.mxu0 %v2891
      %3559 = vmatpush.bf16.xpose.msra.mxu0 %v2888
      %3560 = vmatpush.bf16.xpose.msra.mxu0 %v2885
      %3561 = vmatpush.bf16.xpose.msra.mxu0 %v2882
      %3562 = vmatmul.bf16.gmra.mxu0 %v2447
      %v3563 = vpop.f32.mrf.mxu0
      %v3564 = vadd.f32 %v3551, %v3563
      %v3565 = vpop.f32.mrf.mxu0
      %3566 = vdwg.mxu0
      %3567 = vmatpush.bf16.xpose.msra.mxu0 %v2139
      %3568 = vmatpush.bf16.xpose.msra.mxu0 %v2137
      %3569 = vmatpush.bf16.xpose.msra.mxu0 %v2135
      %3570 = vmatpush.bf16.xpose.msra.mxu0 %v2133
      %3571 = vmatpush.bf16.xpose.msra.mxu0 %v2131
      %3572 = vmatpush.bf16.xpose.msra.mxu0 %v2129
      %3573 = vmatpush.bf16.xpose.msra.mxu0 %v2127
      %3574 = vmatpush.bf16.xpose.msra.mxu0 %v2125
      %3575 = vmatmul.bf16.gmra.mxu0 %v570
      %v3576 = vpop.f32.mrf.mxu0
      %v3577 = vadd.f32 0.0, %v3576
      %v3578 = vpop.f32.mrf.mxu0
      %3579 = vdwg.mxu0
      %3580 = vmatpush.bf16.xpose.msra.mxu0 %v2927
      %3581 = vmatpush.bf16.xpose.msra.mxu0 %v2924
      %3582 = vmatpush.bf16.xpose.msra.mxu0 %v2921
      %3583 = vmatpush.bf16.xpose.msra.mxu0 %v2918
      %3584 = vmatpush.bf16.xpose.msra.mxu0 %v2915
      %3585 = vmatpush.bf16.xpose.msra.mxu0 %v2912
      %3586 = vmatpush.bf16.xpose.msra.mxu0 %v2909
      %3587 = vmatpush.bf16.xpose.msra.mxu0 %v2906
      %3588 = vmatmul.bf16.gmra.mxu0 %v2447
      %v3589 = vpop.f32.mrf.mxu0
      %v3590 = vadd.f32 %v3577, %v3589
      %v3591 = vpop.f32.mrf.mxu0
      %3592 = vdwg.mxu0
      %3593 = vmatpush.bf16.xpose.msra.mxu0 %v2155
      %3594 = vmatpush.bf16.xpose.msra.mxu0 %v2153
      %3595 = vmatpush.bf16.xpose.msra.mxu0 %v2151
      %3596 = vmatpush.bf16.xpose.msra.mxu0 %v2149
      %3597 = vmatpush.bf16.xpose.msra.mxu0 %v2147
      %3598 = vmatpush.bf16.xpose.msra.mxu0 %v2145
      %3599 = vmatpush.bf16.xpose.msra.mxu0 %v2143
      %3600 = vmatpush.bf16.xpose.msra.mxu0 %v2141
      %3601 = vmatmul.bf16.gmra.mxu0 %v570
      %v3602 = vpop.f32.mrf.mxu0
      %v3603 = vadd.f32 0.0, %v3602
      %v3604 = vpop.f32.mrf.mxu0
      %3605 = vdwg.mxu0
      %3606 = vmatpush.bf16.xpose.msra.mxu0 %v2951
      %3607 = vmatpush.bf16.xpose.msra.mxu0 %v2948
      %3608 = vmatpush.bf16.xpose.msra.mxu0 %v2945
      %3609 = vmatpush.bf16.xpose.msra.mxu0 %v2942
      %3610 = vmatpush.bf16.xpose.msra.mxu0 %v2939
      %3611 = vmatpush.bf16.xpose.msra.mxu0 %v2936
      %3612 = vmatpush.bf16.xpose.msra.mxu0 %v2933
      %3613 = vmatpush.bf16.xpose.msra.mxu0 %v2930
      %3614 = vmatmul.bf16.gmra.mxu0 %v2447
      %v3615 = vpop.f32.mrf.mxu0
      %v3616 = vadd.f32 %v3603, %v3615
      %v3617 = vpop.f32.mrf.mxu0
      %3618 = vdwg.mxu0
      %3619 = vmatpush.bf16.xpose.msra.mxu0 %v2171
      %3620 = vmatpush.bf16.xpose.msra.mxu0 %v2169
      %3621 = vmatpush.bf16.xpose.msra.mxu0 %v2167
      %3622 = vmatpush.bf16.xpose.msra.mxu0 %v2165
      %3623 = vmatpush.bf16.xpose.msra.mxu0 %v2163
      %3624 = vmatpush.bf16.xpose.msra.mxu0 %v2161
      %3625 = vmatpush.bf16.xpose.msra.mxu0 %v2159
      %3626 = vmatpush.bf16.xpose.msra.mxu0 %v2157
      %3627 = vmatmul.bf16.gmra.mxu0 %v570
      %v3628 = vpop.f32.mrf.mxu0
      %v3629 = vadd.f32 0.0, %v3628
      %v3630 = vpop.f32.mrf.mxu0
      %3631 = vdwg.mxu0
      %3632 = vmatpush.bf16.xpose.msra.mxu0 %v2975
      %3633 = vmatpush.bf16.xpose.msra.mxu0 %v2972
      %3634 = vmatpush.bf16.xpose.msra.mxu0 %v2969
      %3635 = vmatpush.bf16.xpose.msra.mxu0 %v2966
      %3636 = vmatpush.bf16.xpose.msra.mxu0 %v2963
      %3637 = vmatpush.bf16.xpose.msra.mxu0 %v2960
      %3638 = vmatpush.bf16.xpose.msra.mxu0 %v2957
      %3639 = vmatpush.bf16.xpose.msra.mxu0 %v2954
      %3640 = vmatmul.bf16.gmra.mxu0 %v2447
      %v3641 = vpop.f32.mrf.mxu0
      %v3642 = vadd.f32 %v3629, %v3641
      %v3643 = vpop.f32.mrf.mxu0
      %3644 = vdwg.mxu0
      %3645 = vmatpush.bf16.xpose.msra.mxu0 %v2187
      %3646 = vmatpush.bf16.xpose.msra.mxu0 %v2185
      %3647 = vmatpush.bf16.xpose.msra.mxu0 %v2183
      %3648 = vmatpush.bf16.xpose.msra.mxu0 %v2181
      %3649 = vmatpush.bf16.xpose.msra.mxu0 %v2179
      %3650 = vmatpush.bf16.xpose.msra.mxu0 %v2177
      %3651 = vmatpush.bf16.xpose.msra.mxu0 %v2175
      %3652 = vmatpush.bf16.xpose.msra.mxu0 %v2173
      %3653 = vmatmul.bf16.gmra.mxu0 %v570
      %v3654 = vpop.f32.mrf.mxu0
      %v3655 = vadd.f32 0.0, %v3654
      %v3656 = vpop.f32.mrf.mxu0
      %3657 = vdwg.mxu0
      %3658 = vmatpush.bf16.xpose.msra.mxu0 %v2999
      %3659 = vmatpush.bf16.xpose.msra.mxu0 %v2996
      %3660 = vmatpush.bf16.xpose.msra.mxu0 %v2993
      %3661 = vmatpush.bf16.xpose.msra.mxu0 %v2990
      %3662 = vmatpush.bf16.xpose.msra.mxu0 %v2987
      %3663 = vmatpush.bf16.xpose.msra.mxu0 %v2984
      %3664 = vmatpush.bf16.xpose.msra.mxu0 %v2981
      %3665 = vmatpush.bf16.xpose.msra.mxu0 %v2978
      %3666 = vmatmul.bf16.gmra.mxu0 %v2447
      %v3667 = vpop.f32.mrf.mxu0
      %v3668 = vadd.f32 %v3655, %v3667
      %v3669 = vpop.f32.mrf.mxu0
      %3670 = vdwg.mxu0
      %3671 = vmatpush.bf16.xpose.msra.mxu0 %v2203
      %3672 = vmatpush.bf16.xpose.msra.mxu0 %v2201
      %3673 = vmatpush.bf16.xpose.msra.mxu0 %v2199
      %3674 = vmatpush.bf16.xpose.msra.mxu0 %v2197
      %3675 = vmatpush.bf16.xpose.msra.mxu0 %v2195
      %3676 = vmatpush.bf16.xpose.msra.mxu0 %v2193
      %3677 = vmatpush.bf16.xpose.msra.mxu0 %v2191
      %3678 = vmatpush.bf16.xpose.msra.mxu0 %v2189
      %3679 = vmatmul.bf16.gmra.mxu0 %v570
      %v3680 = vpop.f32.mrf.mxu0
      %v3681 = vadd.f32 0.0, %v3680
      %v3682 = vpop.f32.mrf.mxu0
      %3683 = vdwg.mxu0
      %3684 = vmatpush.bf16.xpose.msra.mxu0 %v3023
      %3685 = vmatpush.bf16.xpose.msra.mxu0 %v3020
      %3686 = vmatpush.bf16.xpose.msra.mxu0 %v3017
      %3687 = vmatpush.bf16.xpose.msra.mxu0 %v3014
      %3688 = vmatpush.bf16.xpose.msra.mxu0 %v3011
      %3689 = vmatpush.bf16.xpose.msra.mxu0 %v3008
      %3690 = vmatpush.bf16.xpose.msra.mxu0 %v3005
      %3691 = vmatpush.bf16.xpose.msra.mxu0 %v3002
      %3692 = vmatmul.bf16.gmra.mxu0 %v2447
      %v3693 = vpop.f32.mrf.mxu0
      %v3694 = vadd.f32 %v3681, %v3693
      %v3695 = vpop.f32.mrf.mxu0
      %3696 = vdwg.mxu0
      %3697 = vmatpush.bf16.xpose.msra.mxu0 %v2219
      %3698 = vmatpush.bf16.xpose.msra.mxu0 %v2217
      %3699 = vmatpush.bf16.xpose.msra.mxu0 %v2215
      %3700 = vmatpush.bf16.xpose.msra.mxu0 %v2213
      %3701 = vmatpush.bf16.xpose.msra.mxu0 %v2211
      %3702 = vmatpush.bf16.xpose.msra.mxu0 %v2209
      %3703 = vmatpush.bf16.xpose.msra.mxu0 %v2207
      %3704 = vmatpush.bf16.xpose.msra.mxu0 %v2205
      %3705 = vmatmul.bf16.gmra.mxu0 %v570
      %v3706 = vpop.f32.mrf.mxu0
      %v3707 = vadd.f32 0.0, %v3706
      %v3708 = vpop.f32.mrf.mxu0
      %3709 = vdwg.mxu0
      %3710 = vmatpush.bf16.xpose.msra.mxu0 %v3047
      %3711 = vmatpush.bf16.xpose.msra.mxu0 %v3044
      %3712 = vmatpush.bf16.xpose.msra.mxu0 %v3041
      %3713 = vmatpush.bf16.xpose.msra.mxu0 %v3038
      %3714 = vmatpush.bf16.xpose.msra.mxu0 %v3035
      %3715 = vmatpush.bf16.xpose.msra.mxu0 %v3032
      %3716 = vmatpush.bf16.xpose.msra.mxu0 %v3029
      %3717 = vmatpush.bf16.xpose.msra.mxu0 %v3026
      %3718 = vmatmul.bf16.gmra.mxu0 %v2447
      %v3719 = vpop.f32.mrf.mxu0
      %v3720 = vadd.f32 %v3707, %v3719
      %v3721 = vpop.f32.mrf.mxu0
      %3722 = vdwg.mxu0
      %3723 = vmatpush.bf16.xpose.msra.mxu0 %v2235
      %3724 = vmatpush.bf16.xpose.msra.mxu0 %v2233
      %3725 = vmatpush.bf16.xpose.msra.mxu0 %v2231
      %3726 = vmatpush.bf16.xpose.msra.mxu0 %v2229
      %3727 = vmatpush.bf16.xpose.msra.mxu0 %v2227
      %3728 = vmatpush.bf16.xpose.msra.mxu0 %v2225
      %3729 = vmatpush.bf16.xpose.msra.mxu0 %v2223
      %3730 = vmatpush.bf16.xpose.msra.mxu0 %v2221
      %3731 = vmatmul.bf16.gmra.mxu0 %v570
      %v3732 = vpop.f32.mrf.mxu0
      %v3733 = vadd.f32 0.0, %v3732
      %v3734 = vpop.f32.mrf.mxu0
      %3735 = vdwg.mxu0
      %3736 = vmatpush.bf16.xpose.msra.mxu0 %v3071
      %3737 = vmatpush.bf16.xpose.msra.mxu0 %v3068
      %3738 = vmatpush.bf16.xpose.msra.mxu0 %v3065
      %3739 = vmatpush.bf16.xpose.msra.mxu0 %v3062
      %3740 = vmatpush.bf16.xpose.msra.mxu0 %v3059
      %3741 = vmatpush.bf16.xpose.msra.mxu0 %v3056
      %3742 = vmatpush.bf16.xpose.msra.mxu0 %v3053
      %3743 = vmatpush.bf16.xpose.msra.mxu0 %v3050
      %3744 = vmatmul.bf16.gmra.mxu0 %v2447
      %v3745 = vpop.f32.mrf.mxu0
      %v3746 = vadd.f32 %v3733, %v3745
      %v3747 = vpop.f32.mrf.mxu0
      %3748 = vdwg.mxu0
      %vm3749 = vcmp.gt.f32.partialorder %v3096, 0.0
      %vm3750 = vcmp.gt.f32.partialorder %v3122, 0.0
      %vm3751 = vcmp.gt.f32.partialorder %v3148, 0.0
      %vm3752 = vcmp.gt.f32.partialorder %v3174, 0.0
      %vm3753 = vcmp.gt.f32.partialorder %v3200, 0.0
      %vm3754 = vcmp.gt.f32.partialorder %v3226, 0.0
      %vm3755 = vcmp.gt.f32.partialorder %v3252, 0.0
      %vm3756 = vcmp.gt.f32.partialorder %v3278, 0.0
      %vm3757 = vcmp.gt.f32.partialorder %v3304, 0.0
      %vm3758 = vcmp.gt.f32.partialorder %v3330, 0.0
      %vm3759 = vcmp.gt.f32.partialorder %v3356, 0.0
      %vm3760 = vcmp.gt.f32.partialorder %v3382, 0.0
      %vm3761 = vcmp.gt.f32.partialorder %v3408, 0.0
      %vm3762 = vcmp.gt.f32.partialorder %v3434, 0.0
      %vm3763 = vcmp.gt.f32.partialorder %v3460, 0.0
      %vm3764 = vcmp.gt.f32.partialorder %v3486, 0.0
      %vm3765 = vcmp.gt.f32.partialorder %v3512, 0.0
      %vm3766 = vcmp.gt.f32.partialorder %v3538, 0.0
      %vm3767 = vcmp.gt.f32.partialorder %v3564, 0.0
      %vm3768 = vcmp.gt.f32.partialorder %v3590, 0.0
      %vm3769 = vcmp.gt.f32.partialorder %v3616, 0.0
      %vm3770 = vcmp.gt.f32.partialorder %v3642, 0.0
      %vm3771 = vcmp.gt.f32.partialorder %v3668, 0.0
      %vm3772 = vcmp.gt.f32.partialorder %v3694, 0.0
      %vm3773 = vcmp.gt.f32.partialorder %v3720, 0.0
      %vm3774 = vcmp.gt.f32.partialorder %v3746, 0.0
      %v3775 = vmul.f32 %v3096, 0.2
      %v3776 = vmul.f32 %v3122, 0.2
      %v3777 = vmul.f32 %v3148, 0.2
      %v3778 = vmul.f32 %v3174, 0.2
      %v3779 = vmul.f32 %v3200, 0.2
      %v3780 = vmul.f32 %v3226, 0.2
      %v3781 = vmul.f32 %v3252, 0.2
      %v3782 = vmul.f32 %v3278, 0.2
      %v3783 = vmul.f32 %v3304, 0.2
      %v3784 = vmul.f32 %v3330, 0.2
      %v3785 = vmul.f32 %v3356, 0.2
      %v3786 = vmul.f32 %v3382, 0.2
      %v3787 = vmul.f32 %v3408, 0.2
      %v3788 = vmul.f32 %v3434, 0.2
      %v3789 = vmul.f32 %v3460, 0.2
      %v3790 = vmul.f32 %v3486, 0.2
      %v3791 = vmul.f32 %v3512, 0.2
      %v3792 = vmul.f32 %v3538, 0.2
      %v3793 = vmul.f32 %v3564, 0.2
      %v3794 = vmul.f32 %v3590, 0.2
      %v3795 = vmul.f32 %v3616, 0.2
      %v3796 = vmul.f32 %v3642, 0.2
      %v3797 = vmul.f32 %v3668, 0.2
      %v3798 = vmul.f32 %v3694, 0.2
      %v3799 = vmul.f32 %v3720, 0.2
      %v3800 = vmul.f32 %v3746, 0.2
      %v3801 = vsel %vm3749, %v3096, %v3775
      %v3802 = vsel %vm3750, %v3122, %v3776
      %v3803 = vsel %vm3751, %v3148, %v3777
      %v3804 = vsel %vm3752, %v3174, %v3778
      %v3805 = vsel %vm3753, %v3200, %v3779
      %v3806 = vsel %vm3754, %v3226, %v3780
      %v3807 = vsel %vm3755, %v3252, %v3781
      %v3808 = vsel %vm3756, %v3278, %v3782
      %v3809 = vsel %vm3757, %v3304, %v3783
      %v3810 = vsel %vm3758, %v3330, %v3784
      %v3811 = vsel %vm3759, %v3356, %v3785
      %v3812 = vsel %vm3760, %v3382, %v3786
      %v3813 = vsel %vm3761, %v3408, %v3787
      %v3814 = vsel %vm3762, %v3434, %v3788
      %v3815 = vsel %vm3763, %v3460, %v3789
      %v3816 = vsel %vm3764, %v3486, %v3790
      %v3817 = vsel %vm3765, %v3512, %v3791
      %v3818 = vsel %vm3766, %v3538, %v3792
      %v3819 = vsel %vm3767, %v3564, %v3793
      %v3820 = vsel %vm3768, %v3590, %v3794
      %v3821 = vsel %vm3769, %v3616, %v3795
      %v3822 = vsel %vm3770, %v3642, %v3796
      %v3823 = vsel %vm3771, %v3668, %v3797
      %v3824 = vsel %vm3772, %v3694, %v3798
      %v3825 = vsel %vm3773, %v3720, %v3799
      %v3826 = vsel %vm3774, %v3746, %v3800
      %3827 = vst [vmem:[%s148] sm:$0xff] %v3801
      %3828 = vst [vmem:[%s148 + $0x8] sm:$0xff] %v3802
      %3829 = vst [vmem:[%s148 + $0x10] sm:$0xff] %v3803
      %3830 = vst [vmem:[%s148 + $0x18] sm:$0xff] %v3804
      %3831 = vst [vmem:[%s148 + $0x20] sm:$0xff] %v3805
      %3832 = vst [vmem:[%s148 + $0x28] sm:$0xff] %v3806
      %3833 = vst [vmem:[%s148 + $0x30] sm:$0xff] %v3807
      %3834 = vst [vmem:[%s148 + $0x38] sm:$0xff] %v3808
      %3835 = vst [vmem:[%s148 + $0x40] sm:$0xff] %v3809
      %3836 = vst [vmem:[%s148 + $0x48] sm:$0xff] %v3810
      %3837 = vst [vmem:[%s148 + $0x50] sm:$0xff] %v3811
      %3838 = vst [vmem:[%s148 + $0x58] sm:$0xff] %v3812
      %3839 = vst [vmem:[%s148 + $0x60] sm:$0xff] %v3813
      %3840 = vst [vmem:[%s148 + $0x68] sm:$0xff] %v3814
      %3841 = vst [vmem:[%s148 + $0x70] sm:$0xff] %v3815
      %3842 = vst [vmem:[%s148 + $0x78] sm:$0xff] %v3816
      %3843 = vst [vmem:[%s148 + $0x80] sm:$0xff] %v3817
      %3844 = vst [vmem:[%s148 + $0x88] sm:$0xff] %v3818
      %3845 = vst [vmem:[%s148 + $0x90] sm:$0xff] %v3819
      %3846 = vst [vmem:[%s148 + $0x98] sm:$0xff] %v3820
      %3847 = vst [vmem:[%s148 + $0xa0] sm:$0xff] %v3821
      %3848 = vst [vmem:[%s148 + $0xa8] sm:$0xff] %v3822
      %3849 = vst [vmem:[%s148 + $0xb0] sm:$0xff] %v3823
      %3850 = vst [vmem:[%s148 + $0xb8] sm:$0xff] %v3824
      %3851 = vst [vmem:[%s148 + $0xc0] sm:$0xff] %v3825
      %3852 = vst [vmem:[%s148 + $0xc8] sm:$0xff] %v3826
      %s3853 = smul.u32 26, %s13
      %p3854 = scmp.lt.s32.totalorder %s3853, 51
      %s3855 = scalar_select %p3854, %s3853, 51
      %s3856 = smul.addr %s3855, 8
      %s3857 = scalar_lea.vmem %s2, %s3856
      // Predicated region
      $region29: #{patch_video_discriminator_forward.4} parent=27 // pred_check
        %p3858 = pneg %p78
      $region30: #{patch_video_discriminator_forward.4} parent=27 // pred_check_branch
        %3860 = sbr.rel (%p3858) target = $region32
      $region31: #{patch_video_discriminator_forward.4} parent=27 // pred_region
        %s3861 = smul.u32 26, %s13
      $region32: #{patch_video_discriminator_forward.4} parent=27 // pred_fallthru
        _
    $region28: #{patch_video_discriminator_forward.4} parent=5 // pred_fallthru
      _
    %p3862 = scmp.le.s32.totalorder 2, %s8
    // Predicated region
    $region33: #{patch_video_discriminator_forward.4} parent=5 // pred_check
      %p3863 = pneg %p3862
    $region34: #{patch_video_discriminator_forward.4} parent=5 // pred_check_branch
      %3865 = sbr.rel (%p3863) target = $region36
    $region35: #{patch_video_discriminator_forward.4} parent=5 // pred_region
      %s3866 = ssub.s32 %s8, 2
      // Predicated region
      $region37: #{patch_video_discriminator_forward.4} parent=35 // pred_check
        %p3867 = pneg %p84
      $region38: #{patch_video_discriminator_forward.4} parent=35 // pred_check_branch
        %3869 = sbr.rel (%p3867) target = $region40
      $region39: #{patch_video_discriminator_forward.4} parent=35 // pred_region
        %s3870 = smul.u32 26, %s14
        %p3871 = scmp.lt.s32.totalorder %s3870, 51
        %s3872 = scalar_select %p3871, %s3870, 51
        %s3873 = smul.addr %s3872, 8
        %s3874 = scalar_lea.vmem %s2, %s3873
      $region40: #{patch_video_discriminator_forward.4} parent=35 // pred_fallthru
        _
    $region36: #{patch_video_discriminator_forward.4} parent=5 // pred_fallthru
      _
  $region6: #{patch_video_discriminator_forward.4} parent=0 // loop_footer
    %s12 = sadd.s32 1, %s8
  $region7: #{patch_video_discriminator_forward.4} parent=0 // loop_footer_branch
    %7 = sbr.rel target = $region3
  $region8: #{patch_video_discriminator_forward.4} parent=0 // loop_exit
    _

// kernel: patch_video_discriminator_forward.5
$region0: #{patch_video_discriminator_forward.5}
  #allocation0 [shape = 'u32[]', space=smem, size = 0x4, offset = 0x4, fixed_abs, tag = 'smem constant byte address 0x4 - core index']
  #allocation1 [shape = 'u32[72,128]{1,0:T(1,128)}', space=vmem, size = 0x9000, scoped, tag = 'internal scratch']
  %s0 = inlined_call_operand.vmem [shape: bf16[1280,512], index: 0, kind: input, shape index: {}]
  %s1 = inlined_call_operand.vmem [shape: bf16[16,512], index: 1, kind: input, shape index: {}]
  %s2 = inlined_call_operand.vmem [shape: f32[16,1280], index: 2, kind: output, shape index: {}]
  %s3 = sld [smem:[#allocation0]]
  $region60: #{patch_video_discriminator_forward.5} parent=0
    _
  %s5 = ssub.s32 1, %s3
  %s6 = scalar_select 0, %s5, %s3
  $region1: #{patch_video_discriminator_forward.5} parent=0
    #allocation2 [shape = 'u8[81920]{0}', space=vmem, size = 0x14000, scoped, tag = 'output window, operand 0']
    loop: start=0, step=1, limit=4
    $region2: #{patch_video_discriminator_forward.5} parent=1 // loop_pre_header
      _
    $region3: #{patch_video_discriminator_forward.5} parent=1 // loop_header
      %s8 = sphi 0, %s12
      %p9 = scmp.ge.s32.totalorder %s8, 4
      %s18 = sphi 0, %s20
      %s21 = sphi 0, %s18
      %s22 = sphi 0, %s21
      %s38 = sphi 0, %s22
      %s42 = sphi 0, %s42
      %s44 = sphi 0, %s42
      %s45 = sphi 0, %s44
      %s59 = sphi 0, %s45
      %s65 = sphi 0, %s67
      %s68 = sphi 0, %s65
      %s69 = sphi 0, %s68
      %s85 = sphi 0, %s69
    $region4: #{patch_video_discriminator_forward.5} parent=1 // loop_header_branch
      %11 = sbr.rel (%p9) target = $region8
    $region5: #{patch_video_discriminator_forward.5} parent=1 // loop_body
      %s13 = ssub.s32 %s8, 1
      %s14 = ssub.s32 %s8, 2
      %s15 = sadd.s32 %s8, 1
      %s16 = ssub.s32 %s8, %s15
      %p17 = scmp.eq.s32.totalorder %s16, 0
      %s19 = sadd.s32 %s18, 1
      %s20 = scalar_select %p17, %s18, %s19
      %p23 = pneg %p17
      %p24 = scmp.eq.s32.totalorder %s8, 1
      %p25 = por %p23, %p24
      %p26 = scmp.ne.s32.totalorder %s18, %s21
      %p27 = scmp.eq.s32.totalorder %s8, 0
      %p28 = por %p26, %p27
      %p29 = scmp.ne.s32.totalorder %s18, %s21
      %p30 = scmp.eq.s32.totalorder %s13, 1
      %p31 = por %p29, %p30
      %p32 = scmp.ne.s32.totalorder %s21, %s22
      %p33 = scmp.eq.s32.totalorder %s13, 0
      %p34 = por %p32, %p33
      %p35 = scmp.ne.s32.totalorder %s21, %s22
      %p36 = scmp.eq.s32.totalorder %s14, 1
      %p37 = por %p35, %p36
      %p39 = scmp.ne.s32.totalorder %s22, %s38
      %p40 = scmp.eq.s32.totalorder %s14, 0
      %p41 = por %p39, %p40
      %s43 = sadd.s32 %s42, 1
      %p46 = scmp.eq.s32.totalorder %s8, 1
      %p47 = scmp.ne.s32.totalorder %s42, %s44
      %p48 = scmp.eq.s32.totalorder %s8, 0
      %p49 = por %p47, %p48
      %p50 = scmp.ne.s32.totalorder %s42, %s44
      %p51 = scmp.eq.s32.totalorder %s13, 1
      %p52 = por %p50, %p51
      %p53 = scmp.ne.s32.totalorder %s44, %s45
      %p54 = scmp.eq.s32.totalorder %s13, 0
      %p55 = por %p53, %p54
      %p56 = scmp.ne.s32.totalorder %s44, %s45
      %p57 = scmp.eq.s32.totalorder %s14, 1
      %p58 = por %p56, %p57
      %p60 = scmp.ne.s32.totalorder %s45, %s59
      %p61 = scmp.eq.s32.totalorder %s14, 0
      %p62 = por %p60, %p61
      %s63 = ssub.s32 %s8, %s15
      %p64 = scmp.eq.s32.totalorder %s63, 0
      %s66 = sadd.s32 %s65, 1
      %s67 = scalar_select %p64, %s65, %s66
      %p70 = pneg %p64
      %p71 = scmp.eq.s32.totalorder %s8, 1
      %p72 = por %p70, %p71
      %p73 = scmp.ne.s32.totalorder %s65, %s68
      %p74 = scmp.eq.s32.totalorder %s8, 0
      %p75 = por %p73, %p74
      %p76 = scmp.ne.s32.totalorder %s65, %s68
      %p77 = scmp.eq.s32.totalorder %s13, 1
      %p78 = por %p76, %p77
      %p79 = scmp.ne.s32.totalorder %s68, %s69
      %p80 = scmp.eq.s32.totalorder %s13, 0
      %p81 = por %p79, %p80
      %p82 = scmp.ne.s32.totalorder %s68, %s69
      %p83 = scmp.eq.s32.totalorder %s14, 1
      %p84 = por %p82, %p83
      %p86 = scmp.ne.s32.totalorder %s69, %s85
      %p87 = scmp.eq.s32.totalorder %s14, 0
      %p88 = por %p86, %p87
      %p89 = scmp.le.s32.totalorder 1, %s8
      %p90 = scmp.lt.s32.totalorder %s8, 3
      %p91 = pnand %p89, %p90
      %p92 = pneg %p91
      // Predicated region
      $region9: #{patch_video_discriminator_forward.5} parent=5 // pred_check
        _
      $region10: #{patch_video_discriminator_forward.5} parent=5 // pred_check_branch
        %94 = sbr.rel (%p91) target = $region12
      $region11: #{patch_video_discriminator_forward.5} parent=5 // pred_region
        %s95 = ssub.s32 %s8, 1
        // Predicated region
        $region13: #{patch_video_discriminator_forward.5} parent=11 // pred_check
          %p96 = pneg %p55
        $region14: #{patch_video_discriminator_forward.5} parent=11 // pred_check_branch
          %98 = sbr.rel (%p96) target = $region16
        $region15: #{patch_video_discriminator_forward.5} parent=11 // pred_region
          _
        $region16: #{patch_video_discriminator_forward.5} parent=11 // pred_fallthru
          _
      $region12: #{patch_video_discriminator_forward.5} parent=5 // pred_fallthru
        _
      %p99 = scmp.lt.s32.totalorder %s8, 2
      // Predicated region
      $region17: #{patch_video_discriminator_forward.5} parent=5 // pred_check
        %p100 = pneg %p99
      $region18: #{patch_video_discriminator_forward.5} parent=5 // pred_check_branch
        %102 = sbr.rel (%p100) target = $region20
      $region19: #{patch_video_discriminator_forward.5} parent=5 // pred_region
        // Predicated region
        $region21: #{patch_video_discriminator_forward.5} parent=19 // pred_check
          %p103 = pneg %p28
        $region22: #{patch_video_discriminator_forward.5} parent=19 // pred_check_branch
          %105 = sbr.rel (%p103) target = $region24
        $region23: #{patch_video_discriminator_forward.5} parent=19 // pred_region
          %s106 = smul.u32 80, %s8
          %p107 = scmp.lt.s32.totalorder %s106, 159
          %s108 = scalar_select %p107, %s106, 159
          %s109 = smul.addr %s108, 4
          %s110 = smul.addr %s109, 4
          %s111 = scalar_lea.vmem %s0, %s110
          %s112 = smul.u32 80, %s8
        $region24: #{patch_video_discriminator_forward.5} parent=19 // pred_fallthru
          _
      $region20: #{patch_video_discriminator_forward.5} parent=5 // pred_fallthru
        _
      %p113 = scmp.le.s32.totalorder 1, %s8
      %p114 = scmp.lt.s32.totalorder %s8, 3
      %p115 = pnand %p113, %p114
      %p116 = pneg %p115
      // Predicated region
      $region25: #{patch_video_discriminator_forward.5} parent=5 // pred_check
        _
      $region26: #{patch_video_discriminator_forward.5} parent=5 // pred_check_branch
        %118 = sbr.rel (%p115) target = $region28
      $region27: #{patch_video_discriminator_forward.5} parent=5 // pred_region
        %s119 = ssub.s32 %s8, 1
        %s120 = smul.u32 80, %s13
        %p121 = scmp.lt.s32.totalorder %s120, 159
        %s122 = scalar_select %p121, %s120, 159
        %s123 = smul.addr %s122, 4
        %s124 = smul.addr %s123, 4
        %s125 = scalar_lea.vmem %s0, %s124
        %p126 = pneg %p34
        %p127 = pneg %p31
        %p128 = pneg %p55
        %p129 = pneg %p52
        %p130 = pneg %p81
        %p131 = pneg %p78
        %s132 = sand.u32 %s68, 1
        %s133 = sand.u32 %s68, 1
        %s134 = smul.addr %s133, 80
        %s135 = scalar_lea.vmem [#allocation2], %s134
        %s136 = smul.u32 80, %s13
        %p137 = scmp.lt.s32.totalorder %s136, 159
        %s138 = scalar_select %p137, %s136, 159
        %s139 = smul.addr %s138, 4
        %s140 = smul.addr %s139, 4
        %s141 = scalar_lea.vmem %s0, %s140
        %s142 = smul.u32 80, %s13
        %s143 = smul.u32 5, %s13
        %v144 = vld [vmem:[%s1] sm:$0xff]
        %v145 = vld [vmem:[%s1 + $0x8] sm:$0xff]
        %v146 = vld [vmem:[%s1 + $0x10] sm:$0xff]
        %v147 = vld [vmem:[%s1 + $0x18] sm:$0xff]
        %v148 = vld [vmem:[%s141] sm:$0xff]
        %v149 = vld [vmem:[%s141 + $0x8] sm:$0xff]
        %v150 = vld [vmem:[%s141 + $0x10] sm:$0xff]
        %v151 = vld [vmem:[%s141 + $0x18] sm:$0xff]
        %v152 = vld [vmem:[%s141 + $0x20] sm:$0xff]
        %v153 = vld [vmem:[%s141 + $0x28] sm:$0xff]
        %v154 = vld [vmem:[%s141 + $0x30] sm:$0xff]
        %v155 = vld [vmem:[%s141 + $0x38] sm:$0xff]
        %v156 = vld [vmem:[%s141 + $0x40] sm:$0xff]
        %v157 = vld [vmem:[%s141 + $0x48] sm:$0xff]
        %v158 = vld [vmem:[%s141 + $0x50] sm:$0xff]
        %v159 = vld [vmem:[%s141 + $0x58] sm:$0xff]
        %v160 = vld [vmem:[%s141 + $0x60] sm:$0xff]
        %v161 = vld [vmem:[%s141 + $0x68] sm:$0xff]
        %v162 = vld [vmem:[%s141 + $0x70] sm:$0xff]
        %v163 = vld [vmem:[%s141 + $0x78] sm:$0xff]
        %v164 = vld [vmem:[%s141 + $0x80] sm:$0xff]
        %v165 = vld [vmem:[%s141 + $0x88] sm:$0xff]
        %v166 = vld [vmem:[%s141 + $0x90] sm:$0xff]
        %v167 = vld [vmem:[%s141 + $0x98] sm:$0xff]
        %v168 = vld [vmem:[%s141 + $0xa0] sm:$0xff]
        %v169 = vld [vmem:[%s141 + $0xa8] sm:$0xff]
        %v170 = vld [vmem:[%s141 + $0xb0] sm:$0xff]
        %v171 = vld [vmem:[%s141 + $0xb8] sm:$0xff]
        %v172 = vld [vmem:[%s141 + $0xc0] sm:$0xff]
        %v173 = vld [vmem:[%s141 + $0xc8] sm:$0xff]
        %v174 = vld [vmem:[%s141 + $0xd0] sm:$0xff]
        %v175 = vld [vmem:[%s141 + $0xd8] sm:$0xff]
        %v176 = vld [vmem:[%s141 + $0xe0] sm:$0xff]
        %v177 = vld [vmem:[%s141 + $0xe8] sm:$0xff]
        %v178 = vld [vmem:[%s141 + $0xf0] sm:$0xff]
        %v179 = vld [vmem:[%s141 + $0xf8] sm:$0xff]
        %v180 = vld [vmem:[%s141 + $0x100] sm:$0xff]
        %v181 = vld [vmem:[%s141 + $0x108] sm:$0xff]
        %v182 = vld [vmem:[%s141 + $0x110] sm:$0xff]
        %v183 = vld [vmem:[%s141 + $0x118] sm:$0xff]
        %v184 = vld [vmem:[%s141 + $0x120] sm:$0xff]
        %v185 = vld [vmem:[%s141 + $0x128] sm:$0xff]
        %v186 = vld [vmem:[%s141 + $0x130] sm:$0xff]
        %v187 = vld [vmem:[%s141 + $0x138] sm:$0xff]
        %v188 = vld [vmem:[%s141 + $0x140] sm:$0xff]
        %v189 = vld [vmem:[%s141 + $0x148] sm:$0xff]
        %v190 = vld [vmem:[%s141 + $0x150] sm:$0xff]
        %v191 = vld [vmem:[%s141 + $0x158] sm:$0xff]
        %v192 = vld [vmem:[%s141 + $0x160] sm:$0xff]
        %v193 = vld [vmem:[%s141 + $0x168] sm:$0xff]
        %v194 = vld [vmem:[%s141 + $0x170] sm:$0xff]
        %v195 = vld [vmem:[%s141 + $0x178] sm:$0xff]
        %v196 = vld [vmem:[%s141 + $0x180] sm:$0xff]
        %v197 = vld [vmem:[%s141 + $0x188] sm:$0xff]
        %v198 = vld [vmem:[%s141 + $0x190] sm:$0xff]
        %v199 = vld [vmem:[%s141 + $0x198] sm:$0xff]
        %v200 = vld [vmem:[%s141 + $0x1a0] sm:$0xff]
        %v201 = vld [vmem:[%s141 + $0x1a8] sm:$0xff]
        %v202 = vld [vmem:[%s141 + $0x1b0] sm:$0xff]
        %v203 = vld [vmem:[%s141 + $0x1b8] sm:$0xff]
        %v204 = vld [vmem:[%s141 + $0x1c0] sm:$0xff]
        %v205 = vld [vmem:[%s141 + $0x1c8] sm:$0xff]
        %v206 = vld [vmem:[%s141 + $0x1d0] sm:$0xff]
        %v207 = vld [vmem:[%s141 + $0x1d8] sm:$0xff]
        %v208 = vld [vmem:[%s141 + $0x1e0] sm:$0xff]
        %v209 = vld [vmem:[%s141 + $0x1e8] sm:$0xff]
        %v210 = vld [vmem:[%s141 + $0x1f0] sm:$0xff]
        %v211 = vld [vmem:[%s141 + $0x1f8] sm:$0xff]
        %v212 = vld [vmem:[%s141 + $0x200] sm:$0xff]
        %v213 = vld [vmem:[%s141 + $0x208] sm:$0xff]
        %v214 = vld [vmem:[%s141 + $0x210] sm:$0xff]
        %v215 = vld [vmem:[%s141 + $0x218] sm:$0xff]
        %v216 = vld [vmem:[%s141 + $0x220] sm:$0xff]
        %v217 = vld [vmem:[%s141 + $0x228] sm:$0xff]
        %v218 = vld [vmem:[%s141 + $0x230] sm:$0xff]
        %v219 = vld [vmem:[%s141 + $0x238] sm:$0xff]
        %v220 = vld [vmem:[%s141 + $0x240] sm:$0xff]
        %v221 = vld [vmem:[%s141 + $0x248] sm:$0xff]
        %v222 = vld [vmem:[%s141 + $0x250] sm:$0xff]
        %v223 = vld [vmem:[%s141 + $0x258] sm:$0xff]
        %v224 = vld [vmem:[%s141 + $0x260] sm:$0xff]
        %v225 = vld [vmem:[%s141 + $0x268] sm:$0xff]
        %v226 = vld [vmem:[%s141 + $0x270] sm:$0xff]
        %v227 = vld [vmem:[%s141 + $0x278] sm:$0xff]
        %v228 = vld [vmem:[%s141 + $0x280] sm:$0xff]
        %v229 = vld [vmem:[%s141 + $0x288] sm:$0xff]
        %v230 = vld [vmem:[%s141 + $0x290] sm:$0xff]
        %v231 = vld [vmem:[%s141 + $0x298] sm:$0xff]
        %v232 = vld [vmem:[%s141 + $0x2a0] sm:$0xff]
        %v233 = vld [vmem:[%s141 + $0x2a8] sm:$0xff]
        %v234 = vld [vmem:[%s141 + $0x2b0] sm:$0xff]
        %v235 = vld [vmem:[%s141 + $0x2b8] sm:$0xff]
        %v236 = vld [vmem:[%s141 + $0x2c0] sm:$0xff]
        %v237 = vld [vmem:[%s141 + $0x2c8] sm:$0xff]
        %v238 = vld [vmem:[%s141 + $0x2d0] sm:$0xff]
        %v239 = vld [vmem:[%s141 + $0x2d8] sm:$0xff]
        %v240 = vld [vmem:[%s141 + $0x2e0] sm:$0xff]
        %v241 = vld [vmem:[%s141 + $0x2e8] sm:$0xff]
        %v242 = vld [vmem:[%s141 + $0x2f0] sm:$0xff]
        %v243 = vld [vmem:[%s141 + $0x2f8] sm:$0xff]
        %v244 = vld [vmem:[%s141 + $0x300] sm:$0xff]
        %v245 = vld [vmem:[%s141 + $0x308] sm:$0xff]
        %v246 = vld [vmem:[%s141 + $0x310] sm:$0xff]
        %v247 = vld [vmem:[%s141 + $0x318] sm:$0xff]
        %v248 = vld [vmem:[%s141 + $0x320] sm:$0xff]
        %v249 = vld [vmem:[%s141 + $0x328] sm:$0xff]
        %v250 = vld [vmem:[%s141 + $0x330] sm:$0xff]
        %v251 = vld [vmem:[%s141 + $0x338] sm:$0xff]
        %v252 = vld [vmem:[%s141 + $0x340] sm:$0xff]
        %v253 = vld [vmem:[%s141 + $0x348] sm:$0xff]
        %v254 = vld [vmem:[%s141 + $0x350] sm:$0xff]
        %v255 = vld [vmem:[%s141 + $0x358] sm:$0xff]
        %v256 = vld [vmem:[%s141 + $0x360] sm:$0xff]
        %v257 = vld [vmem:[%s141 + $0x368] sm:$0xff]
        %v258 = vld [vmem:[%s141 + $0x370] sm:$0xff]
        %v259 = vld [vmem:[%s141 + $0x378] sm:$0xff]
        %v260 = vld [vmem:[%s141 + $0x380] sm:$0xff]
        %v261 = vld [vmem:[%s141 + $0x388] sm:$0xff]
        %v262 = vld [vmem:[%s141 + $0x390] sm:$0xff]
        %v263 = vld [vmem:[%s141 + $0x398] sm:$0xff]
        %v264 = vld [vmem:[%s141 + $0x3a0] sm:$0xff]
        %v265 = vld [vmem:[%s141 + $0x3a8] sm:$0xff]
        %v266 = vld [vmem:[%s141 + $0x3b0] sm:$0xff]
        %v267 = vld [vmem:[%s141 + $0x3b8] sm:$0xff]
        %v268 = vld [vmem:[%s141 + $0x3c0] sm:$0xff]
        %v269 = vld [vmem:[%s141 + $0x3c8] sm:$0xff]
        %v270 = vld [vmem:[%s141 + $0x3d0] sm:$0xff]
        %v271 = vld [vmem:[%s141 + $0x3d8] sm:$0xff]
        %v272 = vld [vmem:[%s141 + $0x3e0] sm:$0xff]
        %v273 = vld [vmem:[%s141 + $0x3e8] sm:$0xff]
        %v274 = vld [vmem:[%s141 + $0x3f0] sm:$0xff]
        %v275 = vld [vmem:[%s141 + $0x3f8] sm:$0xff]
        %v276 = vld [vmem:[%s141 + $0x400] sm:$0xff]
        %v277 = vld [vmem:[%s141 + $0x408] sm:$0xff]
        %v278 = vld [vmem:[%s141 + $0x410] sm:$0xff]
        %v279 = vld [vmem:[%s141 + $0x418] sm:$0xff]
        %v280 = vld [vmem:[%s141 + $0x420] sm:$0xff]
        %v281 = vld [vmem:[%s141 + $0x428] sm:$0xff]
        %v282 = vld [vmem:[%s141 + $0x430] sm:$0xff]
        %v283 = vld [vmem:[%s141 + $0x438] sm:$0xff]
        %v284 = vld [vmem:[%s141 + $0x440] sm:$0xff]
        %v285 = vld [vmem:[%s141 + $0x448] sm:$0xff]
        %v286 = vld [vmem:[%s141 + $0x450] sm:$0xff]
        %v287 = vld [vmem:[%s141 + $0x458] sm:$0xff]
        %v288 = vld [vmem:[%s141 + $0x460] sm:$0xff]
        %v289 = vld [vmem:[%s141 + $0x468] sm:$0xff]
        %v290 = vld [vmem:[%s141 + $0x470] sm:$0xff]
        %v291 = vld [vmem:[%s141 + $0x478] sm:$0xff]
        %v292 = vld [vmem:[%s141 + $0x480] sm:$0xff]
        %v293 = vld [vmem:[%s141 + $0x488] sm:$0xff]
        %v294 = vld [vmem:[%s141 + $0x490] sm:$0xff]
        %v295 = vld [vmem:[%s141 + $0x498] sm:$0xff]
        %v296 = vld [vmem:[%s141 + $0x4a0] sm:$0xff]
        %v297 = vld [vmem:[%s141 + $0x4a8] sm:$0xff]
        %v298 = vld [vmem:[%s141 + $0x4b0] sm:$0xff]
        %v299 = vld [vmem:[%s141 + $0x4b8] sm:$0xff]
        %v300 = vld [vmem:[%s141 + $0x4c0] sm:$0xff]
        %v301 = vld [vmem:[%s141 + $0x4c8] sm:$0xff]
        %v302 = vld [vmem:[%s141 + $0x4d0] sm:$0xff]
        %v303 = vld [vmem:[%s141 + $0x4d8] sm:$0xff]
        %v304 = vld [vmem:[%s141 + $0x4e0] sm:$0xff]
        %v305 = vld [vmem:[%s141 + $0x4e8] sm:$0xff]
        %v306 = vld [vmem:[%s141 + $0x4f0] sm:$0xff]
        %v307 = vld [vmem:[%s141 + $0x4f8] sm:$0xff]
        %v312 = vunpack.c.l.b16 %v144
        %v313 = vunpack.c.h.b16 %v144
        %v314 = vunpack.c.l.b16 %v145
        %v315 = vunpack.c.h.b16 %v145
        %v316 = vunpack.c.l.b16 %v146
        %v317 = vunpack.c.h.b16 %v146
        %v318 = vunpack.c.l.b16 %v147
        %v319 = vunpack.c.h.b16 %v147
        %v320 = vpack.c.b16 %v316, %v312
        %v321 = vpack.c.b16 %v317, %v313
        %v322 = vpack.c.b16 %v318, %v314
        %v323 = vpack.c.b16 %v319, %v315
        %v488 = vunpack.c.l.b16 %v148
        %v489 = vunpack.c.h.b16 %v148
        %v490 = vunpack.c.l.b16 %v149
        %v491 = vunpack.c.h.b16 %v149
        %v492 = vunpack.c.l.b16 %v150
        %v493 = vunpack.c.h.b16 %v150
        %v494 = vunpack.c.l.b16 %v151
        %v495 = vunpack.c.h.b16 %v151
        %v496 = vunpack.c.l.b16 %v152
        %v497 = vunpack.c.h.b16 %v152
        %v498 = vunpack.c.l.b16 %v153
        %v499 = vunpack.c.h.b16 %v153
        %v500 = vunpack.c.l.b16 %v154
        %v501 = vunpack.c.h.b16 %v154
        %v502 = vunpack.c.l.b16 %v155
        %v503 = vunpack.c.h.b16 %v155
        %v504 = vunpack.c.l.b16 %v156
        %v505 = vunpack.c.h.b16 %v156
        %v506 = vunpack.c.l.b16 %v157
        %v507 = vunpack.c.h.b16 %v157
        %v508 = vunpack.c.l.b16 %v158
        %v509 = vunpack.c.h.b16 %v158
        %v510 = vunpack.c.l.b16 %v159
        %v511 = vunpack.c.h.b16 %v159
        %v512 = vunpack.c.l.b16 %v160
        %v513 = vunpack.c.h.b16 %v160
        %v514 = vunpack.c.l.b16 %v161
        %v515 = vunpack.c.h.b16 %v161
        %v516 = vunpack.c.l.b16 %v162
        %v517 = vunpack.c.h.b16 %v162
        %v518 = vunpack.c.l.b16 %v163
        %v519 = vunpack.c.h.b16 %v163
        %v520 = vunpack.c.l.b16 %v164
        %v521 = vunpack.c.h.b16 %v164
        %v522 = vunpack.c.l.b16 %v165
        %v523 = vunpack.c.h.b16 %v165
        %v524 = vunpack.c.l.b16 %v166
        %v525 = vunpack.c.h.b16 %v166
        %v526 = vunpack.c.l.b16 %v167
        %v527 = vunpack.c.h.b16 %v167
        %v528 = vunpack.c.l.b16 %v168
        %v529 = vunpack.c.h.b16 %v168
        %v530 = vunpack.c.l.b16 %v169
        %v531 = vunpack.c.h.b16 %v169
        %v532 = vunpack.c.l.b16 %v170
        %v533 = vunpack.c.h.b16 %v170
        %v534 = vunpack.c.l.b16 %v171
        %v535 = vunpack.c.h.b16 %v171
        %v536 = vunpack.c.l.b16 %v172
        %v537 = vunpack.c.h.b16 %v172
        %v538 = vunpack.c.l.b16 %v173
        %v539 = vunpack.c.h.b16 %v173
        %v540 = vunpack.c.l.b16 %v174
        %v541 = vunpack.c.h.b16 %v174
        %v542 = vunpack.c.l.b16 %v175
        %v543 = vunpack.c.h.b16 %v175
        %v544 = vunpack.c.l.b16 %v176
        %v545 = vunpack.c.h.b16 %v176
        %v546 = vunpack.c.l.b16 %v177
        %v547 = vunpack.c.h.b16 %v177
        %v548 = vunpack.c.l.b16 %v178
        %v549 = vunpack.c.h.b16 %v178
        %v550 = vunpack.c.l.b16 %v179
        %v551 = vunpack.c.h.b16 %v179
        %v552 = vunpack.c.l.b16 %v180
        %v553 = vunpack.c.h.b16 %v180
        %v554 = vunpack.c.l.b16 %v181
        %v555 = vunpack.c.h.b16 %v181
        %v556 = vunpack.c.l.b16 %v182
        %v557 = vunpack.c.h.b16 %v182
        %v558 = vunpack.c.l.b16 %v183
        %v559 = vunpack.c.h.b16 %v183
        %v560 = vunpack.c.l.b16 %v184
        %v561 = vunpack.c.h.b16 %v184
        %v562 = vunpack.c.l.b16 %v185
        %v563 = vunpack.c.h.b16 %v185
        %v564 = vunpack.c.l.b16 %v186
        %v565 = vunpack.c.h.b16 %v186
        %v566 = vunpack.c.l.b16 %v187
        %v567 = vunpack.c.h.b16 %v187
        %v568 = vunpack.c.l.b16 %v188
        %v569 = vunpack.c.h.b16 %v188
        %v570 = vunpack.c.l.b16 %v189
        %v571 = vunpack.c.h.b16 %v189
        %v572 = vunpack.c.l.b16 %v190
        %v573 = vunpack.c.h.b16 %v190
        %v574 = vunpack.c.l.b16 %v191
        %v575 = vunpack.c.h.b16 %v191
        %v576 = vunpack.c.l.b16 %v192
        %v577 = vunpack.c.h.b16 %v192
        %v578 = vunpack.c.l.b16 %v193
        %v579 = vunpack.c.h.b16 %v193
        %v580 = vunpack.c.l.b16 %v194
        %v581 = vunpack.c.h.b16 %v194
        %v582 = vunpack.c.l.b16 %v195
        %v583 = vunpack.c.h.b16 %v195
        %v584 = vunpack.c.l.b16 %v196
        %v585 = vunpack.c.h.b16 %v196
        %v586 = vunpack.c.l.b16 %v197
        %v587 = vunpack.c.h.b16 %v197
        %v588 = vunpack.c.l.b16 %v198
        %v589 = vunpack.c.h.b16 %v198
        %v590 = vunpack.c.l.b16 %v199
        %v591 = vunpack.c.h.b16 %v199
        %v592 = vunpack.c.l.b16 %v200
        %v593 = vunpack.c.h.b16 %v200
        %v594 = vunpack.c.l.b16 %v201
        %v595 = vunpack.c.h.b16 %v201
        %v596 = vunpack.c.l.b16 %v202
        %v597 = vunpack.c.h.b16 %v202
        %v598 = vunpack.c.l.b16 %v203
        %v599 = vunpack.c.h.b16 %v203
        %v600 = vunpack.c.l.b16 %v204
        %v601 = vunpack.c.h.b16 %v204
        %v602 = vunpack.c.l.b16 %v205
        %v603 = vunpack.c.h.b16 %v205
        %v604 = vunpack.c.l.b16 %v206
        %v605 = vunpack.c.h.b16 %v206
        %v606 = vunpack.c.l.b16 %v207
        %v607 = vunpack.c.h.b16 %v207
        %v608 = vunpack.c.l.b16 %v208
        %v609 = vunpack.c.h.b16 %v208
        %v610 = vunpack.c.l.b16 %v209
        %v611 = vunpack.c.h.b16 %v209
        %v612 = vunpack.c.l.b16 %v210
        %v613 = vunpack.c.h.b16 %v210
        %v614 = vunpack.c.l.b16 %v211
        %v615 = vunpack.c.h.b16 %v211
        %v616 = vunpack.c.l.b16 %v212
        %v617 = vunpack.c.h.b16 %v212
        %v618 = vunpack.c.l.b16 %v213
        %v619 = vunpack.c.h.b16 %v213
        %v620 = vunpack.c.l.b16 %v214
        %v621 = vunpack.c.h.b16 %v214
        %v622 = vunpack.c.l.b16 %v215
        %v623 = vunpack.c.h.b16 %v215
        %v624 = vunpack.c.l.b16 %v216
        %v625 = vunpack.c.h.b16 %v216
        %v626 = vunpack.c.l.b16 %v217
        %v627 = vunpack.c.h.b16 %v217
        %v628 = vunpack.c.l.b16 %v218
        %v629 = vunpack.c.h.b16 %v218
        %v630 = vunpack.c.l.b16 %v219
        %v631 = vunpack.c.h.b16 %v219
        %v632 = vunpack.c.l.b16 %v220
        %v633 = vunpack.c.h.b16 %v220
        %v634 = vunpack.c.l.b16 %v221
        %v635 = vunpack.c.h.b16 %v221
        %v636 = vunpack.c.l.b16 %v222
        %v637 = vunpack.c.h.b16 %v222
        %v638 = vunpack.c.l.b16 %v223
        %v639 = vunpack.c.h.b16 %v223
        %v640 = vunpack.c.l.b16 %v224
        %v641 = vunpack.c.h.b16 %v224
        %v642 = vunpack.c.l.b16 %v225
        %v643 = vunpack.c.h.b16 %v225
        %v644 = vunpack.c.l.b16 %v226
        %v645 = vunpack.c.h.b16 %v226
        %v646 = vunpack.c.l.b16 %v227
        %v647 = vunpack.c.h.b16 %v227
        %v648 = vunpack.c.l.b16 %v228
        %v649 = vunpack.c.h.b16 %v228
        %v650 = vunpack.c.l.b16 %v229
        %v651 = vunpack.c.h.b16 %v229
        %v652 = vunpack.c.l.b16 %v230
        %v653 = vunpack.c.h.b16 %v230
        %v654 = vunpack.c.l.b16 %v231
        %v655 = vunpack.c.h.b16 %v231
        %v656 = vunpack.c.l.b16 %v232
        %v657 = vunpack.c.h.b16 %v232
        %v658 = vunpack.c.l.b16 %v233
        %v659 = vunpack.c.h.b16 %v233
        %v660 = vunpack.c.l.b16 %v234
        %v661 = vunpack.c.h.b16 %v234
        %v662 = vunpack.c.l.b16 %v235
        %v663 = vunpack.c.h.b16 %v235
        %v664 = vunpack.c.l.b16 %v236
        %v665 = vunpack.c.h.b16 %v236
        %v666 = vunpack.c.l.b16 %v237
        %v667 = vunpack.c.h.b16 %v237
        %v668 = vunpack.c.l.b16 %v238
        %v669 = vunpack.c.h.b16 %v238
        %v670 = vunpack.c.l.b16 %v239
        %v671 = vunpack.c.h.b16 %v239
        %v672 = vunpack.c.l.b16 %v240
        %v673 = vunpack.c.h.b16 %v240
        %v674 = vunpack.c.l.b16 %v241
        %v675 = vunpack.c.h.b16 %v241
        %v676 = vunpack.c.l.b16 %v242
        %v677 = vunpack.c.h.b16 %v242
        %v678 = vunpack.c.l.b16 %v243
        %v679 = vunpack.c.h.b16 %v243
        %v680 = vunpack.c.l.b16 %v244
        %v681 = vunpack.c.h.b16 %v244
        %v682 = vunpack.c.l.b16 %v245
        %v683 = vunpack.c.h.b16 %v245
        %v684 = vunpack.c.l.b16 %v246
        %v685 = vunpack.c.h.b16 %v246
        %v686 = vunpack.c.l.b16 %v247
        %v687 = vunpack.c.h.b16 %v247
        %v688 = vunpack.c.l.b16 %v248
        %v689 = vunpack.c.h.b16 %v248
        %v690 = vunpack.c.l.b16 %v249
        %v691 = vunpack.c.h.b16 %v249
        %v692 = vunpack.c.l.b16 %v250
        %v693 = vunpack.c.h.b16 %v250
        %v694 = vunpack.c.l.b16 %v251
        %v695 = vunpack.c.h.b16 %v251
        %v696 = vunpack.c.l.b16 %v252
        %v697 = vunpack.c.h.b16 %v252
        %v698 = vunpack.c.l.b16 %v253
        %v699 = vunpack.c.h.b16 %v253
        %v700 = vunpack.c.l.b16 %v254
        %v701 = vunpack.c.h.b16 %v254
        %v702 = vunpack.c.l.b16 %v255
        %v703 = vunpack.c.h.b16 %v255
        %v704 = vunpack.c.l.b16 %v256
        %v705 = vunpack.c.h.b16 %v256
        %v706 = vunpack.c.l.b16 %v257
        %v707 = vunpack.c.h.b16 %v257
        %v708 = vunpack.c.l.b16 %v258
        %v709 = vunpack.c.h.b16 %v258
        %v710 = vunpack.c.l.b16 %v259
        %v711 = vunpack.c.h.b16 %v259
        %v712 = vunpack.c.l.b16 %v260
        %v713 = vunpack.c.h.b16 %v260
        %v714 = vunpack.c.l.b16 %v261
        %v715 = vunpack.c.h.b16 %v261
        %v716 = vunpack.c.l.b16 %v262
        %v717 = vunpack.c.h.b16 %v262
        %v718 = vunpack.c.l.b16 %v263
        %v719 = vunpack.c.h.b16 %v263
        %v720 = vunpack.c.l.b16 %v264
        %v721 = vunpack.c.h.b16 %v264
        %v722 = vunpack.c.l.b16 %v265
        %v723 = vunpack.c.h.b16 %v265
        %v724 = vunpack.c.l.b16 %v266
        %v725 = vunpack.c.h.b16 %v266
        %v726 = vunpack.c.l.b16 %v267
        %v727 = vunpack.c.h.b16 %v267
        %v728 = vunpack.c.l.b16 %v268
        %v729 = vunpack.c.h.b16 %v268
        %v730 = vunpack.c.l.b16 %v269
        %v731 = vunpack.c.h.b16 %v269
        %v732 = vunpack.c.l.b16 %v270
        %v733 = vunpack.c.h.b16 %v270
        %v734 = vunpack.c.l.b16 %v271
        %v735 = vunpack.c.h.b16 %v271
        %v736 = vunpack.c.l.b16 %v272
        %v737 = vunpack.c.h.b16 %v272
        %v738 = vunpack.c.l.b16 %v273
        %v739 = vunpack.c.h.b16 %v273
        %v740 = vunpack.c.l.b16 %v274
        %v741 = vunpack.c.h.b16 %v274
        %v742 = vunpack.c.l.b16 %v275
        %v743 = vunpack.c.h.b16 %v275
        %v744 = vunpack.c.l.b16 %v276
        %v745 = vunpack.c.h.b16 %v276
        %v746 = vunpack.c.l.b16 %v277
        %v747 = vunpack.c.h.b16 %v277
        %v748 = vunpack.c.l.b16 %v278
        %v749 = vunpack.c.h.b16 %v278
        %v750 = vunpack.c.l.b16 %v279
        %v751 = vunpack.c.h.b16 %v279
        %v752 = vunpack.c.l.b16 %v280
        %v753 = vunpack.c.h.b16 %v280
        %v754 = vunpack.c.l.b16 %v281
        %v755 = vunpack.c.h.b16 %v281
        %v756 = vunpack.c.l.b16 %v282
        %v757 = vunpack.c.h.b16 %v282
        %v758 = vunpack.c.l.b16 %v283
        %v759 = vunpack.c.h.b16 %v283
        %v760 = vunpack.c.l.b16 %v284
        %v761 = vunpack.c.h.b16 %v284
        %v762 = vunpack.c.l.b16 %v285
        %v763 = vunpack.c.h.b16 %v285
        %v764 = vunpack.c.l.b16 %v286
        %v765 = vunpack.c.h.b16 %v286
        %v766 = vunpack.c.l.b16 %v287
        %v767 = vunpack.c.h.b16 %v287
        %v768 = vunpack.c.l.b16 %v288
        %v769 = vunpack.c.h.b16 %v288
        %v770 = vunpack.c.l.b16 %v289
        %v771 = vunpack.c.h.b16 %v289
        %v772 = vunpack.c.l.b16 %v290
        %v773 = vunpack.c.h.b16 %v290
        %v774 = vunpack.c.l.b16 %v291
        %v775 = vunpack.c.h.b16 %v291
        %v776 = vunpack.c.l.b16 %v292
        %v777 = vunpack.c.h.b16 %v292
        %v778 = vunpack.c.l.b16 %v293
        %v779 = vunpack.c.h.b16 %v293
        %v780 = vunpack.c.l.b16 %v294
        %v781 = vunpack.c.h.b16 %v294
        %v782 = vunpack.c.l.b16 %v295
        %v783 = vunpack.c.h.b16 %v295
        %v784 = vunpack.c.l.b16 %v296
        %v785 = vunpack.c.h.b16 %v296
        %v786 = vunpack.c.l.b16 %v297
        %v787 = vunpack.c.h.b16 %v297
        %v788 = vunpack.c.l.b16 %v298
        %v789 = vunpack.c.h.b16 %v298
        %v790 = vunpack.c.l.b16 %v299
        %v791 = vunpack.c.h.b16 %v299
        %v792 = vunpack.c.l.b16 %v300
        %v793 = vunpack.c.h.b16 %v300
        %v794 = vunpack.c.l.b16 %v301
        %v795 = vunpack.c.h.b16 %v301
        %v796 = vunpack.c.l.b16 %v302
        %v797 = vunpack.c.h.b16 %v302
        %v798 = vunpack.c.l.b16 %v303
        %v799 = vunpack.c.h.b16 %v303
        %v800 = vunpack.c.l.b16 %v304
        %v801 = vunpack.c.h.b16 %v304
        %v802 = vunpack.c.l.b16 %v305
        %v803 = vunpack.c.h.b16 %v305
        %v804 = vunpack.c.l.b16 %v306
        %v805 = vunpack.c.h.b16 %v306
        %v806 = vunpack.c.l.b16 %v307
        %v807 = vunpack.c.h.b16 %v307
        %v808 = vpack.c.b16 %v492, %v488
        %v809 = vpack.c.b16 %v493, %v489
        %v810 = vpack.c.b16 %v494, %v490
        %v811 = vpack.c.b16 %v495, %v491
        %v812 = vpack.c.b16 %v500, %v496
        %v813 = vpack.c.b16 %v501, %v497
        %v814 = vpack.c.b16 %v502, %v498
        %v815 = vpack.c.b16 %v503, %v499
        %v816 = vpack.c.b16 %v508, %v504
        %v817 = vpack.c.b16 %v509, %v505
        %v818 = vpack.c.b16 %v510, %v506
        %v819 = vpack.c.b16 %v511, %v507
        %v820 = vpack.c.b16 %v516, %v512
        %v821 = vpack.c.b16 %v517, %v513
        %v822 = vpack.c.b16 %v518, %v514
        %v823 = vpack.c.b16 %v519, %v515
        %v824 = vpack.c.b16 %v524, %v520
        %v825 = vpack.c.b16 %v525, %v521
        %v826 = vpack.c.b16 %v526, %v522
        %v827 = vpack.c.b16 %v527, %v523
        %v828 = vpack.c.b16 %v532, %v528
        %v829 = vpack.c.b16 %v533, %v529
        %v830 = vpack.c.b16 %v534, %v530
        %v831 = vpack.c.b16 %v535, %v531
        %v832 = vpack.c.b16 %v540, %v536
        %v833 = vpack.c.b16 %v541, %v537
        %v834 = vpack.c.b16 %v542, %v538
        %v835 = vpack.c.b16 %v543, %v539
        %v836 = vpack.c.b16 %v548, %v544
        %v837 = vpack.c.b16 %v549, %v545
        %v838 = vpack.c.b16 %v550, %v546
        %v839 = vpack.c.b16 %v551, %v547
        %v840 = vpack.c.b16 %v556, %v552
        %v841 = vpack.c.b16 %v557, %v553
        %v842 = vpack.c.b16 %v558, %v554
        %v843 = vpack.c.b16 %v559, %v555
        %v844 = vpack.c.b16 %v564, %v560
        %v845 = vpack.c.b16 %v565, %v561
        %v846 = vpack.c.b16 %v566, %v562
        %v847 = vpack.c.b16 %v567, %v563
        %v848 = vpack.c.b16 %v572, %v568
        %v849 = vpack.c.b16 %v573, %v569
        %v850 = vpack.c.b16 %v574, %v570
        %v851 = vpack.c.b16 %v575, %v571
        %v852 = vpack.c.b16 %v580, %v576
        %v853 = vpack.c.b16 %v581, %v577
        %v854 = vpack.c.b16 %v582, %v578
        %v855 = vpack.c.b16 %v583, %v579
        %v856 = vpack.c.b16 %v588, %v584
        %v857 = vpack.c.b16 %v589, %v585
        %v858 = vpack.c.b16 %v590, %v586
        %v859 = vpack.c.b16 %v591, %v587
        %v860 = vpack.c.b16 %v596, %v592
        %v861 = vpack.c.b16 %v597, %v593
        %v862 = vpack.c.b16 %v598, %v594
        %v863 = vpack.c.b16 %v599, %v595
        %v864 = vpack.c.b16 %v604, %v600
        %v865 = vpack.c.b16 %v605, %v601
        %v866 = vpack.c.b16 %v606, %v602
        %v867 = vpack.c.b16 %v607, %v603
        %v868 = vpack.c.b16 %v612, %v608
        %v869 = vpack.c.b16 %v613, %v609
        %v870 = vpack.c.b16 %v614, %v610
        %v871 = vpack.c.b16 %v615, %v611
        %v872 = vpack.c.b16 %v620, %v616
        %v873 = vpack.c.b16 %v621, %v617
        %v874 = vpack.c.b16 %v622, %v618
        %v875 = vpack.c.b16 %v623, %v619
        %v876 = vpack.c.b16 %v628, %v624
        %v877 = vpack.c.b16 %v629, %v625
        %v878 = vpack.c.b16 %v630, %v626
        %v879 = vpack.c.b16 %v631, %v627
        %v880 = vpack.c.b16 %v636, %v632
        %v881 = vpack.c.b16 %v637, %v633
        %v882 = vpack.c.b16 %v638, %v634
        %v883 = vpack.c.b16 %v639, %v635
        %v884 = vpack.c.b16 %v644, %v640
        %v885 = vpack.c.b16 %v645, %v641
        %v886 = vpack.c.b16 %v646, %v642
        %v887 = vpack.c.b16 %v647, %v643
        %v888 = vpack.c.b16 %v652, %v648
        %v889 = vpack.c.b16 %v653, %v649
        %v890 = vpack.c.b16 %v654, %v650
        %v891 = vpack.c.b16 %v655, %v651
        %v892 = vpack.c.b16 %v660, %v656
        %v893 = vpack.c.b16 %v661, %v657
        %v894 = vpack.c.b16 %v662, %v658
        %v895 = vpack.c.b16 %v663, %v659
        %v896 = vpack.c.b16 %v668, %v664
        %v897 = vpack.c.b16 %v669, %v665
        %v898 = vpack.c.b16 %v670, %v666
        %v899 = vpack.c.b16 %v671, %v667
        %v900 = vpack.c.b16 %v676, %v672
        %v901 = vpack.c.b16 %v677, %v673
        %v902 = vpack.c.b16 %v678, %v674
        %v903 = vpack.c.b16 %v679, %v675
        %v904 = vpack.c.b16 %v684, %v680
        %v905 = vpack.c.b16 %v685, %v681
        %v906 = vpack.c.b16 %v686, %v682
        %v907 = vpack.c.b16 %v687, %v683
        %v908 = vpack.c.b16 %v692, %v688
        %v909 = vpack.c.b16 %v693, %v689
        %v910 = vpack.c.b16 %v694, %v690
        %v911 = vpack.c.b16 %v695, %v691
        %v912 = vpack.c.b16 %v700, %v696
        %v913 = vpack.c.b16 %v701, %v697
        %v914 = vpack.c.b16 %v702, %v698
        %v915 = vpack.c.b16 %v703, %v699
        %v916 = vpack.c.b16 %v708, %v704
        %v917 = vpack.c.b16 %v709, %v705
        %v918 = vpack.c.b16 %v710, %v706
        %v919 = vpack.c.b16 %v711, %v707
        %v920 = vpack.c.b16 %v716, %v712
        %v921 = vpack.c.b16 %v717, %v713
        %v922 = vpack.c.b16 %v718, %v714
        %v923 = vpack.c.b16 %v719, %v715
        %v924 = vpack.c.b16 %v724, %v720
        %v925 = vpack.c.b16 %v725, %v721
        %v926 = vpack.c.b16 %v726, %v722
        %v927 = vpack.c.b16 %v727, %v723
        %v928 = vpack.c.b16 %v732, %v728
        %v929 = vpack.c.b16 %v733, %v729
        %v930 = vpack.c.b16 %v734, %v730
        %v931 = vpack.c.b16 %v735, %v731
        %v932 = vpack.c.b16 %v740, %v736
        %v933 = vpack.c.b16 %v741, %v737
        %v934 = vpack.c.b16 %v742, %v738
        %v935 = vpack.c.b16 %v743, %v739
        %v936 = vpack.c.b16 %v748, %v744
        %v937 = vpack.c.b16 %v749, %v745
        %v938 = vpack.c.b16 %v750, %v746
        %v939 = vpack.c.b16 %v751, %v747
        %v940 = vpack.c.b16 %v756, %v752
        %v941 = vpack.c.b16 %v757, %v753
        %v942 = vpack.c.b16 %v758, %v754
        %v943 = vpack.c.b16 %v759, %v755
        %v944 = vpack.c.b16 %v764, %v760
        %v945 = vpack.c.b16 %v765, %v761
        %v946 = vpack.c.b16 %v766, %v762
        %v947 = vpack.c.b16 %v767, %v763
        %v948 = vpack.c.b16 %v772, %v768
        %v949 = vpack.c.b16 %v773, %v769
        %v950 = vpack.c.b16 %v774, %v770
        %v951 = vpack.c.b16 %v775, %v771
        %v952 = vpack.c.b16 %v780, %v776
        %v953 = vpack.c.b16 %v781, %v777
        %v954 = vpack.c.b16 %v782, %v778
        %v955 = vpack.c.b16 %v783, %v779
        %v956 = vpack.c.b16 %v788, %v784
        %v957 = vpack.c.b16 %v789, %v785
        %v958 = vpack.c.b16 %v790, %v786
        %v959 = vpack.c.b16 %v791, %v787
        %v960 = vpack.c.b16 %v796, %v792
        %v961 = vpack.c.b16 %v797, %v793
        %v962 = vpack.c.b16 %v798, %v794
        %v963 = vpack.c.b16 %v799, %v795
        %v964 = vpack.c.b16 %v804, %v800
        %v965 = vpack.c.b16 %v805, %v801
        %v966 = vpack.c.b16 %v806, %v802
        %v967 = vpack.c.b16 %v807, %v803
        %1128 = vmatpush.bf16.xpose.msra.mxu0 %v836
        %1129 = vmatpush.bf16.xpose.msra.mxu0 %v832
        %1130 = vmatpush.bf16.xpose.msra.mxu0 %v828
        %1131 = vmatpush.bf16.xpose.msra.mxu0 %v824
        %1132 = vmatpush.bf16.xpose.msra.mxu0 %v820
        %1133 = vmatpush.bf16.xpose.msra.mxu0 %v816
        %1134 = vmatpush.bf16.xpose.msra.mxu0 %v812
        %1135 = vmatpush.bf16.xpose.msra.mxu0 %v808
        %1136 = vmatmul.bf16.gmra.mxu0 %v320
        %v1137 = vpop.f32.mrf.mxu0
        %v1138 = vadd.f32 0.0, %v1137
        %v1139 = vpop.f32.mrf.mxu0
        %v1140 = vadd.f32 0.0, %v1139
        %1141 = vdwg.mxu0
        %1142 = vmatpush.bf16.xpose.msra.mxu0 %v837
        %1143 = vmatpush.bf16.xpose.msra.mxu0 %v833
        %1144 = vmatpush.bf16.xpose.msra.mxu0 %v829
        %1145 = vmatpush.bf16.xpose.msra.mxu0 %v825
        %1146 = vmatpush.bf16.xpose.msra.mxu0 %v821
        %1147 = vmatpush.bf16.xpose.msra.mxu0 %v817
        %1148 = vmatpush.bf16.xpose.msra.mxu0 %v813
        %1149 = vmatpush.bf16.xpose.msra.mxu0 %v809
        %1150 = vmatmul.bf16.gmra.mxu0 %v321
        %v1151 = vpop.f32.mrf.mxu0
        %v1152 = vadd.f32 %v1138, %v1151
        %v1153 = vpop.f32.mrf.mxu0
        %v1154 = vadd.f32 %v1140, %v1153
        %1155 = vdwg.mxu0
        %1156 = vmatpush.bf16.xpose.msra.mxu0 %v838
        %1157 = vmatpush.bf16.xpose.msra.mxu0 %v834
        %1158 = vmatpush.bf16.xpose.msra.mxu0 %v830
        %1159 = vmatpush.bf16.xpose.msra.mxu0 %v826
        %1160 = vmatpush.bf16.xpose.msra.mxu0 %v822
        %1161 = vmatpush.bf16.xpose.msra.mxu0 %v818
        %1162 = vmatpush.bf16.xpose.msra.mxu0 %v814
        %1163 = vmatpush.bf16.xpose.msra.mxu0 %v810
        %1164 = vmatmul.bf16.gmra.mxu0 %v322
        %v1165 = vpop.f32.mrf.mxu0
        %v1166 = vadd.f32 %v1152, %v1165
        %v1167 = vpop.f32.mrf.mxu0
        %v1168 = vadd.f32 %v1154, %v1167
        %1169 = vdwg.mxu0
        %1170 = vmatpush.bf16.xpose.msra.mxu0 %v839
        %1171 = vmatpush.bf16.xpose.msra.mxu0 %v835
        %1172 = vmatpush.bf16.xpose.msra.mxu0 %v831
        %1173 = vmatpush.bf16.xpose.msra.mxu0 %v827
        %1174 = vmatpush.bf16.xpose.msra.mxu0 %v823
        %1175 = vmatpush.bf16.xpose.msra.mxu0 %v819
        %1176 = vmatpush.bf16.xpose.msra.mxu0 %v815
        %1177 = vmatpush.bf16.xpose.msra.mxu0 %v811
        %1178 = vmatmul.bf16.gmra.mxu0 %v323
        %v1179 = vpop.f32.mrf.mxu0
        %v1180 = vadd.f32 %v1166, %v1179
        %v1181 = vpop.f32.mrf.mxu0
        %v1182 = vadd.f32 %v1168, %v1181
        %1183 = vdwg.mxu0
        %1184 = vmatpush.bf16.xpose.msra.mxu0 %v868
        %1185 = vmatpush.bf16.xpose.msra.mxu0 %v864
        %1186 = vmatpush.bf16.xpose.msra.mxu0 %v860
        %1187 = vmatpush.bf16.xpose.msra.mxu0 %v856
        %1188 = vmatpush.bf16.xpose.msra.mxu0 %v852
        %1189 = vmatpush.bf16.xpose.msra.mxu0 %v848
        %1190 = vmatpush.bf16.xpose.msra.mxu0 %v844
        %1191 = vmatpush.bf16.xpose.msra.mxu0 %v840
        %1192 = vmatmul.bf16.gmra.mxu0 %v320
        %v1193 = vpop.f32.mrf.mxu0
        %v1194 = vadd.f32 0.0, %v1193
        %v1195 = vpop.f32.mrf.mxu0
        %v1196 = vadd.f32 0.0, %v1195
        %1197 = vdwg.mxu0
        %1198 = vmatpush.bf16.xpose.msra.mxu0 %v869
        %1199 = vmatpush.bf16.xpose.msra.mxu0 %v865
        %1200 = vmatpush.bf16.xpose.msra.mxu0 %v861
        %1201 = vmatpush.bf16.xpose.msra.mxu0 %v857
        %1202 = vmatpush.bf16.xpose.msra.mxu0 %v853
        %1203 = vmatpush.bf16.xpose.msra.mxu0 %v849
        %1204 = vmatpush.bf16.xpose.msra.mxu0 %v845
        %1205 = vmatpush.bf16.xpose.msra.mxu0 %v841
        %1206 = vmatmul.bf16.gmra.mxu0 %v321
        %v1207 = vpop.f32.mrf.mxu0
        %v1208 = vadd.f32 %v1194, %v1207
        %v1209 = vpop.f32.mrf.mxu0
        %v1210 = vadd.f32 %v1196, %v1209
        %1211 = vdwg.mxu0
        %1212 = vmatpush.bf16.xpose.msra.mxu0 %v870
        %1213 = vmatpush.bf16.xpose.msra.mxu0 %v866
        %1214 = vmatpush.bf16.xpose.msra.mxu0 %v862
        %1215 = vmatpush.bf16.xpose.msra.mxu0 %v858
        %1216 = vmatpush.bf16.xpose.msra.mxu0 %v854
        %1217 = vmatpush.bf16.xpose.msra.mxu0 %v850
        %1218 = vmatpush.bf16.xpose.msra.mxu0 %v846
        %1219 = vmatpush.bf16.xpose.msra.mxu0 %v842
        %1220 = vmatmul.bf16.gmra.mxu0 %v322
        %v1221 = vpop.f32.mrf.mxu0
        %v1222 = vadd.f32 %v1208, %v1221
        %v1223 = vpop.f32.mrf.mxu0
        %v1224 = vadd.f32 %v1210, %v1223
        %1225 = vdwg.mxu0
        %1226 = vmatpush.bf16.xpose.msra.mxu0 %v871
        %1227 = vmatpush.bf16.xpose.msra.mxu0 %v867
        %1228 = vmatpush.bf16.xpose.msra.mxu0 %v863
        %1229 = vmatpush.bf16.xpose.msra.mxu0 %v859
        %1230 = vmatpush.bf16.xpose.msra.mxu0 %v855
        %1231 = vmatpush.bf16.xpose.msra.mxu0 %v851
        %1232 = vmatpush.bf16.xpose.msra.mxu0 %v847
        %1233 = vmatpush.bf16.xpose.msra.mxu0 %v843
        %1234 = vmatmul.bf16.gmra.mxu0 %v323
        %v1235 = vpop.f32.mrf.mxu0
        %v1236 = vadd.f32 %v1222, %v1235
        %v1237 = vpop.f32.mrf.mxu0
        %v1238 = vadd.f32 %v1224, %v1237
        %1239 = vdwg.mxu0
        %1240 = vmatpush.bf16.xpose.msra.mxu0 %v900
        %1241 = vmatpush.bf16.xpose.msra.mxu0 %v896
        %1242 = vmatpush.bf16.xpose.msra.mxu0 %v892
        %1243 = vmatpush.bf16.xpose.msra.mxu0 %v888
        %1244 = vmatpush.bf16.xpose.msra.mxu0 %v884
        %1245 = vmatpush.bf16.xpose.msra.mxu0 %v880
        %1246 = vmatpush.bf16.xpose.msra.mxu0 %v876
        %1247 = vmatpush.bf16.xpose.msra.mxu0 %v872
        %1248 = vmatmul.bf16.gmra.mxu0 %v320
        %v1249 = vpop.f32.mrf.mxu0
        %v1250 = vadd.f32 0.0, %v1249
        %v1251 = vpop.f32.mrf.mxu0
        %v1252 = vadd.f32 0.0, %v1251
        %1253 = vdwg.mxu0
        %1254 = vmatpush.bf16.xpose.msra.mxu0 %v901
        %1255 = vmatpush.bf16.xpose.msra.mxu0 %v897
        %1256 = vmatpush.bf16.xpose.msra.mxu0 %v893
        %1257 = vmatpush.bf16.xpose.msra.mxu0 %v889
        %1258 = vmatpush.bf16.xpose.msra.mxu0 %v885
        %1259 = vmatpush.bf16.xpose.msra.mxu0 %v881
        %1260 = vmatpush.bf16.xpose.msra.mxu0 %v877
        %1261 = vmatpush.bf16.xpose.msra.mxu0 %v873
        %1262 = vmatmul.bf16.gmra.mxu0 %v321
        %v1263 = vpop.f32.mrf.mxu0
        %v1264 = vadd.f32 %v1250, %v1263
        %v1265 = vpop.f32.mrf.mxu0
        %v1266 = vadd.f32 %v1252, %v1265
        %1267 = vdwg.mxu0
        %1268 = vmatpush.bf16.xpose.msra.mxu0 %v902
        %1269 = vmatpush.bf16.xpose.msra.mxu0 %v898
        %1270 = vmatpush.bf16.xpose.msra.mxu0 %v894
        %1271 = vmatpush.bf16.xpose.msra.mxu0 %v890
        %1272 = vmatpush.bf16.xpose.msra.mxu0 %v886
        %1273 = vmatpush.bf16.xpose.msra.mxu0 %v882
        %1274 = vmatpush.bf16.xpose.msra.mxu0 %v878
        %1275 = vmatpush.bf16.xpose.msra.mxu0 %v874
        %1276 = vmatmul.bf16.gmra.mxu0 %v322
        %v1277 = vpop.f32.mrf.mxu0
        %v1278 = vadd.f32 %v1264, %v1277
        %v1279 = vpop.f32.mrf.mxu0
        %v1280 = vadd.f32 %v1266, %v1279
        %1281 = vdwg.mxu0
        %1282 = vmatpush.bf16.xpose.msra.mxu0 %v903
        %1283 = vmatpush.bf16.xpose.msra.mxu0 %v899
        %1284 = vmatpush.bf16.xpose.msra.mxu0 %v895
        %1285 = vmatpush.bf16.xpose.msra.mxu0 %v891
        %1286 = vmatpush.bf16.xpose.msra.mxu0 %v887
        %1287 = vmatpush.bf16.xpose.msra.mxu0 %v883
        %1288 = vmatpush.bf16.xpose.msra.mxu0 %v879
        %1289 = vmatpush.bf16.xpose.msra.mxu0 %v875
        %1290 = vmatmul.bf16.gmra.mxu0 %v323
        %v1291 = vpop.f32.mrf.mxu0
        %v1292 = vadd.f32 %v1278, %v1291
        %v1293 = vpop.f32.mrf.mxu0
        %v1294 = vadd.f32 %v1280, %v1293
        %1295 = vdwg.mxu0
        %1296 = vmatpush.bf16.xpose.msra.mxu0 %v932
        %1297 = vmatpush.bf16.xpose.msra.mxu0 %v928
        %1298 = vmatpush.bf16.xpose.msra.mxu0 %v924
        %1299 = vmatpush.bf16.xpose.msra.mxu0 %v920
        %1300 = vmatpush.bf16.xpose.msra.mxu0 %v916
        %1301 = vmatpush.bf16.xpose.msra.mxu0 %v912
        %1302 = vmatpush.bf16.xpose.msra.mxu0 %v908
        %1303 = vmatpush.bf16.xpose.msra.mxu0 %v904
        %1304 = vmatmul.bf16.gmra.mxu0 %v320
        %v1305 = vpop.f32.mrf.mxu0
        %v1306 = vadd.f32 0.0, %v1305
        %v1307 = vpop.f32.mrf.mxu0
        %v1308 = vadd.f32 0.0, %v1307
        %1309 = vdwg.mxu0
        %1310 = vmatpush.bf16.xpose.msra.mxu0 %v933
        %1311 = vmatpush.bf16.xpose.msra.mxu0 %v929
        %1312 = vmatpush.bf16.xpose.msra.mxu0 %v925
        %1313 = vmatpush.bf16.xpose.msra.mxu0 %v921
        %1314 = vmatpush.bf16.xpose.msra.mxu0 %v917
        %1315 = vmatpush.bf16.xpose.msra.mxu0 %v913
        %1316 = vmatpush.bf16.xpose.msra.mxu0 %v909
        %1317 = vmatpush.bf16.xpose.msra.mxu0 %v905
        %1318 = vmatmul.bf16.gmra.mxu0 %v321
        %v1319 = vpop.f32.mrf.mxu0
        %v1320 = vadd.f32 %v1306, %v1319
        %v1321 = vpop.f32.mrf.mxu0
        %v1322 = vadd.f32 %v1308, %v1321
        %1323 = vdwg.mxu0
        %1324 = vmatpush.bf16.xpose.msra.mxu0 %v934
        %1325 = vmatpush.bf16.xpose.msra.mxu0 %v930
        %1326 = vmatpush.bf16.xpose.msra.mxu0 %v926
        %1327 = vmatpush.bf16.xpose.msra.mxu0 %v922
        %1328 = vmatpush.bf16.xpose.msra.mxu0 %v918
        %1329 = vmatpush.bf16.xpose.msra.mxu0 %v914
        %1330 = vmatpush.bf16.xpose.msra.mxu0 %v910
        %1331 = vmatpush.bf16.xpose.msra.mxu0 %v906
        %1332 = vmatmul.bf16.gmra.mxu0 %v322
        %v1333 = vpop.f32.mrf.mxu0
        %v1334 = vadd.f32 %v1320, %v1333
        %v1335 = vpop.f32.mrf.mxu0
        %v1336 = vadd.f32 %v1322, %v1335
        %1337 = vdwg.mxu0
        %1338 = vmatpush.bf16.xpose.msra.mxu0 %v935
        %1339 = vmatpush.bf16.xpose.msra.mxu0 %v931
        %1340 = vmatpush.bf16.xpose.msra.mxu0 %v927
        %1341 = vmatpush.bf16.xpose.msra.mxu0 %v923
        %1342 = vmatpush.bf16.xpose.msra.mxu0 %v919
        %1343 = vmatpush.bf16.xpose.msra.mxu0 %v915
        %1344 = vmatpush.bf16.xpose.msra.mxu0 %v911
        %1345 = vmatpush.bf16.xpose.msra.mxu0 %v907
        %1346 = vmatmul.bf16.gmra.mxu0 %v323
        %v1347 = vpop.f32.mrf.mxu0
        %v1348 = vadd.f32 %v1334, %v1347
        %v1349 = vpop.f32.mrf.mxu0
        %v1350 = vadd.f32 %v1336, %v1349
        %1351 = vdwg.mxu0
        %1352 = vmatpush.bf16.xpose.msra.mxu0 %v964
        %1353 = vmatpush.bf16.xpose.msra.mxu0 %v960
        %1354 = vmatpush.bf16.xpose.msra.mxu0 %v956
        %1355 = vmatpush.bf16.xpose.msra.mxu0 %v952
        %1356 = vmatpush.bf16.xpose.msra.mxu0 %v948
        %1357 = vmatpush.bf16.xpose.msra.mxu0 %v944
        %1358 = vmatpush.bf16.xpose.msra.mxu0 %v940
        %1359 = vmatpush.bf16.xpose.msra.mxu0 %v936
        %1360 = vmatmul.bf16.gmra.mxu0 %v320
        %v1361 = vpop.f32.mrf.mxu0
        %v1362 = vadd.f32 0.0, %v1361
        %v1363 = vpop.f32.mrf.mxu0
        %v1364 = vadd.f32 0.0, %v1363
        %1365 = vdwg.mxu0
        %1366 = vmatpush.bf16.xpose.msra.mxu0 %v965
        %1367 = vmatpush.bf16.xpose.msra.mxu0 %v961
        %1368 = vmatpush.bf16.xpose.msra.mxu0 %v957
        %1369 = vmatpush.bf16.xpose.msra.mxu0 %v953
        %1370 = vmatpush.bf16.xpose.msra.mxu0 %v949
        %1371 = vmatpush.bf16.xpose.msra.mxu0 %v945
        %1372 = vmatpush.bf16.xpose.msra.mxu0 %v941
        %1373 = vmatpush.bf16.xpose.msra.mxu0 %v937
        %1374 = vmatmul.bf16.gmra.mxu0 %v321
        %v1375 = vpop.f32.mrf.mxu0
        %v1376 = vadd.f32 %v1362, %v1375
        %v1377 = vpop.f32.mrf.mxu0
        %v1378 = vadd.f32 %v1364, %v1377
        %1379 = vdwg.mxu0
        %1380 = vmatpush.bf16.xpose.msra.mxu0 %v966
        %1381 = vmatpush.bf16.xpose.msra.mxu0 %v962
        %1382 = vmatpush.bf16.xpose.msra.mxu0 %v958
        %1383 = vmatpush.bf16.xpose.msra.mxu0 %v954
        %1384 = vmatpush.bf16.xpose.msra.mxu0 %v950
        %1385 = vmatpush.bf16.xpose.msra.mxu0 %v946
        %1386 = vmatpush.bf16.xpose.msra.mxu0 %v942
        %1387 = vmatpush.bf16.xpose.msra.mxu0 %v938
        %1388 = vmatmul.bf16.gmra.mxu0 %v322
        %v1389 = vpop.f32.mrf.mxu0
        %v1390 = vadd.f32 %v1376, %v1389
        %v1391 = vpop.f32.mrf.mxu0
        %v1392 = vadd.f32 %v1378, %v1391
        %1393 = vdwg.mxu0
        %1394 = vmatpush.bf16.xpose.msra.mxu0 %v967
        %1395 = vmatpush.bf16.xpose.msra.mxu0 %v963
        %1396 = vmatpush.bf16.xpose.msra.mxu0 %v959
        %1397 = vmatpush.bf16.xpose.msra.mxu0 %v955
        %1398 = vmatpush.bf16.xpose.msra.mxu0 %v951
        %1399 = vmatpush.bf16.xpose.msra.mxu0 %v947
        %1400 = vmatpush.bf16.xpose.msra.mxu0 %v943
        %1401 = vmatpush.bf16.xpose.msra.mxu0 %v939
        %1402 = vmatmul.bf16.gmra.mxu0 %v323
        %v1403 = vpop.f32.mrf.mxu0
        %v1404 = vadd.f32 %v1390, %v1403
        %v1405 = vpop.f32.mrf.mxu0
        %v1406 = vadd.f32 %v1392, %v1405
        %1407 = vdwg.mxu0
        %vm1408 = vcmp.gt.f32.partialorder %v1180, 0.0
        %vm1409 = vcmp.gt.f32.partialorder %v1236, 0.0
        %vm1410 = vcmp.gt.f32.partialorder %v1292, 0.0
        %vm1411 = vcmp.gt.f32.partialorder %v1348, 0.0
        %vm1412 = vcmp.gt.f32.partialorder %v1404, 0.0
        %vm1413 = vcmp.gt.f32.partialorder %v1182, 0.0
        %vm1414 = vcmp.gt.f32.partialorder %v1238, 0.0
        %vm1415 = vcmp.gt.f32.partialorder %v1294, 0.0
        %vm1416 = vcmp.gt.f32.partialorder %v1350, 0.0
        %vm1417 = vcmp.gt.f32.partialorder %v1406, 0.0
        %v1418 = vmul.f32 %v1180, 0.2
        %v1419 = vmul.f32 %v1236, 0.2
        %v1420 = vmul.f32 %v1292, 0.2
        %v1421 = vmul.f32 %v1348, 0.2
        %v1422 = vmul.f32 %v1404, 0.2
        %v1423 = vmul.f32 %v1182, 0.2
        %v1424 = vmul.f32 %v1238, 0.2
        %v1425 = vmul.f32 %v1294, 0.2
        %v1426 = vmul.f32 %v1350, 0.2
        %v1427 = vmul.f32 %v1406, 0.2
        %v1428 = vsel %vm1408, %v1180, %v1418
        %v1429 = vsel %vm1409, %v1236, %v1419
        %v1430 = vsel %vm1410, %v1292, %v1420
        %v1431 = vsel %vm1411, %v1348, %v1421
        %v1432 = vsel %vm1412, %v1404, %v1422
        %v1433 = vsel %vm1413, %v1182, %v1423
        %v1434 = vsel %vm1414, %v1238, %v1424
        %v1435 = vsel %vm1415, %v1294, %v1425
        %v1436 = vsel %vm1416, %v1350, %v1426
        %v1437 = vsel %vm1417, %v1406, %v1427
        %1438 = vst [vmem:[%s135] sm:$0xff] %v1428
        %1439 = vst [vmem:[%s135 + $0x8] sm:$0xff] %v1429
        %1440 = vst [vmem:[%s135 + $0x10] sm:$0xff] %v1430
        %1441 = vst [vmem:[%s135 + $0x18] sm:$0xff] %v1431
        %1442 = vst [vmem:[%s135 + $0x20] sm:$0xff] %v1432
        %1443 = vst [vmem:[%s135 + $0x28] sm:$0xff] %v1433
        %1444 = vst [vmem:[%s135 + $0x30] sm:$0xff] %v1434
        %1445 = vst [vmem:[%s135 + $0x38] sm:$0xff] %v1435
        %1446 = vst [vmem:[%s135 + $0x40] sm:$0xff] %v1436
        %1447 = vst [vmem:[%s135 + $0x48] sm:$0xff] %v1437
        %s1448 = sand.u32 %s68, 1
        %s1449 = sand.u32 %s68, 1
        %s1450 = smul.addr %s1449, 80
        %s1451 = scalar_lea.vmem [#allocation2], %s1450
        // Predicated region
        $region29: #{patch_video_discriminator_forward.5} parent=27 // pred_check
          %p1452 = pneg %p78
        $region30: #{patch_video_discriminator_forward.5} parent=27 // pred_check_branch
          %1454 = sbr.rel (%p1452) target = $region32
        $region31: #{patch_video_discriminator_forward.5} parent=27 // pred_region
          %s1455 = smul.u32 5, %s13
          %s1456 = smul.addr %s1455, 8
          %s1457 = scalar_lea.vmem %s2, %s1456
          // Predicated region
          $region33: #{patch_video_discriminator_forward.5} parent=31 // pred_check
            _
          $region34: #{patch_video_discriminator_forward.5} parent=31 // pred_check_branch
            %1459 = sbr.rel (0) target = $region36
          $region35: #{patch_video_discriminator_forward.5} parent=31 // pred_region
            // Predicated region
            $region37: #{patch_video_discriminator_forward.5} parent=35 // pred_check
              _
            $region38: #{patch_video_discriminator_forward.5} parent=35 // pred_check_branch
              %1461 = sbr.rel (0) target = $region40
            $region39: #{patch_video_discriminator_forward.5} parent=35 // pred_region
              loop: start=0, step=1, limit=1
              $region41: #{patch_video_discriminator_forward.5} parent=39 // loop_pre_header
                _
              $region42: #{patch_video_discriminator_forward.5} parent=39 // loop_header
                %s1463 = sphi 0, %s1467
                %p1464 = scmp.ge.s32.totalorder %s1463, 1
                %s1468 = sphi %s1451, %s1451
                %s1469 = sphi %s1457, %s1457
              $region43: #{patch_video_discriminator_forward.5} parent=39 // loop_header_branch
                %1466 = sbr.rel (%p1464) target = $region47
              $region44: #{patch_video_discriminator_forward.5} parent=39 // loop_body
                %v1470 = vld [vmem:[%s1468] sm:$0xff]
                %1471 = vst [vmem:[%s1469] sm:$0xff] %v1470
                %v1472 = vld [vmem:[%s1468 + $0x8] sm:$0xff]
                %1473 = vst [vmem:[%s1469 + $0x8] sm:$0xff] %v1472
                %v1474 = vld [vmem:[%s1468 + $0x10] sm:$0xff]
                %1475 = vst [vmem:[%s1469 + $0x10] sm:$0xff] %v1474
                %v1476 = vld [vmem:[%s1468 + $0x18] sm:$0xff]
                %1477 = vst [vmem:[%s1469 + $0x18] sm:$0xff] %v1476
                %v1478 = vld [vmem:[%s1468 + $0x20] sm:$0xff]
                %1479 = vst [vmem:[%s1469 + $0x20] sm:$0xff] %v1478
                %v1480 = vld [vmem:[%s1468 + $0x28] sm:$0xff]
                %1481 = vst [vmem:[%s1469 + $0x50] sm:$0xff] %v1480
                %v1482 = vld [vmem:[%s1468 + $0x30] sm:$0xff]
                %1483 = vst [vmem:[%s1469 + $0x58] sm:$0xff] %v1482
                %v1484 = vld [vmem:[%s1468 + $0x38] sm:$0xff]
                %1485 = vst [vmem:[%s1469 + $0x60] sm:$0xff] %v1484
                %v1486 = vld [vmem:[%s1468 + $0x40] sm:$0xff]
                %1487 = vst [vmem:[%s1469 + $0x68] sm:$0xff] %v1486
                %v1488 = vld [vmem:[%s1468 + $0x48] sm:$0xff]
                %1489 = vst [vmem:[%s1469 + $0x70] sm:$0xff] %v1488
              $region45: #{patch_video_discriminator_forward.5} parent=39 // loop_footer
                %s1467 = sadd.s32 1, %s1463
              $region46: #{patch_video_discriminator_forward.5} parent=39 // loop_footer_branch
                %1462 = sbr.rel target = $region42
              $region47: #{patch_video_discriminator_forward.5} parent=39 // loop_exit
                _
            $region40: #{patch_video_discriminator_forward.5} parent=35 // pred_fallthru
              _
            // Predicated region
            $region48: #{patch_video_discriminator_forward.5} parent=35 // pred_check
              _
            $region49: #{patch_video_discriminator_forward.5} parent=35 // pred_check_branch
              %1491 = sbr.rel target = $region51
            $region50: #{patch_video_discriminator_forward.5} parent=35 // pred_region
              _
            $region51: #{patch_video_discriminator_forward.5} parent=35 // pred_fallthru
              _
          $region36: #{patch_video_discriminator_forward.5} parent=31 // pred_fallthru
            _
          %1492 = vnop
        $region32: #{patch_video_discriminator_forward.5} parent=27 // pred_fallthru
          _
      $region28: #{patch_video_discriminator_forward.5} parent=5 // pred_fallthru
        _
      %p1493 = scmp.le.s32.totalorder 2, %s8
      // Predicated region
      $region52: #{patch_video_discriminator_forward.5} parent=5 // pred_check
        %p1494 = pneg %p1493
      $region53: #{patch_video_discriminator_forward.5} parent=5 // pred_check_branch
        %1496 = sbr.rel (%p1494) target = $region55
      $region54: #{patch_video_discriminator_forward.5} parent=5 // pred_region
        %s1497 = ssub.s32 %s8, 2
        // Predicated region
        $region56: #{patch_video_discriminator_forward.5} parent=54 // pred_check
          %p1498 = pneg %p84
        $region57: #{patch_video_discriminator_forward.5} parent=54 // pred_check_branch
          %1500 = sbr.rel (%p1498) target = $region59
        $region58: #{patch_video_discriminator_forward.5} parent=54 // pred_region
          %s1501 = sand.u32 %s69, 1
          %s1502 = sand.u32 %s69, 1
          %s1503 = smul.addr %s1502, 80
          %s1504 = scalar_lea.vmem [#allocation2], %s1503
        $region59: #{patch_video_discriminator_forward.5} parent=54 // pred_fallthru
          _
      $region55: #{patch_video_discriminator_forward.5} parent=5 // pred_fallthru
        _
    $region6: #{patch_video_discriminator_forward.5} parent=1 // loop_footer
      %s12 = sadd.s32 1, %s8
    $region7: #{patch_video_discriminator_forward.5} parent=1 // loop_footer_branch
      %7 = sbr.rel target = $region3
    $region8: #{patch_video_discriminator_forward.5} parent=1 // loop_exit
      _

// kernel: patch_video_discriminator_forward.6
$region0: #{patch_video_discriminator_forward.6}
  #allocation0 [shape = 'u32[]', space=smem, size = 0x4, offset = 0x4, fixed_abs, tag = 'smem constant byte address 0x4 - core index']
  #allocation1 [shape = 'u32[72,128]{1,0:T(1,128)}', space=vmem, size = 0x9000, scoped, tag = 'internal scratch']
  %s0 = inlined_call_operand.vmem [shape: bf16[256,1024], index: 0, kind: input, shape index: {}]
  %s1 = inlined_call_operand.vmem [shape: bf16[32,1024], index: 1, kind: input, shape index: {}]
  %s2 = inlined_call_operand.vmem [shape: f32[32,256], index: 2, kind: output, shape index: {}]
  %s3 = sld [smem:[#allocation0]]
  $region75: #{patch_video_discriminator_forward.6} parent=0
    _
  %s5 = ssub.s32 1, %s3
  %s6 = scalar_select 0, %s5, %s3
  $region1: #{patch_video_discriminator_forward.6} parent=0
    #allocation2 [shape = 'u8[32768]{0}', space=vmem, size = 0x8000, scoped, tag = 'output window, operand 0']
    loop: start=0, step=1, limit=4
    $region2: #{patch_video_discriminator_forward.6} parent=1 // loop_pre_header
      _
    $region3: #{patch_video_discriminator_forward.6} parent=1 // loop_header
      %s8 = sphi 0, %s12
      %p9 = scmp.ge.s32.totalorder %s8, 4
      %s18 = sphi 0, %s20
      %s21 = sphi 0, %s18
      %s22 = sphi 0, %s21
      %s38 = sphi 0, %s22
      %s42 = sphi 0, %s42
      %s44 = sphi 0, %s42
      %s45 = sphi 0, %s44
      %s59 = sphi 0, %s45
      %s65 = sphi 0, %s67
      %s68 = sphi 0, %s65
      %s69 = sphi 0, %s68
      %s85 = sphi 0, %s69
    $region4: #{patch_video_discriminator_forward.6} parent=1 // loop_header_branch
      %11 = sbr.rel (%p9) target = $region8
    $region5: #{patch_video_discriminator_forward.6} parent=1 // loop_body
      %s13 = ssub.s32 %s8, 1
      %s14 = ssub.s32 %s8, 2
      %s15 = sadd.s32 %s8, 1
      %s16 = ssub.s32 %s8, %s15
      %p17 = scmp.eq.s32.totalorder %s16, 0
      %s19 = sadd.s32 %s18, 1
      %s20 = scalar_select %p17, %s18, %s19
      %p23 = pneg %p17
      %p24 = scmp.eq.s32.totalorder %s8, 1
      %p25 = por %p23, %p24
      %p26 = scmp.ne.s32.totalorder %s18, %s21
      %p27 = scmp.eq.s32.totalorder %s8, 0
      %p28 = por %p26, %p27
      %p29 = scmp.ne.s32.totalorder %s18, %s21
      %p30 = scmp.eq.s32.totalorder %s13, 1
      %p31 = por %p29, %p30
      %p32 = scmp.ne.s32.totalorder %s21, %s22
      %p33 = scmp.eq.s32.totalorder %s13, 0
      %p34 = por %p32, %p33
      %p35 = scmp.ne.s32.totalorder %s21, %s22
      %p36 = scmp.eq.s32.totalorder %s14, 1
      %p37 = por %p35, %p36
      %p39 = scmp.ne.s32.totalorder %s22, %s38
      %p40 = scmp.eq.s32.totalorder %s14, 0
      %p41 = por %p39, %p40
      %s43 = sadd.s32 %s42, 1
      %p46 = scmp.eq.s32.totalorder %s8, 1
      %p47 = scmp.ne.s32.totalorder %s42, %s44
      %p48 = scmp.eq.s32.totalorder %s8, 0
      %p49 = por %p47, %p48
      %p50 = scmp.ne.s32.totalorder %s42, %s44
      %p51 = scmp.eq.s32.totalorder %s13, 1
      %p52 = por %p50, %p51
      %p53 = scmp.ne.s32.totalorder %s44, %s45
      %p54 = scmp.eq.s32.totalorder %s13, 0
      %p55 = por %p53, %p54
      %p56 = scmp.ne.s32.totalorder %s44, %s45
      %p57 = scmp.eq.s32.totalorder %s14, 1
      %p58 = por %p56, %p57
      %p60 = scmp.ne.s32.totalorder %s45, %s59
      %p61 = scmp.eq.s32.totalorder %s14, 0
      %p62 = por %p60, %p61
      %s63 = ssub.s32 %s8, %s15
      %p64 = scmp.eq.s32.totalorder %s63, 0
      %s66 = sadd.s32 %s65, 1
      %s67 = scalar_select %p64, %s65, %s66
      %p70 = pneg %p64
      %p71 = scmp.eq.s32.totalorder %s8, 1
      %p72 = por %p70, %p71
      %p73 = scmp.ne.s32.totalorder %s65, %s68
      %p74 = scmp.eq.s32.totalorder %s8, 0
      %p75 = por %p73, %p74
      %p76 = scmp.ne.s32.totalorder %s65, %s68
      %p77 = scmp.eq.s32.totalorder %s13, 1
      %p78 = por %p76, %p77
      %p79 = scmp.ne.s32.totalorder %s68, %s69
      %p80 = scmp.eq.s32.totalorder %s13, 0
      %p81 = por %p79, %p80
      %p82 = scmp.ne.s32.totalorder %s68, %s69
      %p83 = scmp.eq.s32.totalorder %s14, 1
      %p84 = por %p82, %p83
      %p86 = scmp.ne.s32.totalorder %s69, %s85
      %p87 = scmp.eq.s32.totalorder %s14, 0
      %p88 = por %p86, %p87
      %p89 = scmp.le.s32.totalorder 1, %s8
      %p90 = scmp.lt.s32.totalorder %s8, 3
      %p91 = pnand %p89, %p90
      %p92 = pneg %p91
      // Predicated region
      $region9: #{patch_video_discriminator_forward.6} parent=5 // pred_check
        _
      $region10: #{patch_video_discriminator_forward.6} parent=5 // pred_check_branch
        %94 = sbr.rel (%p91) target = $region12
      $region11: #{patch_video_discriminator_forward.6} parent=5 // pred_region
        %s95 = ssub.s32 %s8, 1
        // Predicated region
        $region13: #{patch_video_discriminator_forward.6} parent=11 // pred_check
          %p96 = pneg %p55
        $region14: #{patch_video_discriminator_forward.6} parent=11 // pred_check_branch
          %98 = sbr.rel (%p96) target = $region16
        $region15: #{patch_video_discriminator_forward.6} parent=11 // pred_region
          _
        $region16: #{patch_video_discriminator_forward.6} parent=11 // pred_fallthru
          _
      $region12: #{patch_video_discriminator_forward.6} parent=5 // pred_fallthru
        _
      %p99 = scmp.lt.s32.totalorder %s8, 2
      // Predicated region
      $region17: #{patch_video_discriminator_forward.6} parent=5 // pred_check
        %p100 = pneg %p99
      $region18: #{patch_video_discriminator_forward.6} parent=5 // pred_check_branch
        %102 = sbr.rel (%p100) target = $region20
      $region19: #{patch_video_discriminator_forward.6} parent=5 // pred_region
        // Predicated region
        $region21: #{patch_video_discriminator_forward.6} parent=19 // pred_check
          %p103 = pneg %p28
        $region22: #{patch_video_discriminator_forward.6} parent=19 // pred_check_branch
          %105 = sbr.rel (%p103) target = $region24
        $region23: #{patch_video_discriminator_forward.6} parent=19 // pred_region
          %s106 = smul.u32 16, %s8
          %p107 = scmp.lt.s32.totalorder %s106, 31
          %s108 = scalar_select %p107, %s106, 31
          %s109 = smul.addr %s108, 8
          %s110 = smul.addr %s109, 4
          %s111 = scalar_lea.vmem %s0, %s110
          %s112 = smul.u32 16, %s8
        $region24: #{patch_video_discriminator_forward.6} parent=19 // pred_fallthru
          _
      $region20: #{patch_video_discriminator_forward.6} parent=5 // pred_fallthru
        _
      %p113 = scmp.le.s32.totalorder 1, %s8
      %p114 = scmp.lt.s32.totalorder %s8, 3
      %p115 = pnand %p113, %p114
      %p116 = pneg %p115
      // Predicated region
      $region25: #{patch_video_discriminator_forward.6} parent=5 // pred_check
        _
      $region26: #{patch_video_discriminator_forward.6} parent=5 // pred_check_branch
        %118 = sbr.rel (%p115) target = $region28
      $region27: #{patch_video_discriminator_forward.6} parent=5 // pred_region
        %s119 = ssub.s32 %s8, 1
        %s120 = smul.u32 16, %s13
        %p121 = scmp.lt.s32.totalorder %s120, 31
        %s122 = scalar_select %p121, %s120, 31
        %s123 = smul.addr %s122, 8
        %s124 = smul.addr %s123, 4
        %s125 = scalar_lea.vmem %s0, %s124
        %p126 = pneg %p34
        %p127 = pneg %p31
        %p128 = pneg %p55
        %p129 = pneg %p52
        %p130 = pneg %p81
        %p131 = pneg %p78
        %s132 = sand.u32 %s68, 1
        %s133 = sand.u32 %s68, 1
        %s134 = smul.addr %s133, 32
        %s135 = scalar_lea.vmem [#allocation2], %s134
        %s136 = smul.u32 16, %s13
        %p137 = scmp.lt.s32.totalorder %s136, 31
        %s138 = scalar_select %p137, %s136, 31
        %s139 = smul.addr %s138, 8
        %s140 = smul.addr %s139, 4
        %s141 = scalar_lea.vmem %s0, %s140
        %s142 = smul.u32 16, %s13
        %v143 = vld [vmem:[%s1] sm:$0xff]
        %v144 = vld [vmem:[%s1 + $0x8] sm:$0xff]
        %v145 = vld [vmem:[%s1 + $0x10] sm:$0xff]
        %v146 = vld [vmem:[%s1 + $0x18] sm:$0xff]
        %v147 = vld [vmem:[%s1 + $0x20] sm:$0xff]
        %v148 = vld [vmem:[%s1 + $0x28] sm:$0xff]
        %v149 = vld [vmem:[%s1 + $0x30] sm:$0xff]
        %v150 = vld [vmem:[%s1 + $0x38] sm:$0xff]
        %v151 = vld [vmem:[%s1 + $0x40] sm:$0xff]
        %v152 = vld [vmem:[%s1 + $0x48] sm:$0xff]
        %v153 = vld [vmem:[%s1 + $0x50] sm:$0xff]
        %v154 = vld [vmem:[%s1 + $0x58] sm:$0xff]
        %v155 = vld [vmem:[%s1 + $0x60] sm:$0xff]
        %v156 = vld [vmem:[%s1 + $0x68] sm:$0xff]
        %v157 = vld [vmem:[%s1 + $0x70] sm:$0xff]
        %v158 = vld [vmem:[%s1 + $0x78] sm:$0xff]
        %v159 = vld [vmem:[%s141] sm:$0xff]
        %v160 = vld [vmem:[%s141 + $0x8] sm:$0xff]
        %v161 = vld [vmem:[%s141 + $0x10] sm:$0xff]
        %v162 = vld [vmem:[%s141 + $0x18] sm:$0xff]
        %v163 = vld [vmem:[%s141 + $0x20] sm:$0xff]
        %v164 = vld [vmem:[%s141 + $0x28] sm:$0xff]
        %v165 = vld [vmem:[%s141 + $0x30] sm:$0xff]
        %v166 = vld [vmem:[%s141 + $0x38] sm:$0xff]
        %v167 = vld [vmem:[%s141 + $0x40] sm:$0xff]
        %v168 = vld [vmem:[%s141 + $0x48] sm:$0xff]
        %v169 = vld [vmem:[%s141 + $0x50] sm:$0xff]
        %v170 = vld [vmem:[%s141 + $0x58] sm:$0xff]
        %v171 = vld [vmem:[%s141 + $0x60] sm:$0xff]
        %v172 = vld [vmem:[%s141 + $0x68] sm:$0xff]
        %v173 = vld [vmem:[%s141 + $0x70] sm:$0xff]
        %v174 = vld [vmem:[%s141 + $0x78] sm:$0xff]
        %v175 = vld [vmem:[%s141 + $0x80] sm:$0xff]
        %v176 = vld [vmem:[%s141 + $0x88] sm:$0xff]
        %v177 = vld [vmem:[%s141 + $0x90] sm:$0xff]
        %v178 = vld [vmem:[%s141 + $0x98] sm:$0xff]
        %v179 = vld [vmem:[%s141 + $0xa0] sm:$0xff]
        %v180 = vld [vmem:[%s141 + $0xa8] sm:$0xff]
        %v181 = vld [vmem:[%s141 + $0xb0] sm:$0xff]
        %v182 = vld [vmem:[%s141 + $0xb8] sm:$0xff]
        %v183 = vld [vmem:[%s141 + $0xc0] sm:$0xff]
        %v184 = vld [vmem:[%s141 + $0xc8] sm:$0xff]
        %v185 = vld [vmem:[%s141 + $0xd0] sm:$0xff]
        %v186 = vld [vmem:[%s141 + $0xd8] sm:$0xff]
        %v187 = vld [vmem:[%s141 + $0xe0] sm:$0xff]
        %v188 = vld [vmem:[%s141 + $0xe8] sm:$0xff]
        %v189 = vld [vmem:[%s141 + $0xf0] sm:$0xff]
        %v190 = vld [vmem:[%s141 + $0xf8] sm:$0xff]
        %v191 = vld [vmem:[%s141 + $0x100] sm:$0xff]
        %v192 = vld [vmem:[%s141 + $0x108] sm:$0xff]
        %v193 = vld [vmem:[%s141 + $0x110] sm:$0xff]
        %v194 = vld [vmem:[%s141 + $0x118] sm:$0xff]
        %v195 = vld [vmem:[%s141 + $0x120] sm:$0xff]
        %v196 = vld [vmem:[%s141 + $0x128] sm:$0xff]
        %v197 = vld [vmem:[%s141 + $0x130] sm:$0xff]
        %v198 = vld [vmem:[%s141 + $0x138] sm:$0xff]
        %v199 = vld [vmem:[%s141 + $0x140] sm:$0xff]
        %v200 = vld [vmem:[%s141 + $0x148] sm:$0xff]
        %v201 = vld [vmem:[%s141 + $0x150] sm:$0xff]
        %v202 = vld [vmem:[%s141 + $0x158] sm:$0xff]
        %v203 = vld [vmem:[%s141 + $0x160] sm:$0xff]
        %v204 = vld [vmem:[%s141 + $0x168] sm:$0xff]
        %v205 = vld [vmem:[%s141 + $0x170] sm:$0xff]
        %v206 = vld [vmem:[%s141 + $0x178] sm:$0xff]
        %v207 = vld [vmem:[%s141 + $0x180] sm:$0xff]
        %v208 = vld [vmem:[%s141 + $0x188] sm:$0xff]
        %v209 = vld [vmem:[%s141 + $0x190] sm:$0xff]
        %v210 = vld [vmem:[%s141 + $0x198] sm:$0xff]
        %v211 = vld [vmem:[%s141 + $0x1a0] sm:$0xff]
        %v212 = vld [vmem:[%s141 + $0x1a8] sm:$0xff]
        %v213 = vld [vmem:[%s141 + $0x1b0] sm:$0xff]
        %v214 = vld [vmem:[%s141 + $0x1b8] sm:$0xff]
        %v215 = vld [vmem:[%s141 + $0x1c0] sm:$0xff]
        %v216 = vld [vmem:[%s141 + $0x1c8] sm:$0xff]
        %v217 = vld [vmem:[%s141 + $0x1d0] sm:$0xff]
        %v218 = vld [vmem:[%s141 + $0x1d8] sm:$0xff]
        %v219 = vld [vmem:[%s141 + $0x1e0] sm:$0xff]
        %v220 = vld [vmem:[%s141 + $0x1e8] sm:$0xff]
        %v221 = vld [vmem:[%s141 + $0x1f0] sm:$0xff]
        %v222 = vld [vmem:[%s141 + $0x1f8] sm:$0xff]
        %v239 = vunpack.c.l.b16 %v143
        %v240 = vunpack.c.h.b16 %v143
        %v241 = vunpack.c.l.b16 %v144
        %v242 = vunpack.c.h.b16 %v144
        %v243 = vunpack.c.l.b16 %v145
        %v244 = vunpack.c.h.b16 %v145
        %v245 = vunpack.c.l.b16 %v146
        %v246 = vunpack.c.h.b16 %v146
        %v247 = vunpack.c.l.b16 %v147
        %v248 = vunpack.c.h.b16 %v147
        %v249 = vunpack.c.l.b16 %v148
        %v250 = vunpack.c.h.b16 %v148
        %v251 = vunpack.c.l.b16 %v149
        %v252 = vunpack.c.h.b16 %v149
        %v253 = vunpack.c.l.b16 %v150
        %v254 = vunpack.c.h.b16 %v150
        %v255 = vunpack.c.l.b16 %v151
        %v256 = vunpack.c.h.b16 %v151
        %v257 = vunpack.c.l.b16 %v152
        %v258 = vunpack.c.h.b16 %v152
        %v259 = vunpack.c.l.b16 %v153
        %v260 = vunpack.c.h.b16 %v153
        %v261 = vunpack.c.l.b16 %v154
        %v262 = vunpack.c.h.b16 %v154
        %v263 = vunpack.c.l.b16 %v155
        %v264 = vunpack.c.h.b16 %v155
        %v265 = vunpack.c.l.b16 %v156
        %v266 = vunpack.c.h.b16 %v156
        %v267 = vunpack.c.l.b16 %v157
        %v268 = vunpack.c.h.b16 %v157
        %v269 = vunpack.c.l.b16 %v158
        %v270 = vunpack.c.h.b16 %v158
        %v271 = vpack.c.b16 %v247, %v239
        %v272 = vpack.c.b16 %v248, %v240
        %v273 = vpack.c.b16 %v249, %v241
        %v274 = vpack.c.b16 %v250, %v242
        %v275 = vpack.c.b16 %v251, %v243
        %v276 = vpack.c.b16 %v252, %v244
        %v277 = vpack.c.b16 %v253, %v245
        %v278 = vpack.c.b16 %v254, %v246
        %v279 = vpack.c.b16 %v263, %v255
        %v280 = vpack.c.b16 %v264, %v256
        %v281 = vpack.c.b16 %v265, %v257
        %v282 = vpack.c.b16 %v266, %v258
        %v283 = vpack.c.b16 %v267, %v259
        %v284 = vpack.c.b16 %v268, %v260
        %v285 = vpack.c.b16 %v269, %v261
        %v286 = vpack.c.b16 %v270, %v262
        %v367 = vunpack.c.l.b16 %v159
        %v368 = vunpack.c.h.b16 %v159
        %v369 = vunpack.c.l.b16 %v160
        %v370 = vunpack.c.h.b16 %v160
        %v371 = vunpack.c.l.b16 %v161
        %v372 = vunpack.c.h.b16 %v161
        %v373 = vunpack.c.l.b16 %v162
        %v374 = vunpack.c.h.b16 %v162
        %v375 = vunpack.c.l.b16 %v163
        %v376 = vunpack.c.h.b16 %v163
        %v377 = vunpack.c.l.b16 %v164
        %v378 = vunpack.c.h.b16 %v164
        %v379 = vunpack.c.l.b16 %v165
        %v380 = vunpack.c.h.b16 %v165
        %v381 = vunpack.c.l.b16 %v166
        %v382 = vunpack.c.h.b16 %v166
        %v383 = vunpack.c.l.b16 %v167
        %v384 = vunpack.c.h.b16 %v167
        %v385 = vunpack.c.l.b16 %v168
        %v386 = vunpack.c.h.b16 %v168
        %v387 = vunpack.c.l.b16 %v169
        %v388 = vunpack.c.h.b16 %v169
        %v389 = vunpack.c.l.b16 %v170
        %v390 = vunpack.c.h.b16 %v170
        %v391 = vunpack.c.l.b16 %v171
        %v392 = vunpack.c.h.b16 %v171
        %v393 = vunpack.c.l.b16 %v172
        %v394 = vunpack.c.h.b16 %v172
        %v395 = vunpack.c.l.b16 %v173
        %v396 = vunpack.c.h.b16 %v173
        %v397 = vunpack.c.l.b16 %v174
        %v398 = vunpack.c.h.b16 %v174
        %v399 = vunpack.c.l.b16 %v175
        %v400 = vunpack.c.h.b16 %v175
        %v401 = vunpack.c.l.b16 %v176
        %v402 = vunpack.c.h.b16 %v176
        %v403 = vunpack.c.l.b16 %v177
        %v404 = vunpack.c.h.b16 %v177
        %v405 = vunpack.c.l.b16 %v178
        %v406 = vunpack.c.h.b16 %v178
        %v407 = vunpack.c.l.b16 %v179
        %v408 = vunpack.c.h.b16 %v179
        %v409 = vunpack.c.l.b16 %v180
        %v410 = vunpack.c.h.b16 %v180
        %v411 = vunpack.c.l.b16 %v181
        %v412 = vunpack.c.h.b16 %v181
        %v413 = vunpack.c.l.b16 %v182
        %v414 = vunpack.c.h.b16 %v182
        %v415 = vunpack.c.l.b16 %v183
        %v416 = vunpack.c.h.b16 %v183
        %v417 = vunpack.c.l.b16 %v184
        %v418 = vunpack.c.h.b16 %v184
        %v419 = vunpack.c.l.b16 %v185
        %v420 = vunpack.c.h.b16 %v185
        %v421 = vunpack.c.l.b16 %v186
        %v422 = vunpack.c.h.b16 %v186
        %v423 = vunpack.c.l.b16 %v187
        %v424 = vunpack.c.h.b16 %v187
        %v425 = vunpack.c.l.b16 %v188
        %v426 = vunpack.c.h.b16 %v188
        %v427 = vunpack.c.l.b16 %v189
        %v428 = vunpack.c.h.b16 %v189
        %v429 = vunpack.c.l.b16 %v190
        %v430 = vunpack.c.h.b16 %v190
        %v431 = vunpack.c.l.b16 %v191
        %v432 = vunpack.c.h.b16 %v191
        %v433 = vunpack.c.l.b16 %v192
        %v434 = vunpack.c.h.b16 %v192
        %v435 = vunpack.c.l.b16 %v193
        %v436 = vunpack.c.h.b16 %v193
        %v437 = vunpack.c.l.b16 %v194
        %v438 = vunpack.c.h.b16 %v194
        %v439 = vunpack.c.l.b16 %v195
        %v440 = vunpack.c.h.b16 %v195
        %v441 = vunpack.c.l.b16 %v196
        %v442 = vunpack.c.h.b16 %v196
        %v443 = vunpack.c.l.b16 %v197
        %v444 = vunpack.c.h.b16 %v197
        %v445 = vunpack.c.l.b16 %v198
        %v446 = vunpack.c.h.b16 %v198
        %v447 = vunpack.c.l.b16 %v199
        %v448 = vunpack.c.h.b16 %v199
        %v449 = vunpack.c.l.b16 %v200
        %v450 = vunpack.c.h.b16 %v200
        %v451 = vunpack.c.l.b16 %v201
        %v452 = vunpack.c.h.b16 %v201
        %v453 = vunpack.c.l.b16 %v202
        %v454 = vunpack.c.h.b16 %v202
        %v455 = vunpack.c.l.b16 %v203
        %v456 = vunpack.c.h.b16 %v203
        %v457 = vunpack.c.l.b16 %v204
        %v458 = vunpack.c.h.b16 %v204
        %v459 = vunpack.c.l.b16 %v205
        %v460 = vunpack.c.h.b16 %v205
        %v461 = vunpack.c.l.b16 %v206
        %v462 = vunpack.c.h.b16 %v206
        %v463 = vunpack.c.l.b16 %v207
        %v464 = vunpack.c.h.b16 %v207
        %v465 = vunpack.c.l.b16 %v208
        %v466 = vunpack.c.h.b16 %v208
        %v467 = vunpack.c.l.b16 %v209
        %v468 = vunpack.c.h.b16 %v209
        %v469 = vunpack.c.l.b16 %v210
        %v470 = vunpack.c.h.b16 %v210
        %v471 = vunpack.c.l.b16 %v211
        %v472 = vunpack.c.h.b16 %v211
        %v473 = vunpack.c.l.b16 %v212
        %v474 = vunpack.c.h.b16 %v212
        %v475 = vunpack.c.l.b16 %v213
        %v476 = vunpack.c.h.b16 %v213
        %v477 = vunpack.c.l.b16 %v214
        %v478 = vunpack.c.h.b16 %v214
        %v479 = vunpack.c.l.b16 %v215
        %v480 = vunpack.c.h.b16 %v215
        %v481 = vunpack.c.l.b16 %v216
        %v482 = vunpack.c.h.b16 %v216
        %v483 = vunpack.c.l.b16 %v217
        %v484 = vunpack.c.h.b16 %v217
        %v485 = vunpack.c.l.b16 %v218
        %v486 = vunpack.c.h.b16 %v218
        %v487 = vunpack.c.l.b16 %v219
        %v488 = vunpack.c.h.b16 %v219
        %v489 = vunpack.c.l.b16 %v220
        %v490 = vunpack.c.h.b16 %v220
        %v491 = vunpack.c.l.b16 %v221
        %v492 = vunpack.c.h.b16 %v221
        %v493 = vunpack.c.l.b16 %v222
        %v494 = vunpack.c.h.b16 %v222
        %v495 = vpack.c.b16 %v375, %v367
        %v496 = vpack.c.b16 %v376, %v368
        %v497 = vpack.c.b16 %v377, %v369
        %v498 = vpack.c.b16 %v378, %v370
        %v499 = vpack.c.b16 %v379, %v371
        %v500 = vpack.c.b16 %v380, %v372
        %v501 = vpack.c.b16 %v381, %v373
        %v502 = vpack.c.b16 %v382, %v374
        %v503 = vpack.c.b16 %v391, %v383
        %v504 = vpack.c.b16 %v392, %v384
        %v505 = vpack.c.b16 %v393, %v385
        %v506 = vpack.c.b16 %v394, %v386
        %v507 = vpack.c.b16 %v395, %v387
        %v508 = vpack.c.b16 %v396, %v388
        %v509 = vpack.c.b16 %v397, %v389
        %v510 = vpack.c.b16 %v398, %v390
        %v511 = vpack.c.b16 %v407, %v399
        %v512 = vpack.c.b16 %v408, %v400
        %v513 = vpack.c.b16 %v409, %v401
        %v514 = vpack.c.b16 %v410, %v402
        %v515 = vpack.c.b16 %v411, %v403
        %v516 = vpack.c.b16 %v412, %v404
        %v517 = vpack.c.b16 %v413, %v405
        %v518 = vpack.c.b16 %v414, %v406
        %v519 = vpack.c.b16 %v423, %v415
        %v520 = vpack.c.b16 %v424, %v416
        %v521 = vpack.c.b16 %v425, %v417
        %v522 = vpack.c.b16 %v426, %v418
        %v523 = vpack.c.b16 %v427, %v419
        %v524 = vpack.c.b16 %v428, %v420
        %v525 = vpack.c.b16 %v429, %v421
        %v526 = vpack.c.b16 %v430, %v422
        %v527 = vpack.c.b16 %v439, %v431
        %v528 = vpack.c.b16 %v440, %v432
        %v529 = vpack.c.b16 %v441, %v433
        %v530 = vpack.c.b16 %v442, %v434
        %v531 = vpack.c.b16 %v443, %v435
        %v532 = vpack.c.b16 %v444, %v436
        %v533 = vpack.c.b16 %v445, %v437
        %v534 = vpack.c.b16 %v446, %v438
        %v535 = vpack.c.b16 %v455, %v447
        %v536 = vpack.c.b16 %v456, %v448
        %v537 = vpack.c.b16 %v457, %v449
        %v538 = vpack.c.b16 %v458, %v450
        %v539 = vpack.c.b16 %v459, %v451
        %v540 = vpack.c.b16 %v460, %v452
        %v541 = vpack.c.b16 %v461, %v453
        %v542 = vpack.c.b16 %v462, %v454
        %v543 = vpack.c.b16 %v471, %v463
        %v544 = vpack.c.b16 %v472, %v464
        %v545 = vpack.c.b16 %v473, %v465
        %v546 = vpack.c.b16 %v474, %v466
        %v547 = vpack.c.b16 %v475, %v467
        %v548 = vpack.c.b16 %v476, %v468
        %v549 = vpack.c.b16 %v477, %v469
        %v550 = vpack.c.b16 %v478, %v470
        %v551 = vpack.c.b16 %v487, %v479
        %v552 = vpack.c.b16 %v488, %v480
        %v553 = vpack.c.b16 %v489, %v481
        %v554 = vpack.c.b16 %v490, %v482
        %v555 = vpack.c.b16 %v491, %v483
        %v556 = vpack.c.b16 %v492, %v484
        %v557 = vpack.c.b16 %v493, %v485
        %v558 = vpack.c.b16 %v494, %v486
        %623 = vmatpush.bf16.xpose.msra.mxu0 %v551
        %624 = vmatpush.bf16.xpose.msra.mxu0 %v543
        %625 = vmatpush.bf16.xpose.msra.mxu0 %v535
        %626 = vmatpush.bf16.xpose.msra.mxu0 %v527
        %627 = vmatpush.bf16.xpose.msra.mxu0 %v519
        %628 = vmatpush.bf16.xpose.msra.mxu0 %v511
        %629 = vmatpush.bf16.xpose.msra.mxu0 %v503
        %630 = vmatpush.bf16.xpose.msra.mxu0 %v495
        %631 = vmatmul.bf16.gmra.mxu0 %v271
        %v632 = vpop.f32.mrf.mxu0
        %v633 = vadd.f32 0.0, %v632
        %v634 = vpop.f32.mrf.mxu0
        %v635 = vadd.f32 0.0, %v634
        %636 = vmatmul.bf16.gmra.mxu0 %v279
        %v637 = vpop.f32.mrf.mxu0
        %v638 = vadd.f32 0.0, %v637
        %v639 = vpop.f32.mrf.mxu0
        %v640 = vadd.f32 0.0, %v639
        %641 = vdwg.mxu0
        %642 = vmatpush.bf16.xpose.msra.mxu0 %v552
        %643 = vmatpush.bf16.xpose.msra.mxu0 %v544
        %644 = vmatpush.bf16.xpose.msra.mxu0 %v536
        %645 = vmatpush.bf16.xpose.msra.mxu0 %v528
        %646 = vmatpush.bf16.xpose.msra.mxu0 %v520
        %647 = vmatpush.bf16.xpose.msra.mxu0 %v512
        %648 = vmatpush.bf16.xpose.msra.mxu0 %v504
        %649 = vmatpush.bf16.xpose.msra.mxu0 %v496
        %650 = vmatmul.bf16.gmra.mxu0 %v272
        %v651 = vpop.f32.mrf.mxu0
        %v652 = vadd.f32 %v633, %v651
        %v653 = vpop.f32.mrf.mxu0
        %v654 = vadd.f32 %v635, %v653
        %655 = vmatmul.bf16.gmra.mxu0 %v280
        %v656 = vpop.f32.mrf.mxu0
        %v657 = vadd.f32 %v638, %v656
        %v658 = vpop.f32.mrf.mxu0
        %v659 = vadd.f32 %v640, %v658
        %660 = vdwg.mxu0
        %661 = vmatpush.bf16.xpose.msra.mxu0 %v553
        %662 = vmatpush.bf16.xpose.msra.mxu0 %v545
        %663 = vmatpush.bf16.xpose.msra.mxu0 %v537
        %664 = vmatpush.bf16.xpose.msra.mxu0 %v529
        %665 = vmatpush.bf16.xpose.msra.mxu0 %v521
        %666 = vmatpush.bf16.xpose.msra.mxu0 %v513
        %667 = vmatpush.bf16.xpose.msra.mxu0 %v505
        %668 = vmatpush.bf16.xpose.msra.mxu0 %v497
        %669 = vmatmul.bf16.gmra.mxu0 %v273
        %v670 = vpop.f32.mrf.mxu0
        %v671 = vadd.f32 %v652, %v670
        %v672 = vpop.f32.mrf.mxu0
        %v673 = vadd.f32 %v654, %v672
        %674 = vmatmul.bf16.gmra.mxu0 %v281
        %v675 = vpop.f32.mrf.mxu0
        %v676 = vadd.f32 %v657, %v675
        %v677 = vpop.f32.mrf.mxu0
        %v678 = vadd.f32 %v659, %v677
        %679 = vdwg.mxu0
        %680 = vmatpush.bf16.xpose.msra.mxu0 %v554
        %681 = vmatpush.bf16.xpose.msra.mxu0 %v546
        %682 = vmatpush.bf16.xpose.msra.mxu0 %v538
        %683 = vmatpush.bf16.xpose.msra.mxu0 %v530
        %684 = vmatpush.bf16.xpose.msra.mxu0 %v522
        %685 = vmatpush.bf16.xpose.msra.mxu0 %v514
        %686 = vmatpush.bf16.xpose.msra.mxu0 %v506
        %687 = vmatpush.bf16.xpose.msra.mxu0 %v498
        %688 = vmatmul.bf16.gmra.mxu0 %v274
        %v689 = vpop.f32.mrf.mxu0
        %v690 = vadd.f32 %v671, %v689
        %v691 = vpop.f32.mrf.mxu0
        %v692 = vadd.f32 %v673, %v691
        %693 = vmatmul.bf16.gmra.mxu0 %v282
        %v694 = vpop.f32.mrf.mxu0
        %v695 = vadd.f32 %v676, %v694
        %v696 = vpop.f32.mrf.mxu0
        %v697 = vadd.f32 %v678, %v696
        %698 = vdwg.mxu0
        %699 = vmatpush.bf16.xpose.msra.mxu0 %v555
        %700 = vmatpush.bf16.xpose.msra.mxu0 %v547
        %701 = vmatpush.bf16.xpose.msra.mxu0 %v539
        %702 = vmatpush.bf16.xpose.msra.mxu0 %v531
        %703 = vmatpush.bf16.xpose.msra.mxu0 %v523
        %704 = vmatpush.bf16.xpose.msra.mxu0 %v515
        %705 = vmatpush.bf16.xpose.msra.mxu0 %v507
        %706 = vmatpush.bf16.xpose.msra.mxu0 %v499
        %707 = vmatmul.bf16.gmra.mxu0 %v275
        %v708 = vpop.f32.mrf.mxu0
        %v709 = vadd.f32 %v690, %v708
        %v710 = vpop.f32.mrf.mxu0
        %v711 = vadd.f32 %v692, %v710
        %712 = vmatmul.bf16.gmra.mxu0 %v283
        %v713 = vpop.f32.mrf.mxu0
        %v714 = vadd.f32 %v695, %v713
        %v715 = vpop.f32.mrf.mxu0
        %v716 = vadd.f32 %v697, %v715
        %717 = vdwg.mxu0
        %718 = vmatpush.bf16.xpose.msra.mxu0 %v556
        %719 = vmatpush.bf16.xpose.msra.mxu0 %v548
        %720 = vmatpush.bf16.xpose.msra.mxu0 %v540
        %721 = vmatpush.bf16.xpose.msra.mxu0 %v532
        %722 = vmatpush.bf16.xpose.msra.mxu0 %v524
        %723 = vmatpush.bf16.xpose.msra.mxu0 %v516
        %724 = vmatpush.bf16.xpose.msra.mxu0 %v508
        %725 = vmatpush.bf16.xpose.msra.mxu0 %v500
        %726 = vmatmul.bf16.gmra.mxu0 %v276
        %v727 = vpop.f32.mrf.mxu0
        %v728 = vadd.f32 %v709, %v727
        %v729 = vpop.f32.mrf.mxu0
        %v730 = vadd.f32 %v711, %v729
        %731 = vmatmul.bf16.gmra.mxu0 %v284
        %v732 = vpop.f32.mrf.mxu0
        %v733 = vadd.f32 %v714, %v732
        %v734 = vpop.f32.mrf.mxu0
        %v735 = vadd.f32 %v716, %v734
        %736 = vdwg.mxu0
        %737 = vmatpush.bf16.xpose.msra.mxu0 %v557
        %738 = vmatpush.bf16.xpose.msra.mxu0 %v549
        %739 = vmatpush.bf16.xpose.msra.mxu0 %v541
        %740 = vmatpush.bf16.xpose.msra.mxu0 %v533
        %741 = vmatpush.bf16.xpose.msra.mxu0 %v525
        %742 = vmatpush.bf16.xpose.msra.mxu0 %v517
        %743 = vmatpush.bf16.xpose.msra.mxu0 %v509
        %744 = vmatpush.bf16.xpose.msra.mxu0 %v501
        %745 = vmatmul.bf16.gmra.mxu0 %v277
        %v746 = vpop.f32.mrf.mxu0
        %v747 = vadd.f32 %v728, %v746
        %v748 = vpop.f32.mrf.mxu0
        %v749 = vadd.f32 %v730, %v748
        %750 = vmatmul.bf16.gmra.mxu0 %v285
        %v751 = vpop.f32.mrf.mxu0
        %v752 = vadd.f32 %v733, %v751
        %v753 = vpop.f32.mrf.mxu0
        %v754 = vadd.f32 %v735, %v753
        %755 = vdwg.mxu0
        %756 = vmatpush.bf16.xpose.msra.mxu0 %v558
        %757 = vmatpush.bf16.xpose.msra.mxu0 %v550
        %758 = vmatpush.bf16.xpose.msra.mxu0 %v542
        %759 = vmatpush.bf16.xpose.msra.mxu0 %v534
        %760 = vmatpush.bf16.xpose.msra.mxu0 %v526
        %761 = vmatpush.bf16.xpose.msra.mxu0 %v518
        %762 = vmatpush.bf16.xpose.msra.mxu0 %v510
        %763 = vmatpush.bf16.xpose.msra.mxu0 %v502
        %764 = vmatmul.bf16.gmra.mxu0 %v278
        %v765 = vpop.f32.mrf.mxu0
        %v766 = vadd.f32 %v747, %v765
        %v767 = vpop.f32.mrf.mxu0
        %v768 = vadd.f32 %v749, %v767
        %769 = vmatmul.bf16.gmra.mxu0 %v286
        %v770 = vpop.f32.mrf.mxu0
        %v771 = vadd.f32 %v752, %v770
        %v772 = vpop.f32.mrf.mxu0
        %v773 = vadd.f32 %v754, %v772
        %774 = vdwg.mxu0
        %vm775 = vcmp.gt.f32.partialorder %v766, 0.0
        %vm776 = vcmp.gt.f32.partialorder %v768, 0.0
        %vm777 = vcmp.gt.f32.partialorder %v771, 0.0
        %vm778 = vcmp.gt.f32.partialorder %v773, 0.0
        %v779 = vmul.f32 %v766, 0.2
        %v780 = vmul.f32 %v768, 0.2
        %v781 = vmul.f32 %v771, 0.2
        %v782 = vmul.f32 %v773, 0.2
        %v783 = vsel %vm775, %v766, %v779
        %v784 = vsel %vm776, %v768, %v780
        %v785 = vsel %vm777, %v771, %v781
        %v786 = vsel %vm778, %v773, %v782
        %787 = vst [vmem:[%s135] sm:$0xff] %v783
        %788 = vst [vmem:[%s135 + $0x8] sm:$0xff] %v784
        %789 = vst [vmem:[%s135 + $0x10] sm:$0xff] %v785
        %790 = vst [vmem:[%s135 + $0x18] sm:$0xff] %v786
        %s791 = sand.u32 %s68, 1
        %s792 = sand.u32 %s68, 1
        %s793 = smul.addr %s792, 32
        %s794 = scalar_lea.vmem [#allocation2], %s793
        // Predicated region
        $region29: #{patch_video_discriminator_forward.6} parent=27 // pred_check
          %p795 = pneg %p78
        $region30: #{patch_video_discriminator_forward.6} parent=27 // pred_check_branch
          %797 = sbr.rel (%p795) target = $region32
        $region31: #{patch_video_discriminator_forward.6} parent=27 // pred_region
          %s798 = smul.addr %s13, 8
          %s799 = scalar_lea.vmem %s2, %s798
          // Predicated region
          $region33: #{patch_video_discriminator_forward.6} parent=31 // pred_check
            _
          $region34: #{patch_video_discriminator_forward.6} parent=31 // pred_check_branch
            %801 = sbr.rel (0) target = $region36
          $region35: #{patch_video_discriminator_forward.6} parent=31 // pred_region
            // Predicated region
            $region37: #{patch_video_discriminator_forward.6} parent=35 // pred_check
              _
            $region38: #{patch_video_discriminator_forward.6} parent=35 // pred_check_branch
              %803 = sbr.rel (0) target = $region40
            $region39: #{patch_video_discriminator_forward.6} parent=35 // pred_region
              // Predicated region
              $region52: #{patch_video_discriminator_forward.6} parent=39 // pred_check
                _
              $region53: #{patch_video_discriminator_forward.6} parent=39 // pred_check_branch
                %825 = sbr.rel (0) target = $region55
              $region54: #{patch_video_discriminator_forward.6} parent=39 // pred_region
                loop: start=0, step=1, limit=1
                $region56: #{patch_video_discriminator_forward.6} parent=54 // loop_pre_header
                  _
                $region57: #{patch_video_discriminator_forward.6} parent=54 // loop_header
                  %s827 = sphi 0, %s831
                  %p828 = scmp.ge.s32.totalorder %s827, 1
                  %s832 = sphi %s794, %s794
                  %s833 = sphi %s799, %s799
                $region58: #{patch_video_discriminator_forward.6} parent=54 // loop_header_branch
                  %830 = sbr.rel (%p828) target = $region62
                $region59: #{patch_video_discriminator_forward.6} parent=54 // loop_body
                  %v834 = vld [vmem:[%s832] sm:$0xff]
                  %835 = vst [vmem:[%s833] sm:$0xff] %v834
                  %v836 = vld [vmem:[%s832 + $0x8] sm:$0xff]
                  %837 = vst [vmem:[%s833 + $0x10] sm:$0xff] %v836
                  %v838 = vld [vmem:[%s832 + $0x10] sm:$0xff]
                  %839 = vst [vmem:[%s833 + $0x20] sm:$0xff] %v838
                  %v840 = vld [vmem:[%s832 + $0x18] sm:$0xff]
                  %841 = vst [vmem:[%s833 + $0x30] sm:$0xff] %v840
                $region60: #{patch_video_discriminator_forward.6} parent=54 // loop_footer
                  %s831 = sadd.s32 1, %s827
                $region61: #{patch_video_discriminator_forward.6} parent=54 // loop_footer_branch
                  %826 = sbr.rel target = $region57
                $region62: #{patch_video_discriminator_forward.6} parent=54 // loop_exit
                  _
              $region55: #{patch_video_discriminator_forward.6} parent=39 // pred_fallthru
                _
              // Predicated region
              $region63: #{patch_video_discriminator_forward.6} parent=39 // pred_check
                _
              $region64: #{patch_video_discriminator_forward.6} parent=39 // pred_check_branch
                %843 = sbr.rel target = $region66
              $region65: #{patch_video_discriminator_forward.6} parent=39 // pred_region
                _
              $region66: #{patch_video_discriminator_forward.6} parent=39 // pred_fallthru
                _
            $region40: #{patch_video_discriminator_forward.6} parent=35 // pred_fallthru
              _
            // Predicated region
            $region41: #{patch_video_discriminator_forward.6} parent=35 // pred_check
              _
            $region42: #{patch_video_discriminator_forward.6} parent=35 // pred_check_branch
              %805 = sbr.rel target = $region44
            $region43: #{patch_video_discriminator_forward.6} parent=35 // pred_region
              %s807 = ssub.s32 256, 1
              loop: start=0, step=1, limit=1
              $region45: #{patch_video_discriminator_forward.6} parent=43 // loop_pre_header
                _
              $region46: #{patch_video_discriminator_forward.6} parent=43 // loop_header
                %s809 = sphi 0, %s813
                %p810 = scmp.ge.s32.totalorder %s809, 1
                %s814 = sphi %s794, %s794
                %s815 = sphi %s799, %s799
              $region47: #{patch_video_discriminator_forward.6} parent=43 // loop_header_branch
                %812 = sbr.rel (%p810) target = $region51
              $region48: #{patch_video_discriminator_forward.6} parent=43 // loop_body
                %v816 = vld [vmem:[%s814] sm:%s807]
                %817 = vst [vmem:[%s815] sm:%s807] %v816
                %v818 = vld [vmem:[%s814 + $0x8] sm:%s807]
                %819 = vst [vmem:[%s815 + $0x10] sm:%s807] %v818
                %v820 = vld [vmem:[%s814 + $0x10] sm:%s807]
                %821 = vst [vmem:[%s815 + $0x20] sm:%s807] %v820
                %v822 = vld [vmem:[%s814 + $0x18] sm:%s807]
                %823 = vst [vmem:[%s815 + $0x30] sm:%s807] %v822
              $region49: #{patch_video_discriminator_forward.6} parent=43 // loop_footer
                %s813 = sadd.s32 1, %s809
              $region50: #{patch_video_discriminator_forward.6} parent=43 // loop_footer_branch
                %808 = sbr.rel target = $region46
              $region51: #{patch_video_discriminator_forward.6} parent=43 // loop_exit
                _
            $region44: #{patch_video_discriminator_forward.6} parent=35 // pred_fallthru
              _
          $region36: #{patch_video_discriminator_forward.6} parent=31 // pred_fallthru
            _
          %844 = vnop
        $region32: #{patch_video_discriminator_forward.6} parent=27 // pred_fallthru
          _
      $region28: #{patch_video_discriminator_forward.6} parent=5 // pred_fallthru
        _
      %p845 = scmp.le.s32.totalorder 2, %s8
      // Predicated region
      $region67: #{patch_video_discriminator_forward.6} parent=5 // pred_check
        %p846 = pneg %p845
      $region68: #{patch_video_discriminator_forward.6} parent=5 // pred_check_branch
        %848 = sbr.rel (%p846) target = $region70
      $region69: #{patch_video_discriminator_forward.6} parent=5 // pred_region
        %s849 = ssub.s32 %s8, 2
        // Predicated region
        $region71: #{patch_video_discriminator_forward.6} parent=69 // pred_check
          %p850 = pneg %p84
        $region72: #{patch_video_discriminator_forward.6} parent=69 // pred_check_branch
          %852 = sbr.rel (%p850) target = $region74
        $region73: #{patch_video_discriminator_forward.6} parent=69 // pred_region
          %s853 = sand.u32 %s69, 1
          %s854 = sand.u32 %s69, 1
          %s855 = smul.addr %s854, 32
          %s856 = scalar_lea.vmem [#allocation2], %s855
        $region74: #{patch_video_discriminator_forward.6} parent=69 // pred_fallthru
          _
      $region70: #{patch_video_discriminator_forward.6} parent=5 // pred_fallthru
        _
    $region6: #{patch_video_discriminator_forward.6} parent=1 // loop_footer
      %s12 = sadd.s32 1, %s8
    $region7: #{patch_video_discriminator_forward.6} parent=1 // loop_footer_branch
      %7 = sbr.rel target = $region3
    $region8: #{patch_video_discriminator_forward.6} parent=1 // loop_exit
      _

// kernel: patch_video_discriminator_forward.7
$region0: #{patch_video_discriminator_forward.7}
  #allocation0 [shape = 'u32[]', space=smem, size = 0x4, offset = 0x4, fixed_abs, tag = 'smem constant byte address 0x4 - core index']
  #allocation1 [shape = 'u32[72,128]{1,0:T(1,128)}', space=vmem, size = 0x9000, scoped, tag = 'internal scratch']
  %s0 = inlined_call_operand.vmem [shape: bf16[128,2048], index: 0, kind: input, shape index: {}]
  %s1 = inlined_call_operand.vmem [shape: bf16[1,2048], index: 1, kind: input, shape index: {}]
  %s2 = inlined_call_operand.vmem [shape: f32[1,128], index: 2, kind: output, shape index: {}]
  %s3 = sld [smem:[#allocation0]]
  $region18: #{patch_video_discriminator_forward.7} parent=0
    _
  %s5 = ssub.s32 1, %s3
  %s6 = scalar_select 0, %s5, %s3
  // Predicated region
  $region2: #{patch_video_discriminator_forward.7} parent=0 // pred_check
    _
  $region3: #{patch_video_discriminator_forward.7} parent=0 // pred_check_branch
    %8 = sbr.rel (0) target = $region5
  $region4: #{patch_video_discriminator_forward.7} parent=0 // pred_region
    _
  $region5: #{patch_video_discriminator_forward.7} parent=0 // pred_fallthru
    _
  // Predicated region
  $region6: #{patch_video_discriminator_forward.7} parent=0 // pred_check
    _
  $region7: #{patch_video_discriminator_forward.7} parent=0 // pred_check_branch
    %10 = sbr.rel (0) target = $region9
  $region8: #{patch_video_discriminator_forward.7} parent=0 // pred_region
    _
  $region9: #{patch_video_discriminator_forward.7} parent=0 // pred_fallthru
    _
  %v11 = vld [vmem:[%s1] sm:$0xff]
  %v12 = vld [vmem:[%s1 + $0x8] sm:$0xff]
  %v13 = vld [vmem:[%s0] sm:$0xff]
  %v14 = vld [vmem:[%s0 + $0x8] sm:$0xff]
  %v15 = vld [vmem:[%s0 + $0x10] sm:$0xff]
  %v16 = vld [vmem:[%s0 + $0x18] sm:$0xff]
  %v17 = vld [vmem:[%s0 + $0x20] sm:$0xff]
  %v18 = vld [vmem:[%s0 + $0x28] sm:$0xff]
  %v19 = vld [vmem:[%s0 + $0x30] sm:$0xff]
  %v20 = vld [vmem:[%s0 + $0x38] sm:$0xff]
  %v21 = vld [vmem:[%s0 + $0x40] sm:$0xff]
  %v22 = vld [vmem:[%s0 + $0x48] sm:$0xff]
  %v23 = vld [vmem:[%s0 + $0x50] sm:$0xff]
  %v24 = vld [vmem:[%s0 + $0x58] sm:$0xff]
  %v25 = vld [vmem:[%s0 + $0x60] sm:$0xff]
  %v26 = vld [vmem:[%s0 + $0x68] sm:$0xff]
  %v27 = vld [vmem:[%s0 + $0x70] sm:$0xff]
  %v28 = vld [vmem:[%s0 + $0x78] sm:$0xff]
  %v29 = vld [vmem:[%s0 + $0x80] sm:$0xff]
  %v30 = vld [vmem:[%s0 + $0x88] sm:$0xff]
  %v31 = vld [vmem:[%s0 + $0x90] sm:$0xff]
  %v32 = vld [vmem:[%s0 + $0x98] sm:$0xff]
  %v33 = vld [vmem:[%s0 + $0xa0] sm:$0xff]
  %v34 = vld [vmem:[%s0 + $0xa8] sm:$0xff]
  %v35 = vld [vmem:[%s0 + $0xb0] sm:$0xff]
  %v36 = vld [vmem:[%s0 + $0xb8] sm:$0xff]
  %v37 = vld [vmem:[%s0 + $0xc0] sm:$0xff]
  %v38 = vld [vmem:[%s0 + $0xc8] sm:$0xff]
  %v39 = vld [vmem:[%s0 + $0xd0] sm:$0xff]
  %v40 = vld [vmem:[%s0 + $0xd8] sm:$0xff]
  %v41 = vld [vmem:[%s0 + $0xe0] sm:$0xff]
  %v42 = vld [vmem:[%s0 + $0xe8] sm:$0xff]
  %v43 = vld [vmem:[%s0 + $0xf0] sm:$0xff]
  %v44 = vld [vmem:[%s0 + $0xf8] sm:$0xff]
  %v45 = vld [vmem:[%s0 + $0x100] sm:$0xff]
  %v46 = vld [vmem:[%s0 + $0x108] sm:$0xff]
  %v47 = vld [vmem:[%s0 + $0x110] sm:$0xff]
  %v48 = vld [vmem:[%s0 + $0x118] sm:$0xff]
  %v49 = vld [vmem:[%s0 + $0x120] sm:$0xff]
  %v50 = vld [vmem:[%s0 + $0x128] sm:$0xff]
  %v51 = vld [vmem:[%s0 + $0x130] sm:$0xff]
  %v52 = vld [vmem:[%s0 + $0x138] sm:$0xff]
  %v53 = vld [vmem:[%s0 + $0x140] sm:$0xff]
  %v54 = vld [vmem:[%s0 + $0x148] sm:$0xff]
  %v55 = vld [vmem:[%s0 + $0x150] sm:$0xff]
  %v56 = vld [vmem:[%s0 + $0x158] sm:$0xff]
  %v57 = vld [vmem:[%s0 + $0x160] sm:$0xff]
  %v58 = vld [vmem:[%s0 + $0x168] sm:$0xff]
  %v59 = vld [vmem:[%s0 + $0x170] sm:$0xff]
  %v60 = vld [vmem:[%s0 + $0x178] sm:$0xff]
  %v61 = vld [vmem:[%s0 + $0x180] sm:$0xff]
  %v62 = vld [vmem:[%s0 + $0x188] sm:$0xff]
  %v63 = vld [vmem:[%s0 + $0x190] sm:$0xff]
  %v64 = vld [vmem:[%s0 + $0x198] sm:$0xff]
  %v65 = vld [vmem:[%s0 + $0x1a0] sm:$0xff]
  %v66 = vld [vmem:[%s0 + $0x1a8] sm:$0xff]
  %v67 = vld [vmem:[%s0 + $0x1b0] sm:$0xff]
  %v68 = vld [vmem:[%s0 + $0x1b8] sm:$0xff]
  %v69 = vld [vmem:[%s0 + $0x1c0] sm:$0xff]
  %v70 = vld [vmem:[%s0 + $0x1c8] sm:$0xff]
  %v71 = vld [vmem:[%s0 + $0x1d0] sm:$0xff]
  %v72 = vld [vmem:[%s0 + $0x1d8] sm:$0xff]
  %v73 = vld [vmem:[%s0 + $0x1e0] sm:$0xff]
  %v74 = vld [vmem:[%s0 + $0x1e8] sm:$0xff]
  %v75 = vld [vmem:[%s0 + $0x1f0] sm:$0xff]
  %v76 = vld [vmem:[%s0 + $0x1f8] sm:$0xff]
  %v77 = vld [vmem:[%s0 + $0x200] sm:$0xff]
  %v78 = vld [vmem:[%s0 + $0x208] sm:$0xff]
  %v79 = vld [vmem:[%s0 + $0x210] sm:$0xff]
  %v80 = vld [vmem:[%s0 + $0x218] sm:$0xff]
  %v81 = vld [vmem:[%s0 + $0x220] sm:$0xff]
  %v82 = vld [vmem:[%s0 + $0x228] sm:$0xff]
  %v83 = vld [vmem:[%s0 + $0x230] sm:$0xff]
  %v84 = vld [vmem:[%s0 + $0x238] sm:$0xff]
  %v85 = vld [vmem:[%s0 + $0x240] sm:$0xff]
  %v86 = vld [vmem:[%s0 + $0x248] sm:$0xff]
  %v87 = vld [vmem:[%s0 + $0x250] sm:$0xff]
  %v88 = vld [vmem:[%s0 + $0x258] sm:$0xff]
  %v89 = vld [vmem:[%s0 + $0x260] sm:$0xff]
  %v90 = vld [vmem:[%s0 + $0x268] sm:$0xff]
  %v91 = vld [vmem:[%s0 + $0x270] sm:$0xff]
  %v92 = vld [vmem:[%s0 + $0x278] sm:$0xff]
  %v93 = vld [vmem:[%s0 + $0x280] sm:$0xff]
  %v94 = vld [vmem:[%s0 + $0x288] sm:$0xff]
  %v95 = vld [vmem:[%s0 + $0x290] sm:$0xff]
  %v96 = vld [vmem:[%s0 + $0x298] sm:$0xff]
  %v97 = vld [vmem:[%s0 + $0x2a0] sm:$0xff]
  %v98 = vld [vmem:[%s0 + $0x2a8] sm:$0xff]
  %v99 = vld [vmem:[%s0 + $0x2b0] sm:$0xff]
  %v100 = vld [vmem:[%s0 + $0x2b8] sm:$0xff]
  %v101 = vld [vmem:[%s0 + $0x2c0] sm:$0xff]
  %v102 = vld [vmem:[%s0 + $0x2c8] sm:$0xff]
  %v103 = vld [vmem:[%s0 + $0x2d0] sm:$0xff]
  %v104 = vld [vmem:[%s0 + $0x2d8] sm:$0xff]
  %v105 = vld [vmem:[%s0 + $0x2e0] sm:$0xff]
  %v106 = vld [vmem:[%s0 + $0x2e8] sm:$0xff]
  %v107 = vld [vmem:[%s0 + $0x2f0] sm:$0xff]
  %v108 = vld [vmem:[%s0 + $0x2f8] sm:$0xff]
  %v109 = vld [vmem:[%s0 + $0x300] sm:$0xff]
  %v110 = vld [vmem:[%s0 + $0x308] sm:$0xff]
  %v111 = vld [vmem:[%s0 + $0x310] sm:$0xff]
  %v112 = vld [vmem:[%s0 + $0x318] sm:$0xff]
  %v113 = vld [vmem:[%s0 + $0x320] sm:$0xff]
  %v114 = vld [vmem:[%s0 + $0x328] sm:$0xff]
  %v115 = vld [vmem:[%s0 + $0x330] sm:$0xff]
  %v116 = vld [vmem:[%s0 + $0x338] sm:$0xff]
  %v117 = vld [vmem:[%s0 + $0x340] sm:$0xff]
  %v118 = vld [vmem:[%s0 + $0x348] sm:$0xff]
  %v119 = vld [vmem:[%s0 + $0x350] sm:$0xff]
  %v120 = vld [vmem:[%s0 + $0x358] sm:$0xff]
  %v121 = vld [vmem:[%s0 + $0x360] sm:$0xff]
  %v122 = vld [vmem:[%s0 + $0x368] sm:$0xff]
  %v123 = vld [vmem:[%s0 + $0x370] sm:$0xff]
  %v124 = vld [vmem:[%s0 + $0x378] sm:$0xff]
  %v125 = vld [vmem:[%s0 + $0x380] sm:$0xff]
  %v126 = vld [vmem:[%s0 + $0x388] sm:$0xff]
  %v127 = vld [vmem:[%s0 + $0x390] sm:$0xff]
  %v128 = vld [vmem:[%s0 + $0x398] sm:$0xff]
  %v129 = vld [vmem:[%s0 + $0x3a0] sm:$0xff]
  %v130 = vld [vmem:[%s0 + $0x3a8] sm:$0xff]
  %v131 = vld [vmem:[%s0 + $0x3b0] sm:$0xff]
  %v132 = vld [vmem:[%s0 + $0x3b8] sm:$0xff]
  %v133 = vld [vmem:[%s0 + $0x3c0] sm:$0xff]
  %v134 = vld [vmem:[%s0 + $0x3c8] sm:$0xff]
  %v135 = vld [vmem:[%s0 + $0x3d0] sm:$0xff]
  %v136 = vld [vmem:[%s0 + $0x3d8] sm:$0xff]
  %v137 = vld [vmem:[%s0 + $0x3e0] sm:$0xff]
  %v138 = vld [vmem:[%s0 + $0x3e8] sm:$0xff]
  %v139 = vld [vmem:[%s0 + $0x3f0] sm:$0xff]
  %v140 = vld [vmem:[%s0 + $0x3f8] sm:$0xff]
  %142 = vst [vmem:[#allocation1] ss:$9 sm:$0xff] %v11
  %v143 = vld [vmem:[#allocation1] sm:$0xff]
  %v144 = vld [vmem:[#allocation1 + $0x9] sm:$0xff]
  %v145 = vld [vmem:[#allocation1 + $0x12] sm:$0xff]
  %v146 = vld [vmem:[#allocation1 + $0x1b] sm:$0xff]
  %v147 = vld [vmem:[#allocation1 + $0x24] sm:$0xff]
  %v148 = vld [vmem:[#allocation1 + $0x2d] sm:$0xff]
  %v149 = vld [vmem:[#allocation1 + $0x36] sm:$0xff]
  %v150 = vld [vmem:[#allocation1 + $0x3f] sm:$0xff]
  %152 = vst [vmem:[#allocation1] ss:$9 sm:$0xff] %v12
  %v153 = vld [vmem:[#allocation1] sm:$0xff]
  %v154 = vld [vmem:[#allocation1 + $0x9] sm:$0xff]
  %v155 = vld [vmem:[#allocation1 + $0x12] sm:$0xff]
  %v156 = vld [vmem:[#allocation1 + $0x1b] sm:$0xff]
  %v157 = vld [vmem:[#allocation1 + $0x24] sm:$0xff]
  %v158 = vld [vmem:[#allocation1 + $0x2d] sm:$0xff]
  %v159 = vld [vmem:[#allocation1 + $0x36] sm:$0xff]
  %v160 = vld [vmem:[#allocation1 + $0x3f] sm:$0xff]
  %v305 = vunpack.c.l.b16 %v13
  %v306 = vunpack.c.h.b16 %v13
  %v307 = vunpack.c.l.b16 %v14
  %v308 = vunpack.c.h.b16 %v14
  %v309 = vunpack.c.l.b16 %v15
  %v310 = vunpack.c.h.b16 %v15
  %v311 = vunpack.c.l.b16 %v16
  %v312 = vunpack.c.h.b16 %v16
  %v313 = vunpack.c.l.b16 %v17
  %v314 = vunpack.c.h.b16 %v17
  %v315 = vunpack.c.l.b16 %v18
  %v316 = vunpack.c.h.b16 %v18
  %v317 = vunpack.c.l.b16 %v19
  %v318 = vunpack.c.h.b16 %v19
  %v319 = vunpack.c.l.b16 %v20
  %v320 = vunpack.c.h.b16 %v20
  %v321 = vunpack.c.l.b16 %v21
  %v322 = vunpack.c.h.b16 %v21
  %v323 = vunpack.c.l.b16 %v22
  %v324 = vunpack.c.h.b16 %v22
  %v325 = vunpack.c.l.b16 %v23
  %v326 = vunpack.c.h.b16 %v23
  %v327 = vunpack.c.l.b16 %v24
  %v328 = vunpack.c.h.b16 %v24
  %v329 = vunpack.c.l.b16 %v25
  %v330 = vunpack.c.h.b16 %v25
  %v331 = vunpack.c.l.b16 %v26
  %v332 = vunpack.c.h.b16 %v26
  %v333 = vunpack.c.l.b16 %v27
  %v334 = vunpack.c.h.b16 %v27
  %v335 = vunpack.c.l.b16 %v28
  %v336 = vunpack.c.h.b16 %v28
  %v337 = vunpack.c.l.b16 %v29
  %v338 = vunpack.c.h.b16 %v29
  %v339 = vunpack.c.l.b16 %v30
  %v340 = vunpack.c.h.b16 %v30
  %v341 = vunpack.c.l.b16 %v31
  %v342 = vunpack.c.h.b16 %v31
  %v343 = vunpack.c.l.b16 %v32
  %v344 = vunpack.c.h.b16 %v32
  %v345 = vunpack.c.l.b16 %v33
  %v346 = vunpack.c.h.b16 %v33
  %v347 = vunpack.c.l.b16 %v34
  %v348 = vunpack.c.h.b16 %v34
  %v349 = vunpack.c.l.b16 %v35
  %v350 = vunpack.c.h.b16 %v35
  %v351 = vunpack.c.l.b16 %v36
  %v352 = vunpack.c.h.b16 %v36
  %v353 = vunpack.c.l.b16 %v37
  %v354 = vunpack.c.h.b16 %v37
  %v355 = vunpack.c.l.b16 %v38
  %v356 = vunpack.c.h.b16 %v38
  %v357 = vunpack.c.l.b16 %v39
  %v358 = vunpack.c.h.b16 %v39
  %v359 = vunpack.c.l.b16 %v40
  %v360 = vunpack.c.h.b16 %v40
  %v361 = vunpack.c.l.b16 %v41
  %v362 = vunpack.c.h.b16 %v41
  %v363 = vunpack.c.l.b16 %v42
  %v364 = vunpack.c.h.b16 %v42
  %v365 = vunpack.c.l.b16 %v43
  %v366 = vunpack.c.h.b16 %v43
  %v367 = vunpack.c.l.b16 %v44
  %v368 = vunpack.c.h.b16 %v44
  %v369 = vunpack.c.l.b16 %v45
  %v370 = vunpack.c.h.b16 %v45
  %v371 = vunpack.c.l.b16 %v46
  %v372 = vunpack.c.h.b16 %v46
  %v373 = vunpack.c.l.b16 %v47
  %v374 = vunpack.c.h.b16 %v47
  %v375 = vunpack.c.l.b16 %v48
  %v376 = vunpack.c.h.b16 %v48
  %v377 = vunpack.c.l.b16 %v49
  %v378 = vunpack.c.h.b16 %v49
  %v379 = vunpack.c.l.b16 %v50
  %v380 = vunpack.c.h.b16 %v50
  %v381 = vunpack.c.l.b16 %v51
  %v382 = vunpack.c.h.b16 %v51
  %v383 = vunpack.c.l.b16 %v52
  %v384 = vunpack.c.h.b16 %v52
  %v385 = vunpack.c.l.b16 %v53
  %v386 = vunpack.c.h.b16 %v53
  %v387 = vunpack.c.l.b16 %v54
  %v388 = vunpack.c.h.b16 %v54
  %v389 = vunpack.c.l.b16 %v55
  %v390 = vunpack.c.h.b16 %v55
  %v391 = vunpack.c.l.b16 %v56
  %v392 = vunpack.c.h.b16 %v56
  %v393 = vunpack.c.l.b16 %v57
  %v394 = vunpack.c.h.b16 %v57
  %v395 = vunpack.c.l.b16 %v58
  %v396 = vunpack.c.h.b16 %v58
  %v397 = vunpack.c.l.b16 %v59
  %v398 = vunpack.c.h.b16 %v59
  %v399 = vunpack.c.l.b16 %v60
  %v400 = vunpack.c.h.b16 %v60
  %v401 = vunpack.c.l.b16 %v61
  %v402 = vunpack.c.h.b16 %v61
  %v403 = vunpack.c.l.b16 %v62
  %v404 = vunpack.c.h.b16 %v62
  %v405 = vunpack.c.l.b16 %v63
  %v406 = vunpack.c.h.b16 %v63
  %v407 = vunpack.c.l.b16 %v64
  %v408 = vunpack.c.h.b16 %v64
  %v409 = vunpack.c.l.b16 %v65
  %v410 = vunpack.c.h.b16 %v65
  %v411 = vunpack.c.l.b16 %v66
  %v412 = vunpack.c.h.b16 %v66
  %v413 = vunpack.c.l.b16 %v67
  %v414 = vunpack.c.h.b16 %v67
  %v415 = vunpack.c.l.b16 %v68
  %v416 = vunpack.c.h.b16 %v68
  %v417 = vunpack.c.l.b16 %v69
  %v418 = vunpack.c.h.b16 %v69
  %v419 = vunpack.c.l.b16 %v70
  %v420 = vunpack.c.h.b16 %v70
  %v421 = vunpack.c.l.b16 %v71
  %v422 = vunpack.c.h.b16 %v71
  %v423 = vunpack.c.l.b16 %v72
  %v424 = vunpack.c.h.b16 %v72
  %v425 = vunpack.c.l.b16 %v73
  %v426 = vunpack.c.h.b16 %v73
  %v427 = vunpack.c.l.b16 %v74
  %v428 = vunpack.c.h.b16 %v74
  %v429 = vunpack.c.l.b16 %v75
  %v430 = vunpack.c.h.b16 %v75
  %v431 = vunpack.c.l.b16 %v76
  %v432 = vunpack.c.h.b16 %v76
  %v433 = vunpack.c.l.b16 %v77
  %v434 = vunpack.c.h.b16 %v77
  %v435 = vunpack.c.l.b16 %v78
  %v436 = vunpack.c.h.b16 %v78
  %v437 = vunpack.c.l.b16 %v79
  %v438 = vunpack.c.h.b16 %v79
  %v439 = vunpack.c.l.b16 %v80
  %v440 = vunpack.c.h.b16 %v80
  %v441 = vunpack.c.l.b16 %v81
  %v442 = vunpack.c.h.b16 %v81
  %v443 = vunpack.c.l.b16 %v82
  %v444 = vunpack.c.h.b16 %v82
  %v445 = vunpack.c.l.b16 %v83
  %v446 = vunpack.c.h.b16 %v83
  %v447 = vunpack.c.l.b16 %v84
  %v448 = vunpack.c.h.b16 %v84
  %v449 = vunpack.c.l.b16 %v85
  %v450 = vunpack.c.h.b16 %v85
  %v451 = vunpack.c.l.b16 %v86
  %v452 = vunpack.c.h.b16 %v86
  %v453 = vunpack.c.l.b16 %v87
  %v454 = vunpack.c.h.b16 %v87
  %v455 = vunpack.c.l.b16 %v88
  %v456 = vunpack.c.h.b16 %v88
  %v457 = vunpack.c.l.b16 %v89
  %v458 = vunpack.c.h.b16 %v89
  %v459 = vunpack.c.l.b16 %v90
  %v460 = vunpack.c.h.b16 %v90
  %v461 = vunpack.c.l.b16 %v91
  %v462 = vunpack.c.h.b16 %v91
  %v463 = vunpack.c.l.b16 %v92
  %v464 = vunpack.c.h.b16 %v92
  %v465 = vunpack.c.l.b16 %v93
  %v466 = vunpack.c.h.b16 %v93
  %v467 = vunpack.c.l.b16 %v94
  %v468 = vunpack.c.h.b16 %v94
  %v469 = vunpack.c.l.b16 %v95
  %v470 = vunpack.c.h.b16 %v95
  %v471 = vunpack.c.l.b16 %v96
  %v472 = vunpack.c.h.b16 %v96
  %v473 = vunpack.c.l.b16 %v97
  %v474 = vunpack.c.h.b16 %v97
  %v475 = vunpack.c.l.b16 %v98
  %v476 = vunpack.c.h.b16 %v98
  %v477 = vunpack.c.l.b16 %v99
  %v478 = vunpack.c.h.b16 %v99
  %v479 = vunpack.c.l.b16 %v100
  %v480 = vunpack.c.h.b16 %v100
  %v481 = vunpack.c.l.b16 %v101
  %v482 = vunpack.c.h.b16 %v101
  %v483 = vunpack.c.l.b16 %v102
  %v484 = vunpack.c.h.b16 %v102
  %v485 = vunpack.c.l.b16 %v103
  %v486 = vunpack.c.h.b16 %v103
  %v487 = vunpack.c.l.b16 %v104
  %v488 = vunpack.c.h.b16 %v104
  %v489 = vunpack.c.l.b16 %v105
  %v490 = vunpack.c.h.b16 %v105
  %v491 = vunpack.c.l.b16 %v106
  %v492 = vunpack.c.h.b16 %v106
  %v493 = vunpack.c.l.b16 %v107
  %v494 = vunpack.c.h.b16 %v107
  %v495 = vunpack.c.l.b16 %v108
  %v496 = vunpack.c.h.b16 %v108
  %v497 = vunpack.c.l.b16 %v109
  %v498 = vunpack.c.h.b16 %v109
  %v499 = vunpack.c.l.b16 %v110
  %v500 = vunpack.c.h.b16 %v110
  %v501 = vunpack.c.l.b16 %v111
  %v502 = vunpack.c.h.b16 %v111
  %v503 = vunpack.c.l.b16 %v112
  %v504 = vunpack.c.h.b16 %v112
  %v505 = vunpack.c.l.b16 %v113
  %v506 = vunpack.c.h.b16 %v113
  %v507 = vunpack.c.l.b16 %v114
  %v508 = vunpack.c.h.b16 %v114
  %v509 = vunpack.c.l.b16 %v115
  %v510 = vunpack.c.h.b16 %v115
  %v511 = vunpack.c.l.b16 %v116
  %v512 = vunpack.c.h.b16 %v116
  %v513 = vunpack.c.l.b16 %v117
  %v514 = vunpack.c.h.b16 %v117
  %v515 = vunpack.c.l.b16 %v118
  %v516 = vunpack.c.h.b16 %v118
  %v517 = vunpack.c.l.b16 %v119
  %v518 = vunpack.c.h.b16 %v119
  %v519 = vunpack.c.l.b16 %v120
  %v520 = vunpack.c.h.b16 %v120
  %v521 = vunpack.c.l.b16 %v121
  %v522 = vunpack.c.h.b16 %v121
  %v523 = vunpack.c.l.b16 %v122
  %v524 = vunpack.c.h.b16 %v122
  %v525 = vunpack.c.l.b16 %v123
  %v526 = vunpack.c.h.b16 %v123
  %v527 = vunpack.c.l.b16 %v124
  %v528 = vunpack.c.h.b16 %v124
  %v529 = vunpack.c.l.b16 %v125
  %v530 = vunpack.c.h.b16 %v125
  %v531 = vunpack.c.l.b16 %v126
  %v532 = vunpack.c.h.b16 %v126
  %v533 = vunpack.c.l.b16 %v127
  %v534 = vunpack.c.h.b16 %v127
  %v535 = vunpack.c.l.b16 %v128
  %v536 = vunpack.c.h.b16 %v128
  %v537 = vunpack.c.l.b16 %v129
  %v538 = vunpack.c.h.b16 %v129
  %v539 = vunpack.c.l.b16 %v130
  %v540 = vunpack.c.h.b16 %v130
  %v541 = vunpack.c.l.b16 %v131
  %v542 = vunpack.c.h.b16 %v131
  %v543 = vunpack.c.l.b16 %v132
  %v544 = vunpack.c.h.b16 %v132
  %v545 = vunpack.c.l.b16 %v133
  %v546 = vunpack.c.h.b16 %v133
  %v547 = vunpack.c.l.b16 %v134
  %v548 = vunpack.c.h.b16 %v134
  %v549 = vunpack.c.l.b16 %v135
  %v550 = vunpack.c.h.b16 %v135
  %v551 = vunpack.c.l.b16 %v136
  %v552 = vunpack.c.h.b16 %v136
  %v553 = vunpack.c.l.b16 %v137
  %v554 = vunpack.c.h.b16 %v137
  %v555 = vunpack.c.l.b16 %v138
  %v556 = vunpack.c.h.b16 %v138
  %v557 = vunpack.c.l.b16 %v139
  %v558 = vunpack.c.h.b16 %v139
  %v559 = vunpack.c.l.b16 %v140
  %v560 = vunpack.c.h.b16 %v140
  %v561 = vpack.c.b16 %v321, %v305
  %v562 = vpack.c.b16 %v322, %v306
  %v563 = vpack.c.b16 %v323, %v307
  %v564 = vpack.c.b16 %v324, %v308
  %v565 = vpack.c.b16 %v325, %v309
  %v566 = vpack.c.b16 %v326, %v310
  %v567 = vpack.c.b16 %v327, %v311
  %v568 = vpack.c.b16 %v328, %v312
  %v569 = vpack.c.b16 %v329, %v313
  %v570 = vpack.c.b16 %v330, %v314
  %v571 = vpack.c.b16 %v331, %v315
  %v572 = vpack.c.b16 %v332, %v316
  %v573 = vpack.c.b16 %v333, %v317
  %v574 = vpack.c.b16 %v334, %v318
  %v575 = vpack.c.b16 %v335, %v319
  %v576 = vpack.c.b16 %v336, %v320
  %v577 = vpack.c.b16 %v353, %v337
  %v578 = vpack.c.b16 %v354, %v338
  %v579 = vpack.c.b16 %v355, %v339
  %v580 = vpack.c.b16 %v356, %v340
  %v581 = vpack.c.b16 %v357, %v341
  %v582 = vpack.c.b16 %v358, %v342
  %v583 = vpack.c.b16 %v359, %v343
  %v584 = vpack.c.b16 %v360, %v344
  %v585 = vpack.c.b16 %v361, %v345
  %v586 = vpack.c.b16 %v362, %v346
  %v587 = vpack.c.b16 %v363, %v347
  %v588 = vpack.c.b16 %v364, %v348
  %v589 = vpack.c.b16 %v365, %v349
  %v590 = vpack.c.b16 %v366, %v350
  %v591 = vpack.c.b16 %v367, %v351
  %v592 = vpack.c.b16 %v368, %v352
  %v593 = vpack.c.b16 %v385, %v369
  %v594 = vpack.c.b16 %v386, %v370
  %v595 = vpack.c.b16 %v387, %v371
  %v596 = vpack.c.b16 %v388, %v372
  %v597 = vpack.c.b16 %v389, %v373
  %v598 = vpack.c.b16 %v390, %v374
  %v599 = vpack.c.b16 %v391, %v375
  %v600 = vpack.c.b16 %v392, %v376
  %v601 = vpack.c.b16 %v393, %v377
  %v602 = vpack.c.b16 %v394, %v378
  %v603 = vpack.c.b16 %v395, %v379
  %v604 = vpack.c.b16 %v396, %v380
  %v605 = vpack.c.b16 %v397, %v381
  %v606 = vpack.c.b16 %v398, %v382
  %v607 = vpack.c.b16 %v399, %v383
  %v608 = vpack.c.b16 %v400, %v384
  %v609 = vpack.c.b16 %v417, %v401
  %v610 = vpack.c.b16 %v418, %v402
  %v611 = vpack.c.b16 %v419, %v403
  %v612 = vpack.c.b16 %v420, %v404
  %v613 = vpack.c.b16 %v421, %v405
  %v614 = vpack.c.b16 %v422, %v406
  %v615 = vpack.c.b16 %v423, %v407
  %v616 = vpack.c.b16 %v424, %v408
  %v617 = vpack.c.b16 %v425, %v409
  %v618 = vpack.c.b16 %v426, %v410
  %v619 = vpack.c.b16 %v427, %v411
  %v620 = vpack.c.b16 %v428, %v412
  %v621 = vpack.c.b16 %v429, %v413
  %v622 = vpack.c.b16 %v430, %v414
  %v623 = vpack.c.b16 %v431, %v415
  %v624 = vpack.c.b16 %v432, %v416
  %v625 = vpack.c.b16 %v449, %v433
  %v626 = vpack.c.b16 %v450, %v434
  %v627 = vpack.c.b16 %v451, %v435
  %v628 = vpack.c.b16 %v452, %v436
  %v629 = vpack.c.b16 %v453, %v437
  %v630 = vpack.c.b16 %v454, %v438
  %v631 = vpack.c.b16 %v455, %v439
  %v632 = vpack.c.b16 %v456, %v440
  %v633 = vpack.c.b16 %v457, %v441
  %v634 = vpack.c.b16 %v458, %v442
  %v635 = vpack.c.b16 %v459, %v443
  %v636 = vpack.c.b16 %v460, %v444
  %v637 = vpack.c.b16 %v461, %v445
  %v638 = vpack.c.b16 %v462, %v446
  %v639 = vpack.c.b16 %v463, %v447
  %v640 = vpack.c.b16 %v464, %v448
  %v641 = vpack.c.b16 %v481, %v465
  %v642 = vpack.c.b16 %v482, %v466
  %v643 = vpack.c.b16 %v483, %v467
  %v644 = vpack.c.b16 %v484, %v468
  %v645 = vpack.c.b16 %v485, %v469
  %v646 = vpack.c.b16 %v486, %v470
  %v647 = vpack.c.b16 %v487, %v471
  %v648 = vpack.c.b16 %v488, %v472
  %v649 = vpack.c.b16 %v489, %v473
  %v650 = vpack.c.b16 %v490, %v474
  %v651 = vpack.c.b16 %v491, %v475
  %v652 = vpack.c.b16 %v492, %v476
  %v653 = vpack.c.b16 %v493, %v477
  %v654 = vpack.c.b16 %v494, %v478
  %v655 = vpack.c.b16 %v495, %v479
  %v656 = vpack.c.b16 %v496, %v480
  %v657 = vpack.c.b16 %v513, %v497
  %v658 = vpack.c.b16 %v514, %v498
  %v659 = vpack.c.b16 %v515, %v499
  %v660 = vpack.c.b16 %v516, %v500
  %v661 = vpack.c.b16 %v517, %v501
  %v662 = vpack.c.b16 %v518, %v502
  %v663 = vpack.c.b16 %v519, %v503
  %v664 = vpack.c.b16 %v520, %v504
  %v665 = vpack.c.b16 %v521, %v505
  %v666 = vpack.c.b16 %v522, %v506
  %v667 = vpack.c.b16 %v523, %v507
  %v668 = vpack.c.b16 %v524, %v508
  %v669 = vpack.c.b16 %v525, %v509
  %v670 = vpack.c.b16 %v526, %v510
  %v671 = vpack.c.b16 %v527, %v511
  %v672 = vpack.c.b16 %v528, %v512
  %v673 = vpack.c.b16 %v545, %v529
  %v674 = vpack.c.b16 %v546, %v530
  %v675 = vpack.c.b16 %v547, %v531
  %v676 = vpack.c.b16 %v548, %v532
  %v677 = vpack.c.b16 %v549, %v533
  %v678 = vpack.c.b16 %v550, %v534
  %v679 = vpack.c.b16 %v551, %v535
  %v680 = vpack.c.b16 %v552, %v536
  %v681 = vpack.c.b16 %v553, %v537
  %v682 = vpack.c.b16 %v554, %v538
  %v683 = vpack.c.b16 %v555, %v539
  %v684 = vpack.c.b16 %v556, %v540
  %v685 = vpack.c.b16 %v557, %v541
  %v686 = vpack.c.b16 %v558, %v542
  %v687 = vpack.c.b16 %v559, %v543
  %v688 = vpack.c.b16 %v560, %v544
  %817 = vmatpush.bf16.xpose.msra.mxu0 %v673
  %818 = vmatpush.bf16.xpose.msra.mxu0 %v657
  %819 = vmatpush.bf16.xpose.msra.mxu0 %v641
  %820 = vmatpush.bf16.xpose.msra.mxu0 %v625
  %821 = vmatpush.bf16.xpose.msra.mxu0 %v609
  %822 = vmatpush.bf16.xpose.msra.mxu0 %v593
  %823 = vmatpush.bf16.xpose.msra.mxu0 %v577
  %824 = vmatpush.bf16.xpose.msra.mxu0 %v561
  %825 = vmatmul.bf16.gmra.mxu0 %v143
  %v826 = vpop.f32.mrf.mxu0
  %v827 = vadd.f32 0.0, %v826
  %v828 = vpop.f32.mrf.mxu0
  %829 = vdwg.mxu0
  %830 = vmatpush.bf16.xpose.msra.mxu0 %v674
  %831 = vmatpush.bf16.xpose.msra.mxu0 %v658
  %832 = vmatpush.bf16.xpose.msra.mxu0 %v642
  %833 = vmatpush.bf16.xpose.msra.mxu0 %v626
  %834 = vmatpush.bf16.xpose.msra.mxu0 %v610
  %835 = vmatpush.bf16.xpose.msra.mxu0 %v594
  %836 = vmatpush.bf16.xpose.msra.mxu0 %v578
  %837 = vmatpush.bf16.xpose.msra.mxu0 %v562
  %838 = vmatmul.bf16.gmra.mxu0 %v144
  %v839 = vpop.f32.mrf.mxu0
  %v840 = vadd.f32 %v827, %v839
  %v841 = vpop.f32.mrf.mxu0
  %842 = vdwg.mxu0
  %843 = vmatpush.bf16.xpose.msra.mxu0 %v675
  %844 = vmatpush.bf16.xpose.msra.mxu0 %v659
  %845 = vmatpush.bf16.xpose.msra.mxu0 %v643
  %846 = vmatpush.bf16.xpose.msra.mxu0 %v627
  %847 = vmatpush.bf16.xpose.msra.mxu0 %v611
  %848 = vmatpush.bf16.xpose.msra.mxu0 %v595
  %849 = vmatpush.bf16.xpose.msra.mxu0 %v579
  %850 = vmatpush.bf16.xpose.msra.mxu0 %v563
  %851 = vmatmul.bf16.gmra.mxu0 %v145
  %v852 = vpop.f32.mrf.mxu0
  %v853 = vadd.f32 %v840, %v852
  %v854 = vpop.f32.mrf.mxu0
  %855 = vdwg.mxu0
  %856 = vmatpush.bf16.xpose.msra.mxu0 %v676
  %857 = vmatpush.bf16.xpose.msra.mxu0 %v660
  %858 = vmatpush.bf16.xpose.msra.mxu0 %v644
  %859 = vmatpush.bf16.xpose.msra.mxu0 %v628
  %860 = vmatpush.bf16.xpose.msra.mxu0 %v612
  %861 = vmatpush.bf16.xpose.msra.mxu0 %v596
  %862 = vmatpush.bf16.xpose.msra.mxu0 %v580
  %863 = vmatpush.bf16.xpose.msra.mxu0 %v564
  %864 = vmatmul.bf16.gmra.mxu0 %v146
  %v865 = vpop.f32.mrf.mxu0
  %v866 = vadd.f32 %v853, %v865
  %v867 = vpop.f32.mrf.mxu0
  %868 = vdwg.mxu0
  %869 = vmatpush.bf16.xpose.msra.mxu0 %v677
  %870 = vmatpush.bf16.xpose.msra.mxu0 %v661
  %871 = vmatpush.bf16.xpose.msra.mxu0 %v645
  %872 = vmatpush.bf16.xpose.msra.mxu0 %v629
  %873 = vmatpush.bf16.xpose.msra.mxu0 %v613
  %874 = vmatpush.bf16.xpose.msra.mxu0 %v597
  %875 = vmatpush.bf16.xpose.msra.mxu0 %v581
  %876 = vmatpush.bf16.xpose.msra.mxu0 %v565
  %877 = vmatmul.bf16.gmra.mxu0 %v147
  %v878 = vpop.f32.mrf.mxu0
  %v879 = vadd.f32 %v866, %v878
  %v880 = vpop.f32.mrf.mxu0
  %881 = vdwg.mxu0
  %882 = vmatpush.bf16.xpose.msra.mxu0 %v678
  %883 = vmatpush.bf16.xpose.msra.mxu0 %v662
  %884 = vmatpush.bf16.xpose.msra.mxu0 %v646
  %885 = vmatpush.bf16.xpose.msra.mxu0 %v630
  %886 = vmatpush.bf16.xpose.msra.mxu0 %v614
  %887 = vmatpush.bf16.xpose.msra.mxu0 %v598
  %888 = vmatpush.bf16.xpose.msra.mxu0 %v582
  %889 = vmatpush.bf16.xpose.msra.mxu0 %v566
  %890 = vmatmul.bf16.gmra.mxu0 %v148
  %v891 = vpop.f32.mrf.mxu0
  %v892 = vadd.f32 %v879, %v891
  %v893 = vpop.f32.mrf.mxu0
  %894 = vdwg.mxu0
  %895 = vmatpush.bf16.xpose.msra.mxu0 %v679
  %896 = vmatpush.bf16.xpose.msra.mxu0 %v663
  %897 = vmatpush.bf16.xpose.msra.mxu0 %v647
  %898 = vmatpush.bf16.xpose.msra.mxu0 %v631
  %899 = vmatpush.bf16.xpose.msra.mxu0 %v615
  %900 = vmatpush.bf16.xpose.msra.mxu0 %v599
  %901 = vmatpush.bf16.xpose.msra.mxu0 %v583
  %902 = vmatpush.bf16.xpose.msra.mxu0 %v567
  %903 = vmatmul.bf16.gmra.mxu0 %v149
  %v904 = vpop.f32.mrf.mxu0
  %v905 = vadd.f32 %v892, %v904
  %v906 = vpop.f32.mrf.mxu0
  %907 = vdwg.mxu0
  %908 = vmatpush.bf16.xpose.msra.mxu0 %v680
  %909 = vmatpush.bf16.xpose.msra.mxu0 %v664
  %910 = vmatpush.bf16.xpose.msra.mxu0 %v648
  %911 = vmatpush.bf16.xpose.msra.mxu0 %v632
  %912 = vmatpush.bf16.xpose.msra.mxu0 %v616
  %913 = vmatpush.bf16.xpose.msra.mxu0 %v600
  %914 = vmatpush.bf16.xpose.msra.mxu0 %v584
  %915 = vmatpush.bf16.xpose.msra.mxu0 %v568
  %916 = vmatmul.bf16.gmra.mxu0 %v150
  %v917 = vpop.f32.mrf.mxu0
  %v918 = vadd.f32 %v905, %v917
  %v919 = vpop.f32.mrf.mxu0
  %920 = vdwg.mxu0
  %921 = vmatpush.bf16.xpose.msra.mxu0 %v681
  %922 = vmatpush.bf16.xpose.msra.mxu0 %v665
  %923 = vmatpush.bf16.xpose.msra.mxu0 %v649
  %924 = vmatpush.bf16.xpose.msra.mxu0 %v633
  %925 = vmatpush.bf16.xpose.msra.mxu0 %v617
  %926 = vmatpush.bf16.xpose.msra.mxu0 %v601
  %927 = vmatpush.bf16.xpose.msra.mxu0 %v585
  %928 = vmatpush.bf16.xpose.msra.mxu0 %v569
  %929 = vmatmul.bf16.gmra.mxu0 %v153
  %v930 = vpop.f32.mrf.mxu0
  %v931 = vadd.f32 %v918, %v930
  %v932 = vpop.f32.mrf.mxu0
  %933 = vdwg.mxu0
  %934 = vmatpush.bf16.xpose.msra.mxu0 %v682
  %935 = vmatpush.bf16.xpose.msra.mxu0 %v666
  %936 = vmatpush.bf16.xpose.msra.mxu0 %v650
  %937 = vmatpush.bf16.xpose.msra.mxu0 %v634
  %938 = vmatpush.bf16.xpose.msra.mxu0 %v618
  %939 = vmatpush.bf16.xpose.msra.mxu0 %v602
  %940 = vmatpush.bf16.xpose.msra.mxu0 %v586
  %941 = vmatpush.bf16.xpose.msra.mxu0 %v570
  %942 = vmatmul.bf16.gmra.mxu0 %v154
  %v943 = vpop.f32.mrf.mxu0
  %v944 = vadd.f32 %v931, %v943
  %v945 = vpop.f32.mrf.mxu0
  %946 = vdwg.mxu0
  %947 = vmatpush.bf16.xpose.msra.mxu0 %v683
  %948 = vmatpush.bf16.xpose.msra.mxu0 %v667
  %949 = vmatpush.bf16.xpose.msra.mxu0 %v651
  %950 = vmatpush.bf16.xpose.msra.mxu0 %v635
  %951 = vmatpush.bf16.xpose.msra.mxu0 %v619
  %952 = vmatpush.bf16.xpose.msra.mxu0 %v603
  %953 = vmatpush.bf16.xpose.msra.mxu0 %v587
  %954 = vmatpush.bf16.xpose.msra.mxu0 %v571
  %955 = vmatmul.bf16.gmra.mxu0 %v155
  %v956 = vpop.f32.mrf.mxu0
  %v957 = vadd.f32 %v944, %v956
  %v958 = vpop.f32.mrf.mxu0
  %959 = vdwg.mxu0
  %960 = vmatpush.bf16.xpose.msra.mxu0 %v684
  %961 = vmatpush.bf16.xpose.msra.mxu0 %v668
  %962 = vmatpush.bf16.xpose.msra.mxu0 %v652
  %963 = vmatpush.bf16.xpose.msra.mxu0 %v636
  %964 = vmatpush.bf16.xpose.msra.mxu0 %v620
  %965 = vmatpush.bf16.xpose.msra.mxu0 %v604
  %966 = vmatpush.bf16.xpose.msra.mxu0 %v588
  %967 = vmatpush.bf16.xpose.msra.mxu0 %v572
  %968 = vmatmul.bf16.gmra.mxu0 %v156
  %v969 = vpop.f32.mrf.mxu0
  %v970 = vadd.f32 %v957, %v969
  %v971 = vpop.f32.mrf.mxu0
  %972 = vdwg.mxu0
  %973 = vmatpush.bf16.xpose.msra.mxu0 %v685
  %974 = vmatpush.bf16.xpose.msra.mxu0 %v669
  %975 = vmatpush.bf16.xpose.msra.mxu0 %v653
  %976 = vmatpush.bf16.xpose.msra.mxu0 %v637
  %977 = vmatpush.bf16.xpose.msra.mxu0 %v621
  %978 = vmatpush.bf16.xpose.msra.mxu0 %v605
  %979 = vmatpush.bf16.xpose.msra.mxu0 %v589
  %980 = vmatpush.bf16.xpose.msra.mxu0 %v573
  %981 = vmatmul.bf16.gmra.mxu0 %v157
  %v982 = vpop.f32.mrf.mxu0
  %v983 = vadd.f32 %v970, %v982
  %v984 = vpop.f32.mrf.mxu0
  %985 = vdwg.mxu0
  %986 = vmatpush.bf16.xpose.msra.mxu0 %v686
  %987 = vmatpush.bf16.xpose.msra.mxu0 %v670
  %988 = vmatpush.bf16.xpose.msra.mxu0 %v654
  %989 = vmatpush.bf16.xpose.msra.mxu0 %v638
  %990 = vmatpush.bf16.xpose.msra.mxu0 %v622
  %991 = vmatpush.bf16.xpose.msra.mxu0 %v606
  %992 = vmatpush.bf16.xpose.msra.mxu0 %v590
  %993 = vmatpush.bf16.xpose.msra.mxu0 %v574
  %994 = vmatmul.bf16.gmra.mxu0 %v158
  %v995 = vpop.f32.mrf.mxu0
  %v996 = vadd.f32 %v983, %v995
  %v997 = vpop.f32.mrf.mxu0
  %998 = vdwg.mxu0
  %999 = vmatpush.bf16.xpose.msra.mxu0 %v687
  %1000 = vmatpush.bf16.xpose.msra.mxu0 %v671
  %1001 = vmatpush.bf16.xpose.msra.mxu0 %v655
  %1002 = vmatpush.bf16.xpose.msra.mxu0 %v639
  %1003 = vmatpush.bf16.xpose.msra.mxu0 %v623
  %1004 = vmatpush.bf16.xpose.msra.mxu0 %v607
  %1005 = vmatpush.bf16.xpose.msra.mxu0 %v591
  %1006 = vmatpush.bf16.xpose.msra.mxu0 %v575
  %1007 = vmatmul.bf16.gmra.mxu0 %v159
  %v1008 = vpop.f32.mrf.mxu0
  %v1009 = vadd.f32 %v996, %v1008
  %v1010 = vpop.f32.mrf.mxu0
  %1011 = vdwg.mxu0
  %1012 = vmatpush.bf16.xpose.msra.mxu0 %v688
  %1013 = vmatpush.bf16.xpose.msra.mxu0 %v672
  %1014 = vmatpush.bf16.xpose.msra.mxu0 %v656
  %1015 = vmatpush.bf16.xpose.msra.mxu0 %v640
  %1016 = vmatpush.bf16.xpose.msra.mxu0 %v624
  %1017 = vmatpush.bf16.xpose.msra.mxu0 %v608
  %1018 = vmatpush.bf16.xpose.msra.mxu0 %v592
  %1019 = vmatpush.bf16.xpose.msra.mxu0 %v576
  %1020 = vmatmul.bf16.gmra.mxu0 %v160
  %v1021 = vpop.f32.mrf.mxu0
  %v1022 = vadd.f32 %v1009, %v1021
  %v1023 = vpop.f32.mrf.mxu0
  %1024 = vdwg.mxu0
  %1025 = vst [vmem:[%s2] sm:$0x1] %v1022
  // Predicated region
  $region10: #{patch_video_discriminator_forward.7} parent=0 // pred_check
    _
  $region11: #{patch_video_discriminator_forward.7} parent=0 // pred_check_branch
    %1027 = sbr.rel (0) target = $region13
  $region12: #{patch_video_discriminator_forward.7} parent=0 // pred_region
    _
  $region13: #{patch_video_discriminator_forward.7} parent=0 // pred_fallthru
    _
  // Predicated region
  $region14: #{patch_video_discriminator_forward.7} parent=0 // pred_check
    _
  $region15: #{patch_video_discriminator_forward.7} parent=0 // pred_check_branch
    %1029 = sbr.rel (0) target = $region17
  $region16: #{patch_video_discriminator_forward.7} parent=0 // pred_region
    _
  $region17: #{patch_video_discriminator_forward.7} parent=0 // pred_fallthru
    _

</llo_original>
